<compile_context>
chip_gen: v5e
topology: v5e:2x2
jax: 0.10.0
libtpu: 0.0.40
codegen_flags: <defaults>
</compile_context>

<pallas_src>
import functools
import math

import numpy as np
import jax
import jax.numpy as jnp
from jax.experimental import pallas as pl
from jax.experimental.pallas import tpu as pltpu  # noqa: F401  (scale-up knobs)


def _layer_norm(x, g, b, eps):
    mu = jnp.mean(x, axis=-1, keepdims=True)
    xc = x - mu
    var = jnp.mean(xc * xc, axis=-1, keepdims=True)
    return xc * jax.lax.rsqrt(var + eps) * g + b


def _encoder_kernel(ids_ref, posoff_ref, pad_bias_ref, emb_tbl_ref,
                    emb_g_ref, emb_b_ref,
                    wqkv_ref, bqkv_ref, wo_ref, bo_ref,
                    ln1_g_ref, ln1_b_ref, w1_ref, b1_ref, w2_ref, b2_ref,
                    ln2_g_ref, ln2_b_ref, fin_g_ref, fin_b_ref,
                    cls_ref, *, num_heads, eps):
    N = ids_ref.shape[0]                 # N = B * T (flattened utterances x tokens)
    B, _, T = pad_bias_ref.shape
    K_emb, H = emb_tbl_ref.shape         # K_emb = padded vocab rows + padded pos rows
    L = wqkv_ref.shape[0]
    Dh = H // num_heads
    scale = 1.0 / math.sqrt(Dh)

    ids = ids_ref[...]                   # (N, 1) int32
    posoff = posoff_ref[...]             # (N, 1) int32, already offset by vocab rows

    # ---- Fused embeddings: ONE gather-free one-hot matmul on the MXU --------
    # Out-of-range token ids silently map to a zero embedding (nn.Embedding
    # would raise); inputs here are pre-sanitized.
    col = jax.lax.broadcasted_iota(jnp.int32, (N, K_emb), 1)
    onehot = jnp.logical_or(ids == col, posoff == col).astype(jnp.float32)  # (N, K_emb)
    x = jnp.dot(onehot, emb_tbl_ref[...], preferred_element_type=jnp.float32)
    x = _layer_norm(x, emb_g_ref[...], emb_b_ref[...], eps)                 # (N, H)
    # dropout: eval mode -> identity

    # Hoisted key-padding additive bias: broadcast ONCE, reused by every layer/head.
    pad_bias = jnp.broadcast_to(pad_bias_ref[...], (B, T, T))

    # ---- Encoder layers (post-norm, ReLU FFN) -------------------------------
    for l in range(L):
        # Fused QKV projection: one (N, H) x (H, 3H) matmul at DEFAULT precision.
        qkv = jnp.dot(x, wqkv_ref[l], preferred_element_type=jnp.float32) + bqkv_ref[l]
        q = qkv[:, 0 * H:1 * H].reshape(B, T, H)
        k = qkv[:, 1 * H:2 * H].reshape(B, T, H)
        v = qkv[:, 2 * H:3 * H].reshape(B, T, H)

        ctx_heads = []
        for h in range(num_heads):
            sl = slice(h * Dh, (h + 1) * Dh)
            s = jnp.einsum("btd,bsd->bts", q[:, :, sl], k[:, :, sl],
                           preferred_element_type=jnp.float32) * scale
            s = s + pad_bias                                     # mask padded keys
            m = jnp.max(s, axis=-1, keepdims=True)
            e = jnp.exp(s - m)
            denom = jnp.sum(e, axis=-1, keepdims=True)
            alpha = e * pl.reciprocal(denom, approx=True)        # EUP vrcp slot
            ctx_heads.append(jnp.einsum("bts,bsd->btd", alpha, v[:, :, sl],
                                        preferred_element_type=jnp.float32))
        # Merge heads, then ONE K=H output-projection dot (Wo pre-transposed).
        ctx = jnp.concatenate(ctx_heads, axis=-1).reshape(N, H)
        attn = jnp.dot(ctx, wo_ref[l], preferred_element_type=jnp.float32) + bo_ref[l]

        if l == L - 1:
            # Last layer: only the CLS (token 0) rows feed the output, so run
            # ln1 / FFN / ln2 / final LayerNorm on those B rows only.
            xa = (x + attn).reshape(B, T, H)[:, 0:1, :].reshape(B, H)
            xa = _layer_norm(xa, ln1_g_ref[l], ln1_b_ref[l], eps)
            hmid = jnp.dot(xa, w1_ref[l], preferred_element_type=jnp.float32) + b1_ref[l]
            hmid = jnp.maximum(hmid, 0.0)                        # ReLU
            ff = jnp.dot(hmid, w2_ref[l], preferred_element_type=jnp.float32) + b2_ref[l]
            xa = _layer_norm(xa + ff, ln2_g_ref[l], ln2_b_ref[l], eps)
            cls_ref[...] = _layer_norm(xa, fin_g_ref[...], fin_b_ref[...], eps)
        else:
            x = _layer_norm(x + attn, ln1_g_ref[l], ln1_b_ref[l], eps)
            hmid = jnp.dot(x, w1_ref[l], preferred_element_type=jnp.float32) + b1_ref[l]
            hmid = jnp.maximum(hmid, 0.0)                        # ReLU
            ff = jnp.dot(hmid, w2_ref[l], preferred_element_type=jnp.float32) + b2_ref[l]
            x = _layer_norm(x + ff, ln2_g_ref[l], ln2_b_ref[l], eps)


@functools.partial(jax.jit, static_argnames=("num_heads", "padding_idx", "eps"))
def transformer_encoder_forward(ids, pos_ids, params, *, num_heads,
                                padding_idx=0, eps=1e-5):
    """ids / pos_ids: (B, T) int32; returns (B, H) CLS representations."""
    B, T = ids.shape
    H = params["word_emb"].shape[1]
    layers = params["layers"]

    def row(v):                         # 1-D (d,) -> (1, d) for clean 2-D layout
        return v.reshape(1, -1)

    def pad_rows(tbl):                  # pad table rows to a multiple of 8 (zeros)
        r = tbl.shape[0]
        rp = ((r + 7) // 8) * 8
        return jnp.zeros((rp, tbl.shape[1]), tbl.dtype).at[:r, :].set(tbl)

    # Wrapper-side layout plumbing (free): pre-transpose + fuse the weights.
    wqkv = jnp.stack([lp["in_proj_w"].T for lp in layers])       # (L, H, 3H)
    bqkv = jnp.stack([row(lp["in_proj_b"]) for lp in layers])    # (L, 1, 3H)
    wo = jnp.stack([lp["out_w"].T for lp in layers])             # (L, H, H)
    bo = jnp.stack([row(lp["out_b"]) for lp in layers])
    ln1g = jnp.stack([row(lp["ln1_g"]) for lp in layers])
    ln1b = jnp.stack([row(lp["ln1_b"]) for lp in layers])
    w1 = jnp.stack([lp["lin1_w"].T for lp in layers])            # (L, H, 4H)
    b1 = jnp.stack([row(lp["lin1_b"]) for lp in layers])
    w2 = jnp.stack([lp["lin2_w"].T for lp in layers])            # (L, 4H, H)
    b2 = jnp.stack([row(lp["lin2_b"]) for lp in layers])
    ln2g = jnp.stack([row(lp["ln2_g"]) for lp in layers])
    ln2b = jnp.stack([row(lp["ln2_b"]) for lp in layers])

    # Fused embedding table: [word_emb ; pos_emb] (rows padded to multiples of 8).
    word_tbl = pad_rows(params["word_emb"])
    pos_tbl = pad_rows(params["pos_emb"])
    vocab_rows = word_tbl.shape[0]                               # static int
    emb_tbl = jnp.concatenate([word_tbl, pos_tbl], axis=0)       # (Vp + Pp, H)

    # Flattened token ids / offset position ids, and the key-padding additive
    # bias (padding_mask comes from Embeddings.forward in the original module).
    ids_flat = ids.reshape(B * T, 1).astype(jnp.int32)
    posoff_flat = pos_ids.reshape(B * T, 1).astype(jnp.int32) + vocab_rows
    pad_bias = jnp.where(ids == padding_idx, jnp.float32(-1e9),
                         jnp.float32(0.0))[:, None, :]           # (B, 1, T)

    kernel = functools.partial(_encoder_kernel, num_heads=num_heads, eps=eps)
    return pl.pallas_call(
        kernel,
        out_shape=jax.ShapeDtypeStruct((B, H), jnp.float32),
    )(ids_flat, posoff_flat, pad_bias, emb_tbl,
      row(params["emb_ln_g"]), row(params["emb_ln_b"]),
      wqkv, bqkv, wo, bo, ln1g, ln1b, w1, b1, w2, b2, ln2g, ln2b,
      row(params["fin_g"]), row(params["fin_b"]))


# ------------------------- pure-JAX reference --------------------------------
@functools.partial(jax.jit, static_argnames=("num_heads", "padding_idx", "eps"))
def _reference(ids, pos_ids, params, *, num_heads, padding_idx=0, eps=1e-5):
    # Reference runs at HIGHEST matmul precision; the kernel uses DEFAULT.
    with jax.default_matmul_precision("highest"):
        x = params["word_emb"][ids] + params["pos_emb"][pos_ids]  # (B, T, H)
        x = _layer_norm(x, params["emb_ln_g"], params["emb_ln_b"], eps)
        B, T, H = x.shape
        Dh = H // num_heads
        scale = 1.0 / math.sqrt(Dh)
        pad_bias = jnp.where(ids == padding_idx, jnp.float32(-1e9),
                             jnp.float32(0.0))[:, None, None, :]

        for lp in params["layers"]:
            qkv = x @ lp["in_proj_w"].T + lp["in_proj_b"]
            q, k, v = jnp.split(qkv, 3, axis=-1)

            def heads(t):
                return t.reshape(B, T, num_heads, Dh).transpose(0, 2, 1, 3)

            qh, kh, vh = heads(q), heads(k), heads(v)
            s = jnp.einsum("bhtd,bhsd->bhts", qh, kh) * scale + pad_bias
            a = jax.nn.softmax(s, axis=-1)
            ctx = jnp.einsum("bhts,bhsd->bhtd", a, vh).transpose(0, 2, 1, 3)
            ctx = ctx.reshape(B, T, H)
            attn = ctx @ lp["out_w"].T + lp["out_b"]
            x = _layer_norm(x + attn, lp["ln1_g"], lp["ln1_b"], eps)
            ff = jnp.maximum(x @ lp["lin1_w"].T + lp["lin1_b"], 0.0)
            ff = ff @ lp["lin2_w"].T + lp["lin2_b"]
            x = _layer_norm(x + ff, lp["ln2_g"], lp["ln2_b"], eps)

        x = _layer_norm(x, params["fin_g"], params["fin_b"], eps)
        return x[:, 0, :]


# ------------------- host-side preprocessing (Embeddings.forward) ------------
def build_utterance_batch(input_list, max_seq_len, padding_idx,
                          cls_idx=101, sep_idx=102):
    # TODO(synk): this ragged Python/host-side splitting of conversations into
    # fixed-length utterance windows has no Pallas equivalent; reproduced in numpy.
    uttr_nums = [un for _, un in input_list]
    total = int(sum(uttr_nums))
    ids = np.full((total, max_seq_len), padding_idx, dtype=np.int32)
    pos = np.full((total, max_seq_len), padding_idx, dtype=np.int32)
    un = 0
    for conv_ids, uttr_num in input_list:
        assert uttr_num == conv_ids.count(sep_idx)
        uttr_tmp = []
        for idx in conv_ids:
            if un < total:
                uttr_tmp.append(idx)
                if idx == sep_idx:
                    if len(uttr_tmp) > max_seq_len:
                        uttr_tmp = uttr_tmp[:max_seq_len - 1] + [sep_idx]
                    ids[un, :len(uttr_tmp)] = np.asarray(uttr_tmp, dtype=np.int32)
                    pos[un, :len(uttr_tmp)] = np.arange(1, len(uttr_tmp) + 1,
                                                        dtype=np.int32)
                    un += 1
                    uttr_tmp = [cls_idx]
    return ids, pos


if __name__ == "__main__":
    # Module config (small, consistent with the spec).
    n_layer = 2
    hidden_size = 32
    num_attention_heads = 4
    vocab_size = 128            # must cover cls=101 / sep=102
    max_position_size = 8       # per-utterance sequence length T
    padding_idx = 0
    eps = 1e-5
    H, L, T, FF = hidden_size, n_layer, max_position_size, 4 * hidden_size

    # Two conversations -> 4 utterances total (B = 4).
    input_list = [
        ([101, 5, 6, 7, 102, 8, 9, 102], 2),
        ([101, 10, 11, 12, 13, 14, 15, 16, 102, 17, 102], 2),
    ]
    ids_np, pos_np = build_utterance_batch(input_list, T, padding_idx)
    ids = jnp.asarray(ids_np)
    pos_ids = jnp.asarray(pos_np)
    B = ids.shape[0]

    key = jax.random.PRNGKey(0)
    keys = jax.random.split(key, 8 + 12 * L)
    ki = iter(range(len(keys)))

    def uniform(k, shape, fan_in):
        bound = 1.0 / math.sqrt(fan_in)
        return jax.random.uniform(k, shape, jnp.float32, -bound, bound)

    def ln_params(k):
        k1, k2 = jax.random.split(k)
        g = 1.0 + 0.05 * jax.random.normal(k1, (H,), jnp.float32)
        b = 0.05 * jax.random.normal(k2, (H,), jnp.float32)
        return g, b

    word_emb = 0.02 * jax.random.normal(keys[next(ki)], (vocab_size, H), jnp.float32)
    word_emb = word_emb.at[padding_idx].set(0.0)     # nn.Embedding padding_idx row
    pos_emb = 0.02 * jax.random.normal(keys[next(ki)],
                                       (max_position_size + 1, H), jnp.float32)
    pos_emb = pos_emb.at[padding_idx].set(0.0)

    emb_ln_g, emb_ln_b = ln_params(keys[next(ki)])
    fin_g, fin_b = ln_params(keys[next(ki)])

    layers = []
    for _ in range(L):
        lp = {
            "in_proj_w": uniform(keys[next(ki)], (3 * H, H), H),
            "in_proj_b": uniform(keys[next(ki)], (3 * H,), H),
            "out_w": uniform(keys[next(ki)], (H, H), H),
            "out_b": uniform(keys[next(ki)], (H,), H),
            "lin1_w": uniform(keys[next(ki)], (FF, H), H),
            "lin1_b": uniform(keys[next(ki)], (FF,), H),
            "lin2_w": uniform(keys[next(ki)], (H, FF), FF),
            "lin2_b": uniform(keys[next(ki)], (H,), FF),
        }
        lp["ln1_g"], lp["ln1_b"] = ln_params(keys[next(ki)])
        lp["ln2_g"], lp["ln2_b"] = ln_params(keys[next(ki)])
        layers.append(lp)

    params = {
        "word_emb": word_emb, "pos_emb": pos_emb,
        "emb_ln_g": emb_ln_g, "emb_ln_b": emb_ln_b,
        "layers": layers,
        "fin_g": fin_g, "fin_b": fin_b,
    }

    out = transformer_encoder_forward(ids, pos_ids, params,
                                      num_heads=num_attention_heads,
                                      padding_idx=padding_idx, eps=eps)
    jax.block_until_ready(out)

    ref = _reference(ids, pos_ids, params, num_heads=num_attention_heads,
                     padding_idx=padding_idx, eps=eps)
    jax.block_until_ready(ref)

    assert out.shape == (B, H)
    # Tolerance accounts for DEFAULT-precision (bf16-pass) MXU matmuls in the
    # kernel + approx reciprocal vs a HIGHEST-precision f32 reference; outputs
    # are unit-variance per row, so this is ~2% worst-element relative error.
    err = float(jnp.max(jnp.abs(out - ref)))
    assert err < 2e-2, f"max abs error {err}"
    print("KERNEL_OK")
</pallas_src>

<mosaic_0001>
module attributes {stable_mosaic.version = 11 : i64} {
  func.func @_encoder_kernel(%arg0: memref<32x1xi32, #tpu.memory_space<vmem>>, %arg1: memref<32x1xi32, #tpu.memory_space<vmem>>, %arg2: memref<4x1x8xf32, #tpu.memory_space<vmem>>, %arg3: memref<144x32xf32, #tpu.memory_space<vmem>>, %arg4: memref<1x32xf32, #tpu.memory_space<vmem>>, %arg5: memref<1x32xf32, #tpu.memory_space<vmem>>, %arg6: memref<2x32x96xf32, #tpu.memory_space<vmem>>, %arg7: memref<2x1x96xf32, #tpu.memory_space<vmem>>, %arg8: memref<2x32x32xf32, #tpu.memory_space<vmem>>, %arg9: memref<2x1x32xf32, #tpu.memory_space<vmem>>, %arg10: memref<2x1x32xf32, #tpu.memory_space<vmem>>, %arg11: memref<2x1x32xf32, #tpu.memory_space<vmem>>, %arg12: memref<2x32x128xf32, #tpu.memory_space<vmem>>, %arg13: memref<2x1x128xf32, #tpu.memory_space<vmem>>, %arg14: memref<2x128x32xf32, #tpu.memory_space<vmem>>, %arg15: memref<2x1x32xf32, #tpu.memory_space<vmem>>, %arg16: memref<2x1x32xf32, #tpu.memory_space<vmem>>, %arg17: memref<2x1x32xf32, #tpu.memory_space<vmem>>, %arg18: memref<1x32xf32, #tpu.memory_space<vmem>>, %arg19: memref<1x32xf32, #tpu.memory_space<vmem>>, %arg20: memref<4x32xf32, #tpu.memory_space<vmem>>) attributes {dimension_semantics = [], scalar_prefetch = 0 : i64, scratch_operands = 0 : i64, tpu.core_type = #tpu.core_type<tc>} {
    %c0 = arith.constant 0 : index
    %c0_0 = arith.constant 0 : index
    %0 = vector.load %arg0[%c0, %c0_0] : memref<32x1xi32, #tpu.memory_space<vmem>>, vector<32x1xi32>
    %c0_1 = arith.constant 0 : index
    %c0_2 = arith.constant 0 : index
    %1 = vector.load %arg1[%c0_1, %c0_2] : memref<32x1xi32, #tpu.memory_space<vmem>>, vector<32x1xi32>
    %2 = tpu.iota {dimensions = array<i32: 1>} : vector<32x144xi32>
    %3 = vector.broadcast %0 : vector<32x1xi32> to vector<32x144xi32>
    %4 = arith.cmpi eq, %3, %2 : vector<32x144xi32>
    %5 = vector.broadcast %1 : vector<32x1xi32> to vector<32x144xi32>
    %6 = arith.cmpi eq, %5, %2 : vector<32x144xi32>
    %7 = arith.ori %4, %6 : vector<32x144xi1>
    %8 = arith.extui %7 : vector<32x144xi1> to vector<32x144xi32>
    %9 = arith.sitofp %8 : vector<32x144xi32> to vector<32x144xf32>
    %c0_3 = arith.constant 0 : index
    %c0_4 = arith.constant 0 : index
    %10 = vector.load %arg3[%c0_3, %c0_4] : memref<144x32xf32, #tpu.memory_space<vmem>>, vector<144x32xf32>
    %cst = arith.constant dense<0.000000e+00> : vector<32x32xf32>
    %11 = tpu.matmul %9, %10, %cst {dimension_numbers = #tpu.dot_dimension_numbers<[1], [0], [0], [1], [0, 0, 1, 1], [], []>} : vector<32x144xf32>, vector<144x32xf32>, vector<32x32xf32> -> vector<32x32xf32>
    %c0_5 = arith.constant 0 : index
    %c0_6 = arith.constant 0 : index
    %12 = vector.load %arg4[%c0_5, %c0_6] : memref<1x32xf32, #tpu.memory_space<vmem>>, vector<1x32xf32>
    %c0_7 = arith.constant 0 : index
    %c0_8 = arith.constant 0 : index
    %13 = vector.load %arg5[%c0_7, %c0_8] : memref<1x32xf32, #tpu.memory_space<vmem>>, vector<1x32xf32>
    %cst_9 = arith.constant dense<0.000000e+00> : vector<32xf32>
    %14 = vector.multi_reduction <add>, %11, %cst_9 [1] : vector<32x32xf32> to vector<32xf32>
    %15 = vector.shape_cast %14 : vector<32xf32> to vector<32x1xf32>
    %cst_10 = arith.constant 3.200000e+01 : f32
    %16 = vector.broadcast %cst_10 : f32 to vector<32x1xf32>
    %17 = arith.divf %15, %16 : vector<32x1xf32>
    %18 = vector.broadcast %17 : vector<32x1xf32> to vector<32x32xf32>
    %19 = arith.subf %11, %18 : vector<32x32xf32>
    %20 = arith.mulf %19, %19 : vector<32x32xf32>
    %cst_11 = arith.constant dense<0.000000e+00> : vector<32xf32>
    %21 = vector.multi_reduction <add>, %20, %cst_11 [1] : vector<32x32xf32> to vector<32xf32>
    %22 = vector.shape_cast %21 : vector<32xf32> to vector<32x1xf32>
    %cst_12 = arith.constant 3.200000e+01 : f32
    %23 = vector.broadcast %cst_12 : f32 to vector<32x1xf32>
    %24 = arith.divf %22, %23 : vector<32x1xf32>
    %cst_13 = arith.constant 9.99999974E-6 : f32
    %25 = vector.broadcast %cst_13 : f32 to vector<32x1xf32>
    %26 = arith.addf %24, %25 : vector<32x1xf32>
    %27 = math.rsqrt %26 : vector<32x1xf32>
    %28 = vector.broadcast %27 : vector<32x1xf32> to vector<32x32xf32>
    %29 = arith.mulf %19, %28 : vector<32x32xf32>
    %30 = vector.broadcast %12 : vector<1x32xf32> to vector<32x32xf32>
    %31 = arith.mulf %29, %30 : vector<32x32xf32>
    %32 = vector.broadcast %13 : vector<1x32xf32> to vector<32x32xf32>
    %33 = arith.addf %31, %32 : vector<32x32xf32>
    %c0_14 = arith.constant 0 : index
    %c0_15 = arith.constant 0 : index
    %c0_16 = arith.constant 0 : index
    %34 = vector.load %arg2[%c0_14, %c0_15, %c0_16] : memref<4x1x8xf32, #tpu.memory_space<vmem>>, vector<4x1x8xf32>
    %35 = vector.shape_cast %34 : vector<4x1x8xf32> to vector<4x1x8xf32>
    %36 = vector.broadcast %35 : vector<4x1x8xf32> to vector<4x8x8xf32>
    %c0_17 = arith.constant 0 : index
    %c0_18 = arith.constant 0 : index
    %c0_19 = arith.constant 0 : index
    %37 = vector.load %arg6[%c0_17, %c0_18, %c0_19] : memref<2x32x96xf32, #tpu.memory_space<vmem>>, vector<1x32x96xf32>
    %38 = vector.shape_cast %37 : vector<1x32x96xf32> to vector<32x96xf32>
    %cst_20 = arith.constant dense<0.000000e+00> : vector<32x96xf32>
    %39 = tpu.matmul %33, %38, %cst_20 {dimension_numbers = #tpu.dot_dimension_numbers<[1], [0], [0], [1], [0, 0, 1, 1], [], []>} : vector<32x32xf32>, vector<32x96xf32>, vector<32x96xf32> -> vector<32x96xf32>
    %c0_21 = arith.constant 0 : index
    %c0_22 = arith.constant 0 : index
    %c0_23 = arith.constant 0 : index
    %40 = vector.load %arg7[%c0_21, %c0_22, %c0_23] : memref<2x1x96xf32, #tpu.memory_space<vmem>>, vector<1x1x96xf32>
    %41 = vector.shape_cast %40 : vector<1x1x96xf32> to vector<1x96xf32>
    %42 = vector.broadcast %41 : vector<1x96xf32> to vector<32x96xf32>
    %43 = arith.addf %39, %42 : vector<32x96xf32>
    %44 = vector.extract_strided_slice %43 {offsets = [0, 0], sizes = [32, 32], strides = [1, 1]} : vector<32x96xf32> to vector<32x32xf32>
    %45 = vector.shape_cast %44 : vector<32x32xf32> to vector<4x8x32xf32>
    %46 = vector.extract_strided_slice %43 {offsets = [0, 32], sizes = [32, 32], strides = [1, 1]} : vector<32x96xf32> to vector<32x32xf32>
    %47 = vector.shape_cast %46 : vector<32x32xf32> to vector<4x8x32xf32>
    %48 = vector.extract_strided_slice %43 {offsets = [0, 64], sizes = [32, 32], strides = [1, 1]} : vector<32x96xf32> to vector<32x32xf32>
    %49 = vector.shape_cast %48 : vector<32x32xf32> to vector<4x8x32xf32>
    %50 = vector.extract_strided_slice %45 {offsets = [0, 0, 0], sizes = [4, 8, 8], strides = [1, 1, 1]} : vector<4x8x32xf32> to vector<4x8x8xf32>
    %51 = vector.extract_strided_slice %47 {offsets = [0, 0, 0], sizes = [4, 8, 8], strides = [1, 1, 1]} : vector<4x8x32xf32> to vector<4x8x8xf32>
    "tpu.trace_start"() <{level = 10 : i32, message = "btd,bsd->bts"}> : () -> ()
    %cst_24 = arith.constant dense<0.000000e+00> : vector<4x8x8xf32>
    %52 = tpu.matmul %50, %51, %cst_24 {dimension_numbers = #tpu.dot_dimension_numbers<[2], [2], [1], [1], [0, 0, 0, 1, 1, 1], [0], [0]>} : vector<4x8x8xf32>, vector<4x8x8xf32>, vector<4x8x8xf32> -> vector<4x8x8xf32>
    "tpu.trace_stop"() : () -> ()
    %cst_25 = arith.constant 0.353553385 : f32
    %53 = vector.broadcast %cst_25 : f32 to vector<4x8x8xf32>
    %54 = arith.mulf %52, %53 : vector<4x8x8xf32>
    %55 = arith.addf %54, %36 : vector<4x8x8xf32>
    %cst_26 = arith.constant dense<0xFF800000> : vector<4x8xf32>
    %56 = vector.multi_reduction <maximumf>, %55, %cst_26 [2] : vector<4x8x8xf32> to vector<4x8xf32>
    %57 = vector.shape_cast %56 : vector<4x8xf32> to vector<4x8x1xf32>
    %58 = vector.broadcast %57 : vector<4x8x1xf32> to vector<4x8x8xf32>
    %59 = arith.subf %55, %58 : vector<4x8x8xf32>
    %60 = math.exp %59 : vector<4x8x8xf32>
    %cst_27 = arith.constant dense<0.000000e+00> : vector<4x8xf32>
    %61 = vector.multi_reduction <add>, %60, %cst_27 [2] : vector<4x8x8xf32> to vector<4x8xf32>
    %62 = vector.shape_cast %61 : vector<4x8xf32> to vector<4x8x1xf32>
    %63 = tpu.reciprocal %62 {approx = true} : vector<4x8x1xf32> -> vector<4x8x1xf32>
    %64 = vector.broadcast %63 : vector<4x8x1xf32> to vector<4x8x8xf32>
    %65 = arith.mulf %60, %64 : vector<4x8x8xf32>
    %66 = vector.extract_strided_slice %49 {offsets = [0, 0, 0], sizes = [4, 8, 8], strides = [1, 1, 1]} : vector<4x8x32xf32> to vector<4x8x8xf32>
    "tpu.trace_start"() <{level = 10 : i32, message = "bts,bsd->btd"}> : () -> ()
    %cst_28 = arith.constant dense<0.000000e+00> : vector<4x8x8xf32>
    %67 = tpu.matmul %65, %66, %cst_28 {dimension_numbers = #tpu.dot_dimension_numbers<[2], [1], [1], [2], [0, 0, 0, 1, 1, 2], [0], [0]>} : vector<4x8x8xf32>, vector<4x8x8xf32>, vector<4x8x8xf32> -> vector<4x8x8xf32>
    "tpu.trace_stop"() : () -> ()
    %68 = vector.extract_strided_slice %45 {offsets = [0, 0, 8], sizes = [4, 8, 8], strides = [1, 1, 1]} : vector<4x8x32xf32> to vector<4x8x8xf32>
    %69 = vector.extract_strided_slice %47 {offsets = [0, 0, 8], sizes = [4, 8, 8], strides = [1, 1, 1]} : vector<4x8x32xf32> to vector<4x8x8xf32>
    "tpu.trace_start"() <{level = 10 : i32, message = "btd,bsd->bts"}> : () -> ()
    %cst_29 = arith.constant dense<0.000000e+00> : vector<4x8x8xf32>
    %70 = tpu.matmul %68, %69, %cst_29 {dimension_numbers = #tpu.dot_dimension_numbers<[2], [2], [1], [1], [0, 0, 0, 1, 1, 1], [0], [0]>} : vector<4x8x8xf32>, vector<4x8x8xf32>, vector<4x8x8xf32> -> vector<4x8x8xf32>
    "tpu.trace_stop"() : () -> ()
    %cst_30 = arith.constant 0.353553385 : f32
    %71 = vector.broadcast %cst_30 : f32 to vector<4x8x8xf32>
    %72 = arith.mulf %70, %71 : vector<4x8x8xf32>
    %73 = arith.addf %72, %36 : vector<4x8x8xf32>
    %cst_31 = arith.constant dense<0xFF800000> : vector<4x8xf32>
    %74 = vector.multi_reduction <maximumf>, %73, %cst_31 [2] : vector<4x8x8xf32> to vector<4x8xf32>
    %75 = vector.shape_cast %74 : vector<4x8xf32> to vector<4x8x1xf32>
    %76 = vector.broadcast %75 : vector<4x8x1xf32> to vector<4x8x8xf32>
    %77 = arith.subf %73, %76 : vector<4x8x8xf32>
    %78 = math.exp %77 : vector<4x8x8xf32>
    %cst_32 = arith.constant dense<0.000000e+00> : vector<4x8xf32>
    %79 = vector.multi_reduction <add>, %78, %cst_32 [2] : vector<4x8x8xf32> to vector<4x8xf32>
    %80 = vector.shape_cast %79 : vector<4x8xf32> to vector<4x8x1xf32>
    %81 = tpu.reciprocal %80 {approx = true} : vector<4x8x1xf32> -> vector<4x8x1xf32>
    %82 = vector.broadcast %81 : vector<4x8x1xf32> to vector<4x8x8xf32>
    %83 = arith.mulf %78, %82 : vector<4x8x8xf32>
    %84 = vector.extract_strided_slice %49 {offsets = [0, 0, 8], sizes = [4, 8, 8], strides = [1, 1, 1]} : vector<4x8x32xf32> to vector<4x8x8xf32>
    "tpu.trace_start"() <{level = 10 : i32, message = "bts,bsd->btd"}> : () -> ()
    %cst_33 = arith.constant dense<0.000000e+00> : vector<4x8x8xf32>
    %85 = tpu.matmul %83, %84, %cst_33 {dimension_numbers = #tpu.dot_dimension_numbers<[2], [1], [1], [2], [0, 0, 0, 1, 1, 2], [0], [0]>} : vector<4x8x8xf32>, vector<4x8x8xf32>, vector<4x8x8xf32> -> vector<4x8x8xf32>
    "tpu.trace_stop"() : () -> ()
    %86 = vector.extract_strided_slice %45 {offsets = [0, 0, 16], sizes = [4, 8, 8], strides = [1, 1, 1]} : vector<4x8x32xf32> to vector<4x8x8xf32>
    %87 = vector.extract_strided_slice %47 {offsets = [0, 0, 16], sizes = [4, 8, 8], strides = [1, 1, 1]} : vector<4x8x32xf32> to vector<4x8x8xf32>
    "tpu.trace_start"() <{level = 10 : i32, message = "btd,bsd->bts"}> : () -> ()
    %cst_34 = arith.constant dense<0.000000e+00> : vector<4x8x8xf32>
    %88 = tpu.matmul %86, %87, %cst_34 {dimension_numbers = #tpu.dot_dimension_numbers<[2], [2], [1], [1], [0, 0, 0, 1, 1, 1], [0], [0]>} : vector<4x8x8xf32>, vector<4x8x8xf32>, vector<4x8x8xf32> -> vector<4x8x8xf32>
    "tpu.trace_stop"() : () -> ()
    %cst_35 = arith.constant 0.353553385 : f32
    %89 = vector.broadcast %cst_35 : f32 to vector<4x8x8xf32>
    %90 = arith.mulf %88, %89 : vector<4x8x8xf32>
    %91 = arith.addf %90, %36 : vector<4x8x8xf32>
    %cst_36 = arith.constant dense<0xFF800000> : vector<4x8xf32>
    %92 = vector.multi_reduction <maximumf>, %91, %cst_36 [2] : vector<4x8x8xf32> to vector<4x8xf32>
    %93 = vector.shape_cast %92 : vector<4x8xf32> to vector<4x8x1xf32>
    %94 = vector.broadcast %93 : vector<4x8x1xf32> to vector<4x8x8xf32>
    %95 = arith.subf %91, %94 : vector<4x8x8xf32>
    %96 = math.exp %95 : vector<4x8x8xf32>
    %cst_37 = arith.constant dense<0.000000e+00> : vector<4x8xf32>
    %97 = vector.multi_reduction <add>, %96, %cst_37 [2] : vector<4x8x8xf32> to vector<4x8xf32>
    %98 = vector.shape_cast %97 : vector<4x8xf32> to vector<4x8x1xf32>
    %99 = tpu.reciprocal %98 {approx = true} : vector<4x8x1xf32> -> vector<4x8x1xf32>
    %100 = vector.broadcast %99 : vector<4x8x1xf32> to vector<4x8x8xf32>
    %101 = arith.mulf %96, %100 : vector<4x8x8xf32>
    %102 = vector.extract_strided_slice %49 {offsets = [0, 0, 16], sizes = [4, 8, 8], strides = [1, 1, 1]} : vector<4x8x32xf32> to vector<4x8x8xf32>
    "tpu.trace_start"() <{level = 10 : i32, message = "bts,bsd->btd"}> : () -> ()
    %cst_38 = arith.constant dense<0.000000e+00> : vector<4x8x8xf32>
    %103 = tpu.matmul %101, %102, %cst_38 {dimension_numbers = #tpu.dot_dimension_numbers<[2], [1], [1], [2], [0, 0, 0, 1, 1, 2], [0], [0]>} : vector<4x8x8xf32>, vector<4x8x8xf32>, vector<4x8x8xf32> -> vector<4x8x8xf32>
    "tpu.trace_stop"() : () -> ()
    %104 = vector.extract_strided_slice %45 {offsets = [0, 0, 24], sizes = [4, 8, 8], strides = [1, 1, 1]} : vector<4x8x32xf32> to vector<4x8x8xf32>
    %105 = vector.extract_strided_slice %47 {offsets = [0, 0, 24], sizes = [4, 8, 8], strides = [1, 1, 1]} : vector<4x8x32xf32> to vector<4x8x8xf32>
    "tpu.trace_start"() <{level = 10 : i32, message = "btd,bsd->bts"}> : () -> ()
    %cst_39 = arith.constant dense<0.000000e+00> : vector<4x8x8xf32>
    %106 = tpu.matmul %104, %105, %cst_39 {dimension_numbers = #tpu.dot_dimension_numbers<[2], [2], [1], [1], [0, 0, 0, 1, 1, 1], [0], [0]>} : vector<4x8x8xf32>, vector<4x8x8xf32>, vector<4x8x8xf32> -> vector<4x8x8xf32>
    "tpu.trace_stop"() : () -> ()
    %cst_40 = arith.constant 0.353553385 : f32
    %107 = vector.broadcast %cst_40 : f32 to vector<4x8x8xf32>
    %108 = arith.mulf %106, %107 : vector<4x8x8xf32>
    %109 = arith.addf %108, %36 : vector<4x8x8xf32>
    %cst_41 = arith.constant dense<0xFF800000> : vector<4x8xf32>
    %110 = vector.multi_reduction <maximumf>, %109, %cst_41 [2] : vector<4x8x8xf32> to vector<4x8xf32>
    %111 = vector.shape_cast %110 : vector<4x8xf32> to vector<4x8x1xf32>
    %112 = vector.broadcast %111 : vector<4x8x1xf32> to vector<4x8x8xf32>
    %113 = arith.subf %109, %112 : vector<4x8x8xf32>
    %114 = math.exp %113 : vector<4x8x8xf32>
    %cst_42 = arith.constant dense<0.000000e+00> : vector<4x8xf32>
    %115 = vector.multi_reduction <add>, %114, %cst_42 [2] : vector<4x8x8xf32> to vector<4x8xf32>
    %116 = vector.shape_cast %115 : vector<4x8xf32> to vector<4x8x1xf32>
    %117 = tpu.reciprocal %116 {approx = true} : vector<4x8x1xf32> -> vector<4x8x1xf32>
    %118 = vector.broadcast %117 : vector<4x8x1xf32> to vector<4x8x8xf32>
    %119 = arith.mulf %114, %118 : vector<4x8x8xf32>
    %120 = vector.extract_strided_slice %49 {offsets = [0, 0, 24], sizes = [4, 8, 8], strides = [1, 1, 1]} : vector<4x8x32xf32> to vector<4x8x8xf32>
    "tpu.trace_start"() <{level = 10 : i32, message = "bts,bsd->btd"}> : () -> ()
    %cst_43 = arith.constant dense<0.000000e+00> : vector<4x8x8xf32>
    %121 = tpu.matmul %119, %120, %cst_43 {dimension_numbers = #tpu.dot_dimension_numbers<[2], [1], [1], [2], [0, 0, 0, 1, 1, 2], [0], [0]>} : vector<4x8x8xf32>, vector<4x8x8xf32>, vector<4x8x8xf32> -> vector<4x8x8xf32>
    "tpu.trace_stop"() : () -> ()
    %122 = tpu.concatenate %67, %85, %103, %121 in 2 : vector<4x8x8xf32>, vector<4x8x8xf32>, vector<4x8x8xf32>, vector<4x8x8xf32> -> vector<4x8x32xf32>
    %123 = vector.shape_cast %122 : vector<4x8x32xf32> to vector<32x32xf32>
    %c0_44 = arith.constant 0 : index
    %c0_45 = arith.constant 0 : index
    %c0_46 = arith.constant 0 : index
    %124 = vector.load %arg8[%c0_44, %c0_45, %c0_46] : memref<2x32x32xf32, #tpu.memory_space<vmem>>, vector<1x32x32xf32>
    %125 = vector.shape_cast %124 : vector<1x32x32xf32> to vector<32x32xf32>
    %cst_47 = arith.constant dense<0.000000e+00> : vector<32x32xf32>
    %126 = tpu.matmul %123, %125, %cst_47 {dimension_numbers = #tpu.dot_dimension_numbers<[1], [0], [0], [1], [0, 0, 1, 1], [], []>} : vector<32x32xf32>, vector<32x32xf32>, vector<32x32xf32> -> vector<32x32xf32>
    %c0_48 = arith.constant 0 : index
    %c0_49 = arith.constant 0 : index
    %c0_50 = arith.constant 0 : index
    %127 = vector.load %arg9[%c0_48, %c0_49, %c0_50] : memref<2x1x32xf32, #tpu.memory_space<vmem>>, vector<1x1x32xf32>
    %128 = vector.shape_cast %127 : vector<1x1x32xf32> to vector<1x32xf32>
    %129 = vector.broadcast %128 : vector<1x32xf32> to vector<32x32xf32>
    %130 = arith.addf %126, %129 : vector<32x32xf32>
    %131 = arith.addf %33, %130 : vector<32x32xf32>
    %c0_51 = arith.constant 0 : index
    %c0_52 = arith.constant 0 : index
    %c0_53 = arith.constant 0 : index
    %132 = vector.load %arg10[%c0_51, %c0_52, %c0_53] : memref<2x1x32xf32, #tpu.memory_space<vmem>>, vector<1x1x32xf32>
    %133 = vector.shape_cast %132 : vector<1x1x32xf32> to vector<1x32xf32>
    %c0_54 = arith.constant 0 : index
    %c0_55 = arith.constant 0 : index
    %c0_56 = arith.constant 0 : index
    %134 = vector.load %arg11[%c0_54, %c0_55, %c0_56] : memref<2x1x32xf32, #tpu.memory_space<vmem>>, vector<1x1x32xf32>
    %135 = vector.shape_cast %134 : vector<1x1x32xf32> to vector<1x32xf32>
    %cst_57 = arith.constant dense<0.000000e+00> : vector<32xf32>
    %136 = vector.multi_reduction <add>, %131, %cst_57 [1] : vector<32x32xf32> to vector<32xf32>
    %137 = vector.shape_cast %136 : vector<32xf32> to vector<32x1xf32>
    %cst_58 = arith.constant 3.200000e+01 : f32
    %138 = vector.broadcast %cst_58 : f32 to vector<32x1xf32>
    %139 = arith.divf %137, %138 : vector<32x1xf32>
    %140 = vector.broadcast %139 : vector<32x1xf32> to vector<32x32xf32>
    %141 = arith.subf %131, %140 : vector<32x32xf32>
    %142 = arith.mulf %141, %141 : vector<32x32xf32>
    %cst_59 = arith.constant dense<0.000000e+00> : vector<32xf32>
    %143 = vector.multi_reduction <add>, %142, %cst_59 [1] : vector<32x32xf32> to vector<32xf32>
    %144 = vector.shape_cast %143 : vector<32xf32> to vector<32x1xf32>
    %cst_60 = arith.constant 3.200000e+01 : f32
    %145 = vector.broadcast %cst_60 : f32 to vector<32x1xf32>
    %146 = arith.divf %144, %145 : vector<32x1xf32>
    %cst_61 = arith.constant 9.99999974E-6 : f32
    %147 = vector.broadcast %cst_61 : f32 to vector<32x1xf32>
    %148 = arith.addf %146, %147 : vector<32x1xf32>
    %149 = math.rsqrt %148 : vector<32x1xf32>
    %150 = vector.broadcast %149 : vector<32x1xf32> to vector<32x32xf32>
    %151 = arith.mulf %141, %150 : vector<32x32xf32>
    %152 = vector.broadcast %133 : vector<1x32xf32> to vector<32x32xf32>
    %153 = arith.mulf %151, %152 : vector<32x32xf32>
    %154 = vector.broadcast %135 : vector<1x32xf32> to vector<32x32xf32>
    %155 = arith.addf %153, %154 : vector<32x32xf32>
    %c0_62 = arith.constant 0 : index
    %c0_63 = arith.constant 0 : index
    %c0_64 = arith.constant 0 : index
    %156 = vector.load %arg12[%c0_62, %c0_63, %c0_64] : memref<2x32x128xf32, #tpu.memory_space<vmem>>, vector<1x32x128xf32>
    %157 = vector.shape_cast %156 : vector<1x32x128xf32> to vector<32x128xf32>
    %cst_65 = arith.constant dense<0.000000e+00> : vector<32x128xf32>
    %158 = tpu.matmul %155, %157, %cst_65 {dimension_numbers = #tpu.dot_dimension_numbers<[1], [0], [0], [1], [0, 0, 1, 1], [], []>} : vector<32x32xf32>, vector<32x128xf32>, vector<32x128xf32> -> vector<32x128xf32>
    %c0_66 = arith.constant 0 : index
    %c0_67 = arith.constant 0 : index
    %c0_68 = arith.constant 0 : index
    %159 = vector.load %arg13[%c0_66, %c0_67, %c0_68] : memref<2x1x128xf32, #tpu.memory_space<vmem>>, vector<1x1x128xf32>
    %160 = vector.shape_cast %159 : vector<1x1x128xf32> to vector<1x128xf32>
    %161 = vector.broadcast %160 : vector<1x128xf32> to vector<32x128xf32>
    %162 = arith.addf %158, %161 : vector<32x128xf32>
    %cst_69 = arith.constant 0.000000e+00 : f32
    %163 = vector.broadcast %cst_69 : f32 to vector<32x128xf32>
    %164 = arith.maximumf %162, %163 : vector<32x128xf32>
    %c0_70 = arith.constant 0 : index
    %c0_71 = arith.constant 0 : index
    %c0_72 = arith.constant 0 : index
    %165 = vector.load %arg14[%c0_70, %c0_71, %c0_72] : memref<2x128x32xf32, #tpu.memory_space<vmem>>, vector<1x128x32xf32>
    %166 = vector.shape_cast %165 : vector<1x128x32xf32> to vector<128x32xf32>
    %cst_73 = arith.constant dense<0.000000e+00> : vector<32x32xf32>
    %167 = tpu.matmul %164, %166, %cst_73 {dimension_numbers = #tpu.dot_dimension_numbers<[1], [0], [0], [1], [0, 0, 1, 1], [], []>} : vector<32x128xf32>, vector<128x32xf32>, vector<32x32xf32> -> vector<32x32xf32>
    %c0_74 = arith.constant 0 : index
    %c0_75 = arith.constant 0 : index
    %c0_76 = arith.constant 0 : index
    %168 = vector.load %arg15[%c0_74, %c0_75, %c0_76] : memref<2x1x32xf32, #tpu.memory_space<vmem>>, vector<1x1x32xf32>
    %169 = vector.shape_cast %168 : vector<1x1x32xf32> to vector<1x32xf32>
    %170 = vector.broadcast %169 : vector<1x32xf32> to vector<32x32xf32>
    %171 = arith.addf %167, %170 : vector<32x32xf32>
    %172 = arith.addf %155, %171 : vector<32x32xf32>
    %c0_77 = arith.constant 0 : index
    %c0_78 = arith.constant 0 : index
    %c0_79 = arith.constant 0 : index
    %173 = vector.load %arg16[%c0_77, %c0_78, %c0_79] : memref<2x1x32xf32, #tpu.memory_space<vmem>>, vector<1x1x32xf32>
    %174 = vector.shape_cast %173 : vector<1x1x32xf32> to vector<1x32xf32>
    %c0_80 = arith.constant 0 : index
    %c0_81 = arith.constant 0 : index
    %c0_82 = arith.constant 0 : index
    %175 = vector.load %arg17[%c0_80, %c0_81, %c0_82] : memref<2x1x32xf32, #tpu.memory_space<vmem>>, vector<1x1x32xf32>
    %176 = vector.shape_cast %175 : vector<1x1x32xf32> to vector<1x32xf32>
    %cst_83 = arith.constant dense<0.000000e+00> : vector<32xf32>
    %177 = vector.multi_reduction <add>, %172, %cst_83 [1] : vector<32x32xf32> to vector<32xf32>
    %178 = vector.shape_cast %177 : vector<32xf32> to vector<32x1xf32>
    %cst_84 = arith.constant 3.200000e+01 : f32
    %179 = vector.broadcast %cst_84 : f32 to vector<32x1xf32>
    %180 = arith.divf %178, %179 : vector<32x1xf32>
    %181 = vector.broadcast %180 : vector<32x1xf32> to vector<32x32xf32>
    %182 = arith.subf %172, %181 : vector<32x32xf32>
    %183 = arith.mulf %182, %182 : vector<32x32xf32>
    %cst_85 = arith.constant dense<0.000000e+00> : vector<32xf32>
    %184 = vector.multi_reduction <add>, %183, %cst_85 [1] : vector<32x32xf32> to vector<32xf32>
    %185 = vector.shape_cast %184 : vector<32xf32> to vector<32x1xf32>
    %cst_86 = arith.constant 3.200000e+01 : f32
    %186 = vector.broadcast %cst_86 : f32 to vector<32x1xf32>
    %187 = arith.divf %185, %186 : vector<32x1xf32>
    %cst_87 = arith.constant 9.99999974E-6 : f32
    %188 = vector.broadcast %cst_87 : f32 to vector<32x1xf32>
    %189 = arith.addf %187, %188 : vector<32x1xf32>
    %190 = math.rsqrt %189 : vector<32x1xf32>
    %191 = vector.broadcast %190 : vector<32x1xf32> to vector<32x32xf32>
    %192 = arith.mulf %182, %191 : vector<32x32xf32>
    %193 = vector.broadcast %174 : vector<1x32xf32> to vector<32x32xf32>
    %194 = arith.mulf %192, %193 : vector<32x32xf32>
    %195 = vector.broadcast %176 : vector<1x32xf32> to vector<32x32xf32>
    %196 = arith.addf %194, %195 : vector<32x32xf32>
    %c1 = arith.constant 1 : index
    %c0_88 = arith.constant 0 : index
    %c0_89 = arith.constant 0 : index
    %197 = vector.load %arg6[%c1, %c0_88, %c0_89] : memref<2x32x96xf32, #tpu.memory_space<vmem>>, vector<1x32x96xf32>
    %198 = vector.shape_cast %197 : vector<1x32x96xf32> to vector<32x96xf32>
    %cst_90 = arith.constant dense<0.000000e+00> : vector<32x96xf32>
    %199 = tpu.matmul %196, %198, %cst_90 {dimension_numbers = #tpu.dot_dimension_numbers<[1], [0], [0], [1], [0, 0, 1, 1], [], []>} : vector<32x32xf32>, vector<32x96xf32>, vector<32x96xf32> -> vector<32x96xf32>
    %c1_91 = arith.constant 1 : index
    %c0_92 = arith.constant 0 : index
    %c0_93 = arith.constant 0 : index
    %200 = vector.load %arg7[%c1_91, %c0_92, %c0_93] : memref<2x1x96xf32, #tpu.memory_space<vmem>>, vector<1x1x96xf32>
    %201 = vector.shape_cast %200 : vector<1x1x96xf32> to vector<1x96xf32>
    %202 = vector.broadcast %201 : vector<1x96xf32> to vector<32x96xf32>
    %203 = arith.addf %199, %202 : vector<32x96xf32>
    %204 = vector.extract_strided_slice %203 {offsets = [0, 0], sizes = [32, 32], strides = [1, 1]} : vector<32x96xf32> to vector<32x32xf32>
    %205 = vector.shape_cast %204 : vector<32x32xf32> to vector<4x8x32xf32>
    %206 = vector.extract_strided_slice %203 {offsets = [0, 32], sizes = [32, 32], strides = [1, 1]} : vector<32x96xf32> to vector<32x32xf32>
    %207 = vector.shape_cast %206 : vector<32x32xf32> to vector<4x8x32xf32>
    %208 = vector.extract_strided_slice %203 {offsets = [0, 64], sizes = [32, 32], strides = [1, 1]} : vector<32x96xf32> to vector<32x32xf32>
    %209 = vector.shape_cast %208 : vector<32x32xf32> to vector<4x8x32xf32>
    %210 = vector.extract_strided_slice %205 {offsets = [0, 0, 0], sizes = [4, 8, 8], strides = [1, 1, 1]} : vector<4x8x32xf32> to vector<4x8x8xf32>
    %211 = vector.extract_strided_slice %207 {offsets = [0, 0, 0], sizes = [4, 8, 8], strides = [1, 1, 1]} : vector<4x8x32xf32> to vector<4x8x8xf32>
    "tpu.trace_start"() <{level = 10 : i32, message = "btd,bsd->bts"}> : () -> ()
    %cst_94 = arith.constant dense<0.000000e+00> : vector<4x8x8xf32>
    %212 = tpu.matmul %210, %211, %cst_94 {dimension_numbers = #tpu.dot_dimension_numbers<[2], [2], [1], [1], [0, 0, 0, 1, 1, 1], [0], [0]>} : vector<4x8x8xf32>, vector<4x8x8xf32>, vector<4x8x8xf32> -> vector<4x8x8xf32>
    "tpu.trace_stop"() : () -> ()
    %cst_95 = arith.constant 0.353553385 : f32
    %213 = vector.broadcast %cst_95 : f32 to vector<4x8x8xf32>
    %214 = arith.mulf %212, %213 : vector<4x8x8xf32>
    %215 = arith.addf %214, %36 : vector<4x8x8xf32>
    %cst_96 = arith.constant dense<0xFF800000> : vector<4x8xf32>
    %216 = vector.multi_reduction <maximumf>, %215, %cst_96 [2] : vector<4x8x8xf32> to vector<4x8xf32>
    %217 = vector.shape_cast %216 : vector<4x8xf32> to vector<4x8x1xf32>
    %218 = vector.broadcast %217 : vector<4x8x1xf32> to vector<4x8x8xf32>
    %219 = arith.subf %215, %218 : vector<4x8x8xf32>
    %220 = math.exp %219 : vector<4x8x8xf32>
    %cst_97 = arith.constant dense<0.000000e+00> : vector<4x8xf32>
    %221 = vector.multi_reduction <add>, %220, %cst_97 [2] : vector<4x8x8xf32> to vector<4x8xf32>
    %222 = vector.shape_cast %221 : vector<4x8xf32> to vector<4x8x1xf32>
    %223 = tpu.reciprocal %222 {approx = true} : vector<4x8x1xf32> -> vector<4x8x1xf32>
    %224 = vector.broadcast %223 : vector<4x8x1xf32> to vector<4x8x8xf32>
    %225 = arith.mulf %220, %224 : vector<4x8x8xf32>
    %226 = vector.extract_strided_slice %209 {offsets = [0, 0, 0], sizes = [4, 8, 8], strides = [1, 1, 1]} : vector<4x8x32xf32> to vector<4x8x8xf32>
    "tpu.trace_start"() <{level = 10 : i32, message = "bts,bsd->btd"}> : () -> ()
    %cst_98 = arith.constant dense<0.000000e+00> : vector<4x8x8xf32>
    %227 = tpu.matmul %225, %226, %cst_98 {dimension_numbers = #tpu.dot_dimension_numbers<[2], [1], [1], [2], [0, 0, 0, 1, 1, 2], [0], [0]>} : vector<4x8x8xf32>, vector<4x8x8xf32>, vector<4x8x8xf32> -> vector<4x8x8xf32>
    "tpu.trace_stop"() : () -> ()
    %228 = vector.extract_strided_slice %205 {offsets = [0, 0, 8], sizes = [4, 8, 8], strides = [1, 1, 1]} : vector<4x8x32xf32> to vector<4x8x8xf32>
    %229 = vector.extract_strided_slice %207 {offsets = [0, 0, 8], sizes = [4, 8, 8], strides = [1, 1, 1]} : vector<4x8x32xf32> to vector<4x8x8xf32>
    "tpu.trace_start"() <{level = 10 : i32, message = "btd,bsd->bts"}> : () -> ()
    %cst_99 = arith.constant dense<0.000000e+00> : vector<4x8x8xf32>
    %230 = tpu.matmul %228, %229, %cst_99 {dimension_numbers = #tpu.dot_dimension_numbers<[2], [2], [1], [1], [0, 0, 0, 1, 1, 1], [0], [0]>} : vector<4x8x8xf32>, vector<4x8x8xf32>, vector<4x8x8xf32> -> vector<4x8x8xf32>
    "tpu.trace_stop"() : () -> ()
    %cst_100 = arith.constant 0.353553385 : f32
    %231 = vector.broadcast %cst_100 : f32 to vector<4x8x8xf32>
    %232 = arith.mulf %230, %231 : vector<4x8x8xf32>
    %233 = arith.addf %232, %36 : vector<4x8x8xf32>
    %cst_101 = arith.constant dense<0xFF800000> : vector<4x8xf32>
    %234 = vector.multi_reduction <maximumf>, %233, %cst_101 [2] : vector<4x8x8xf32> to vector<4x8xf32>
    %235 = vector.shape_cast %234 : vector<4x8xf32> to vector<4x8x1xf32>
    %236 = vector.broadcast %235 : vector<4x8x1xf32> to vector<4x8x8xf32>
    %237 = arith.subf %233, %236 : vector<4x8x8xf32>
    %238 = math.exp %237 : vector<4x8x8xf32>
    %cst_102 = arith.constant dense<0.000000e+00> : vector<4x8xf32>
    %239 = vector.multi_reduction <add>, %238, %cst_102 [2] : vector<4x8x8xf32> to vector<4x8xf32>
    %240 = vector.shape_cast %239 : vector<4x8xf32> to vector<4x8x1xf32>
    %241 = tpu.reciprocal %240 {approx = true} : vector<4x8x1xf32> -> vector<4x8x1xf32>
    %242 = vector.broadcast %241 : vector<4x8x1xf32> to vector<4x8x8xf32>
    %243 = arith.mulf %238, %242 : vector<4x8x8xf32>
    %244 = vector.extract_strided_slice %209 {offsets = [0, 0, 8], sizes = [4, 8, 8], strides = [1, 1, 1]} : vector<4x8x32xf32> to vector<4x8x8xf32>
    "tpu.trace_start"() <{level = 10 : i32, message = "bts,bsd->btd"}> : () -> ()
    %cst_103 = arith.constant dense<0.000000e+00> : vector<4x8x8xf32>
    %245 = tpu.matmul %243, %244, %cst_103 {dimension_numbers = #tpu.dot_dimension_numbers<[2], [1], [1], [2], [0, 0, 0, 1, 1, 2], [0], [0]>} : vector<4x8x8xf32>, vector<4x8x8xf32>, vector<4x8x8xf32> -> vector<4x8x8xf32>
    "tpu.trace_stop"() : () -> ()
    %246 = vector.extract_strided_slice %205 {offsets = [0, 0, 16], sizes = [4, 8, 8], strides = [1, 1, 1]} : vector<4x8x32xf32> to vector<4x8x8xf32>
    %247 = vector.extract_strided_slice %207 {offsets = [0, 0, 16], sizes = [4, 8, 8], strides = [1, 1, 1]} : vector<4x8x32xf32> to vector<4x8x8xf32>
    "tpu.trace_start"() <{level = 10 : i32, message = "btd,bsd->bts"}> : () -> ()
    %cst_104 = arith.constant dense<0.000000e+00> : vector<4x8x8xf32>
    %248 = tpu.matmul %246, %247, %cst_104 {dimension_numbers = #tpu.dot_dimension_numbers<[2], [2], [1], [1], [0, 0, 0, 1, 1, 1], [0], [0]>} : vector<4x8x8xf32>, vector<4x8x8xf32>, vector<4x8x8xf32> -> vector<4x8x8xf32>
    "tpu.trace_stop"() : () -> ()
    %cst_105 = arith.constant 0.353553385 : f32
    %249 = vector.broadcast %cst_105 : f32 to vector<4x8x8xf32>
    %250 = arith.mulf %248, %249 : vector<4x8x8xf32>
    %251 = arith.addf %250, %36 : vector<4x8x8xf32>
    %cst_106 = arith.constant dense<0xFF800000> : vector<4x8xf32>
    %252 = vector.multi_reduction <maximumf>, %251, %cst_106 [2] : vector<4x8x8xf32> to vector<4x8xf32>
    %253 = vector.shape_cast %252 : vector<4x8xf32> to vector<4x8x1xf32>
    %254 = vector.broadcast %253 : vector<4x8x1xf32> to vector<4x8x8xf32>
    %255 = arith.subf %251, %254 : vector<4x8x8xf32>
    %256 = math.exp %255 : vector<4x8x8xf32>
    %cst_107 = arith.constant dense<0.000000e+00> : vector<4x8xf32>
    %257 = vector.multi_reduction <add>, %256, %cst_107 [2] : vector<4x8x8xf32> to vector<4x8xf32>
    %258 = vector.shape_cast %257 : vector<4x8xf32> to vector<4x8x1xf32>
    %259 = tpu.reciprocal %258 {approx = true} : vector<4x8x1xf32> -> vector<4x8x1xf32>
    %260 = vector.broadcast %259 : vector<4x8x1xf32> to vector<4x8x8xf32>
    %261 = arith.mulf %256, %260 : vector<4x8x8xf32>
    %262 = vector.extract_strided_slice %209 {offsets = [0, 0, 16], sizes = [4, 8, 8], strides = [1, 1, 1]} : vector<4x8x32xf32> to vector<4x8x8xf32>
    "tpu.trace_start"() <{level = 10 : i32, message = "bts,bsd->btd"}> : () -> ()
    %cst_108 = arith.constant dense<0.000000e+00> : vector<4x8x8xf32>
    %263 = tpu.matmul %261, %262, %cst_108 {dimension_numbers = #tpu.dot_dimension_numbers<[2], [1], [1], [2], [0, 0, 0, 1, 1, 2], [0], [0]>} : vector<4x8x8xf32>, vector<4x8x8xf32>, vector<4x8x8xf32> -> vector<4x8x8xf32>
    "tpu.trace_stop"() : () -> ()
    %264 = vector.extract_strided_slice %205 {offsets = [0, 0, 24], sizes = [4, 8, 8], strides = [1, 1, 1]} : vector<4x8x32xf32> to vector<4x8x8xf32>
    %265 = vector.extract_strided_slice %207 {offsets = [0, 0, 24], sizes = [4, 8, 8], strides = [1, 1, 1]} : vector<4x8x32xf32> to vector<4x8x8xf32>
    "tpu.trace_start"() <{level = 10 : i32, message = "btd,bsd->bts"}> : () -> ()
    %cst_109 = arith.constant dense<0.000000e+00> : vector<4x8x8xf32>
    %266 = tpu.matmul %264, %265, %cst_109 {dimension_numbers = #tpu.dot_dimension_numbers<[2], [2], [1], [1], [0, 0, 0, 1, 1, 1], [0], [0]>} : vector<4x8x8xf32>, vector<4x8x8xf32>, vector<4x8x8xf32> -> vector<4x8x8xf32>
    "tpu.trace_stop"() : () -> ()
    %cst_110 = arith.constant 0.353553385 : f32
    %267 = vector.broadcast %cst_110 : f32 to vector<4x8x8xf32>
    %268 = arith.mulf %266, %267 : vector<4x8x8xf32>
    %269 = arith.addf %268, %36 : vector<4x8x8xf32>
    %cst_111 = arith.constant dense<0xFF800000> : vector<4x8xf32>
    %270 = vector.multi_reduction <maximumf>, %269, %cst_111 [2] : vector<4x8x8xf32> to vector<4x8xf32>
    %271 = vector.shape_cast %270 : vector<4x8xf32> to vector<4x8x1xf32>
    %272 = vector.broadcast %271 : vector<4x8x1xf32> to vector<4x8x8xf32>
    %273 = arith.subf %269, %272 : vector<4x8x8xf32>
    %274 = math.exp %273 : vector<4x8x8xf32>
    %cst_112 = arith.constant dense<0.000000e+00> : vector<4x8xf32>
    %275 = vector.multi_reduction <add>, %274, %cst_112 [2] : vector<4x8x8xf32> to vector<4x8xf32>
    %276 = vector.shape_cast %275 : vector<4x8xf32> to vector<4x8x1xf32>
    %277 = tpu.reciprocal %276 {approx = true} : vector<4x8x1xf32> -> vector<4x8x1xf32>
    %278 = vector.broadcast %277 : vector<4x8x1xf32> to vector<4x8x8xf32>
    %279 = arith.mulf %274, %278 : vector<4x8x8xf32>
    %280 = vector.extract_strided_slice %209 {offsets = [0, 0, 24], sizes = [4, 8, 8], strides = [1, 1, 1]} : vector<4x8x32xf32> to vector<4x8x8xf32>
    "tpu.trace_start"() <{level = 10 : i32, message = "bts,bsd->btd"}> : () -> ()
    %cst_113 = arith.constant dense<0.000000e+00> : vector<4x8x8xf32>
    %281 = tpu.matmul %279, %280, %cst_113 {dimension_numbers = #tpu.dot_dimension_numbers<[2], [1], [1], [2], [0, 0, 0, 1, 1, 2], [0], [0]>} : vector<4x8x8xf32>, vector<4x8x8xf32>, vector<4x8x8xf32> -> vector<4x8x8xf32>
    "tpu.trace_stop"() : () -> ()
    %282 = tpu.concatenate %227, %245, %263, %281 in 2 : vector<4x8x8xf32>, vector<4x8x8xf32>, vector<4x8x8xf32>, vector<4x8x8xf32> -> vector<4x8x32xf32>
    %283 = vector.shape_cast %282 : vector<4x8x32xf32> to vector<32x32xf32>
    %c1_114 = arith.constant 1 : index
    %c0_115 = arith.constant 0 : index
    %c0_116 = arith.constant 0 : index
    %284 = vector.load %arg8[%c1_114, %c0_115, %c0_116] : memref<2x32x32xf32, #tpu.memory_space<vmem>>, vector<1x32x32xf32>
    %285 = vector.shape_cast %284 : vector<1x32x32xf32> to vector<32x32xf32>
    %cst_117 = arith.constant dense<0.000000e+00> : vector<32x32xf32>
    %286 = tpu.matmul %283, %285, %cst_117 {dimension_numbers = #tpu.dot_dimension_numbers<[1], [0], [0], [1], [0, 0, 1, 1], [], []>} : vector<32x32xf32>, vector<32x32xf32>, vector<32x32xf32> -> vector<32x32xf32>
    %c1_118 = arith.constant 1 : index
    %c0_119 = arith.constant 0 : index
    %c0_120 = arith.constant 0 : index
    %287 = vector.load %arg9[%c1_118, %c0_119, %c0_120] : memref<2x1x32xf32, #tpu.memory_space<vmem>>, vector<1x1x32xf32>
    %288 = vector.shape_cast %287 : vector<1x1x32xf32> to vector<1x32xf32>
    %289 = vector.broadcast %288 : vector<1x32xf32> to vector<32x32xf32>
    %290 = arith.addf %286, %289 : vector<32x32xf32>
    %291 = arith.addf %196, %290 : vector<32x32xf32>
    %292 = vector.shape_cast %291 : vector<32x32xf32> to vector<4x8x32xf32>
    %293 = vector.extract_strided_slice %292 {offsets = [0, 0, 0], sizes = [4, 1, 32], strides = [1, 1, 1]} : vector<4x8x32xf32> to vector<4x1x32xf32>
    %294 = vector.shape_cast %293 : vector<4x1x32xf32> to vector<4x32xf32>
    %c1_121 = arith.constant 1 : index
    %c0_122 = arith.constant 0 : index
    %c0_123 = arith.constant 0 : index
    %295 = vector.load %arg10[%c1_121, %c0_122, %c0_123] : memref<2x1x32xf32, #tpu.memory_space<vmem>>, vector<1x1x32xf32>
    %296 = vector.shape_cast %295 : vector<1x1x32xf32> to vector<1x32xf32>
    %c1_124 = arith.constant 1 : index
    %c0_125 = arith.constant 0 : index
    %c0_126 = arith.constant 0 : index
    %297 = vector.load %arg11[%c1_124, %c0_125, %c0_126] : memref<2x1x32xf32, #tpu.memory_space<vmem>>, vector<1x1x32xf32>
    %298 = vector.shape_cast %297 : vector<1x1x32xf32> to vector<1x32xf32>
    %cst_127 = arith.constant dense<0.000000e+00> : vector<4xf32>
    %299 = vector.multi_reduction <add>, %294, %cst_127 [1] : vector<4x32xf32> to vector<4xf32>
    %300 = vector.shape_cast %299 : vector<4xf32> to vector<4x1xf32>
    %cst_128 = arith.constant 3.200000e+01 : f32
    %301 = vector.broadcast %cst_128 : f32 to vector<4x1xf32>
    %302 = arith.divf %300, %301 : vector<4x1xf32>
    %303 = vector.broadcast %302 : vector<4x1xf32> to vector<4x32xf32>
    %304 = arith.subf %294, %303 : vector<4x32xf32>
    %305 = arith.mulf %304, %304 : vector<4x32xf32>
    %cst_129 = arith.constant dense<0.000000e+00> : vector<4xf32>
    %306 = vector.multi_reduction <add>, %305, %cst_129 [1] : vector<4x32xf32> to vector<4xf32>
    %307 = vector.shape_cast %306 : vector<4xf32> to vector<4x1xf32>
    %cst_130 = arith.constant 3.200000e+01 : f32
    %308 = vector.broadcast %cst_130 : f32 to vector<4x1xf32>
    %309 = arith.divf %307, %308 : vector<4x1xf32>
    %cst_131 = arith.constant 9.99999974E-6 : f32
    %310 = vector.broadcast %cst_131 : f32 to vector<4x1xf32>
    %311 = arith.addf %309, %310 : vector<4x1xf32>
    %312 = math.rsqrt %311 : vector<4x1xf32>
    %313 = vector.broadcast %312 : vector<4x1xf32> to vector<4x32xf32>
    %314 = arith.mulf %304, %313 : vector<4x32xf32>
    %315 = vector.broadcast %296 : vector<1x32xf32> to vector<4x32xf32>
    %316 = arith.mulf %314, %315 : vector<4x32xf32>
    %317 = vector.broadcast %298 : vector<1x32xf32> to vector<4x32xf32>
    %318 = arith.addf %316, %317 : vector<4x32xf32>
    %c1_132 = arith.constant 1 : index
    %c0_133 = arith.constant 0 : index
    %c0_134 = arith.constant 0 : index
    %319 = vector.load %arg12[%c1_132, %c0_133, %c0_134] : memref<2x32x128xf32, #tpu.memory_space<vmem>>, vector<1x32x128xf32>
    %320 = vector.shape_cast %319 : vector<1x32x128xf32> to vector<32x128xf32>
    %cst_135 = arith.constant dense<0.000000e+00> : vector<4x128xf32>
    %321 = tpu.matmul %318, %320, %cst_135 {dimension_numbers = #tpu.dot_dimension_numbers<[1], [0], [0], [1], [0, 0, 1, 1], [], []>} : vector<4x32xf32>, vector<32x128xf32>, vector<4x128xf32> -> vector<4x128xf32>
    %c1_136 = arith.constant 1 : index
    %c0_137 = arith.constant 0 : index
    %c0_138 = arith.constant 0 : index
    %322 = vector.load %arg13[%c1_136, %c0_137, %c0_138] : memref<2x1x128xf32, #tpu.memory_space<vmem>>, vector<1x1x128xf32>
    %323 = vector.shape_cast %322 : vector<1x1x128xf32> to vector<1x128xf32>
    %324 = vector.broadcast %323 : vector<1x128xf32> to vector<4x128xf32>
    %325 = arith.addf %321, %324 : vector<4x128xf32>
    %cst_139 = arith.constant 0.000000e+00 : f32
    %326 = vector.broadcast %cst_139 : f32 to vector<4x128xf32>
    %327 = arith.maximumf %325, %326 : vector<4x128xf32>
    %c1_140 = arith.constant 1 : index
    %c0_141 = arith.constant 0 : index
    %c0_142 = arith.constant 0 : index
    %328 = vector.load %arg14[%c1_140, %c0_141, %c0_142] : memref<2x128x32xf32, #tpu.memory_space<vmem>>, vector<1x128x32xf32>
    %329 = vector.shape_cast %328 : vector<1x128x32xf32> to vector<128x32xf32>
    %cst_143 = arith.constant dense<0.000000e+00> : vector<4x32xf32>
    %330 = tpu.matmul %327, %329, %cst_143 {dimension_numbers = #tpu.dot_dimension_numbers<[1], [0], [0], [1], [0, 0, 1, 1], [], []>} : vector<4x128xf32>, vector<128x32xf32>, vector<4x32xf32> -> vector<4x32xf32>
    %c1_144 = arith.constant 1 : index
    %c0_145 = arith.constant 0 : index
    %c0_146 = arith.constant 0 : index
    %331 = vector.load %arg15[%c1_144, %c0_145, %c0_146] : memref<2x1x32xf32, #tpu.memory_space<vmem>>, vector<1x1x32xf32>
    %332 = vector.shape_cast %331 : vector<1x1x32xf32> to vector<1x32xf32>
    %333 = vector.broadcast %332 : vector<1x32xf32> to vector<4x32xf32>
    %334 = arith.addf %330, %333 : vector<4x32xf32>
    %335 = arith.addf %318, %334 : vector<4x32xf32>
    %c1_147 = arith.constant 1 : index
    %c0_148 = arith.constant 0 : index
    %c0_149 = arith.constant 0 : index
    %336 = vector.load %arg16[%c1_147, %c0_148, %c0_149] : memref<2x1x32xf32, #tpu.memory_space<vmem>>, vector<1x1x32xf32>
    %337 = vector.shape_cast %336 : vector<1x1x32xf32> to vector<1x32xf32>
    %c1_150 = arith.constant 1 : index
    %c0_151 = arith.constant 0 : index
    %c0_152 = arith.constant 0 : index
    %338 = vector.load %arg17[%c1_150, %c0_151, %c0_152] : memref<2x1x32xf32, #tpu.memory_space<vmem>>, vector<1x1x32xf32>
    %339 = vector.shape_cast %338 : vector<1x1x32xf32> to vector<1x32xf32>
    %cst_153 = arith.constant dense<0.000000e+00> : vector<4xf32>
    %340 = vector.multi_reduction <add>, %335, %cst_153 [1] : vector<4x32xf32> to vector<4xf32>
    %341 = vector.shape_cast %340 : vector<4xf32> to vector<4x1xf32>
    %cst_154 = arith.constant 3.200000e+01 : f32
    %342 = vector.broadcast %cst_154 : f32 to vector<4x1xf32>
    %343 = arith.divf %341, %342 : vector<4x1xf32>
    %344 = vector.broadcast %343 : vector<4x1xf32> to vector<4x32xf32>
    %345 = arith.subf %335, %344 : vector<4x32xf32>
    %346 = arith.mulf %345, %345 : vector<4x32xf32>
    %cst_155 = arith.constant dense<0.000000e+00> : vector<4xf32>
    %347 = vector.multi_reduction <add>, %346, %cst_155 [1] : vector<4x32xf32> to vector<4xf32>
    %348 = vector.shape_cast %347 : vector<4xf32> to vector<4x1xf32>
    %cst_156 = arith.constant 3.200000e+01 : f32
    %349 = vector.broadcast %cst_156 : f32 to vector<4x1xf32>
    %350 = arith.divf %348, %349 : vector<4x1xf32>
    %cst_157 = arith.constant 9.99999974E-6 : f32
    %351 = vector.broadcast %cst_157 : f32 to vector<4x1xf32>
    %352 = arith.addf %350, %351 : vector<4x1xf32>
    %353 = math.rsqrt %352 : vector<4x1xf32>
    %354 = vector.broadcast %353 : vector<4x1xf32> to vector<4x32xf32>
    %355 = arith.mulf %345, %354 : vector<4x32xf32>
    %356 = vector.broadcast %337 : vector<1x32xf32> to vector<4x32xf32>
    %357 = arith.mulf %355, %356 : vector<4x32xf32>
    %358 = vector.broadcast %339 : vector<1x32xf32> to vector<4x32xf32>
    %359 = arith.addf %357, %358 : vector<4x32xf32>
    %c0_158 = arith.constant 0 : index
    %c0_159 = arith.constant 0 : index
    %360 = vector.load %arg18[%c0_158, %c0_159] : memref<1x32xf32, #tpu.memory_space<vmem>>, vector<1x32xf32>
    %c0_160 = arith.constant 0 : index
    %c0_161 = arith.constant 0 : index
    %361 = vector.load %arg19[%c0_160, %c0_161] : memref<1x32xf32, #tpu.memory_space<vmem>>, vector<1x32xf32>
    %cst_162 = arith.constant dense<0.000000e+00> : vector<4xf32>
    %362 = vector.multi_reduction <add>, %359, %cst_162 [1] : vector<4x32xf32> to vector<4xf32>
    %363 = vector.shape_cast %362 : vector<4xf32> to vector<4x1xf32>
    %cst_163 = arith.constant 3.200000e+01 : f32
    %364 = vector.broadcast %cst_163 : f32 to vector<4x1xf32>
    %365 = arith.divf %363, %364 : vector<4x1xf32>
    %366 = vector.broadcast %365 : vector<4x1xf32> to vector<4x32xf32>
    %367 = arith.subf %359, %366 : vector<4x32xf32>
    %368 = arith.mulf %367, %367 : vector<4x32xf32>
    %cst_164 = arith.constant dense<0.000000e+00> : vector<4xf32>
    %369 = vector.multi_reduction <add>, %368, %cst_164 [1] : vector<4x32xf32> to vector<4xf32>
    %370 = vector.shape_cast %369 : vector<4xf32> to vector<4x1xf32>
    %cst_165 = arith.constant 3.200000e+01 : f32
    %371 = vector.broadcast %cst_165 : f32 to vector<4x1xf32>
    %372 = arith.divf %370, %371 : vector<4x1xf32>
    %cst_166 = arith.constant 9.99999974E-6 : f32
    %373 = vector.broadcast %cst_166 : f32 to vector<4x1xf32>
    %374 = arith.addf %372, %373 : vector<4x1xf32>
    %375 = math.rsqrt %374 : vector<4x1xf32>
    %376 = vector.broadcast %375 : vector<4x1xf32> to vector<4x32xf32>
    %377 = arith.mulf %367, %376 : vector<4x32xf32>
    %378 = vector.broadcast %360 : vector<1x32xf32> to vector<4x32xf32>
    %379 = arith.mulf %377, %378 : vector<4x32xf32>
    %380 = vector.broadcast %361 : vector<1x32xf32> to vector<4x32xf32>
    %381 = arith.addf %379, %380 : vector<4x32xf32>
    %c0_167 = arith.constant 0 : index
    %c0_168 = arith.constant 0 : index
    %382 = vector.load %arg20[%c0_167, %c0_168] : memref<4x32xf32, #tpu.memory_space<vmem>>, vector<4x32xf32>
    tpu.vector_store %arg20[%c0_167, %c0_168], %381 {strides = array<i32>} : memref<4x32xf32, #tpu.memory_space<vmem>>, vector<4x32xf32>,
    return
  }
}

</mosaic_0001>

<llo_original>
// kernel: transformer_encoder_forward.1
$region0: #{transformer_encoder_forward.1}
  #allocation0 [shape = 'u32[]', space=smem, size = 0x4, offset = 0x4, fixed_abs, tag = 'smem constant byte address 0x4 - core index']
  #allocation1 [shape = 'u32[72,128]{1,0:T(1,128)}', space=vmem, size = 0x9000, scoped, tag = 'internal scratch']
  %s0 = inlined_call_operand.vmem [shape: s32[32,1], index: 0, kind: input, shape index: {}]
  %s1 = inlined_call_operand.vmem [shape: s32[32,1], index: 1, kind: input, shape index: {}]
  %s2 = inlined_call_operand.vmem [shape: f32[4,1,8], index: 2, kind: input, shape index: {}]
  %s3 = inlined_call_operand.vmem [shape: f32[144,32], index: 3, kind: input, shape index: {}]
  %s4 = inlined_call_operand.vmem [shape: f32[1,32], index: 4, kind: input, shape index: {}]
  %s5 = inlined_call_operand.vmem [shape: f32[1,32], index: 5, kind: input, shape index: {}]
  %s6 = inlined_call_operand.vmem [shape: f32[2,32,96], index: 6, kind: input, shape index: {}]
  %s7 = inlined_call_operand.vmem [shape: f32[2,1,96], index: 7, kind: input, shape index: {}]
  %s8 = inlined_call_operand.vmem [shape: f32[2,32,32], index: 8, kind: input, shape index: {}]
  %s9 = inlined_call_operand.vmem [shape: f32[2,1,32], index: 9, kind: input, shape index: {}]
  %s10 = inlined_call_operand.vmem [shape: f32[2,1,32], index: 10, kind: input, shape index: {}]
  %s11 = inlined_call_operand.vmem [shape: f32[2,1,32], index: 11, kind: input, shape index: {}]
  %s12 = inlined_call_operand.vmem [shape: f32[2,32,128], index: 12, kind: input, shape index: {}]
  %s13 = inlined_call_operand.vmem [shape: f32[2,1,128], index: 13, kind: input, shape index: {}]
  %s14 = inlined_call_operand.vmem [shape: f32[2,128,32], index: 14, kind: input, shape index: {}]
  %s15 = inlined_call_operand.vmem [shape: f32[2,1,32], index: 15, kind: input, shape index: {}]
  %s16 = inlined_call_operand.vmem [shape: f32[2,1,32], index: 16, kind: input, shape index: {}]
  %s17 = inlined_call_operand.vmem [shape: f32[2,1,32], index: 17, kind: input, shape index: {}]
  %s18 = inlined_call_operand.vmem [shape: f32[1,32], index: 18, kind: input, shape index: {}]
  %s19 = inlined_call_operand.vmem [shape: f32[1,32], index: 19, kind: input, shape index: {}]
  %s20 = inlined_call_operand.hbm [shape: f32[4,32], index: 20, kind: output, shape index: {}]
  %s21 = sld [smem:[#allocation0]]
  $region90: #{transformer_encoder_forward.1} parent=0
    _
  %s23 = ssub.s32 1, %s21
  %s24 = scalar_select 0, %s23, %s21
  $region1: #{transformer_encoder_forward.1} parent=0
    #allocation2 [shape = 'u8[2048]{0}', space=vmem, size = 0x800, scoped, tag = 'output window, operand 0, single buffered']
    #allocation3 [shape = 's32[1]{0}', space=sflag, size = 0x4, scoped, tag = 'scoped memory for transformer_encoder_forward.1']
    %25 = vsyncpa [#allocation3], 0
    // Predicated region
    $region2: #{transformer_encoder_forward.1} parent=1 // pred_check
      _
    $region3: #{transformer_encoder_forward.1} parent=1 // pred_check_branch
      %27 = sbr.rel (0) target = $region5
    $region4: #{transformer_encoder_forward.1} parent=1 // pred_region
      _
    $region5: #{transformer_encoder_forward.1} parent=1 // pred_fallthru
      _
    // Predicated region
    $region6: #{transformer_encoder_forward.1} parent=1 // pred_check
      _
    $region7: #{transformer_encoder_forward.1} parent=1 // pred_check_branch
      %29 = sbr.rel (0) target = $region9
    $region8: #{transformer_encoder_forward.1} parent=1 // pred_region
      _
    $region9: #{transformer_encoder_forward.1} parent=1 // pred_fallthru
      _
    // Predicated region
    $region10: #{transformer_encoder_forward.1} parent=1 // pred_check
      _
    $region11: #{transformer_encoder_forward.1} parent=1 // pred_check_branch
      %31 = sbr.rel (0) target = $region13
    $region12: #{transformer_encoder_forward.1} parent=1 // pred_region
      _
    $region13: #{transformer_encoder_forward.1} parent=1 // pred_fallthru
      _
    // Predicated region
    $region14: #{transformer_encoder_forward.1} parent=1 // pred_check
      _
    $region15: #{transformer_encoder_forward.1} parent=1 // pred_check_branch
      %33 = sbr.rel (0) target = $region17
    $region16: #{transformer_encoder_forward.1} parent=1 // pred_region
      _
    $region17: #{transformer_encoder_forward.1} parent=1 // pred_fallthru
      _
    // Predicated region
    $region18: #{transformer_encoder_forward.1} parent=1 // pred_check
      _
    $region19: #{transformer_encoder_forward.1} parent=1 // pred_check_branch
      %35 = sbr.rel (0) target = $region21
    $region20: #{transformer_encoder_forward.1} parent=1 // pred_region
      _
    $region21: #{transformer_encoder_forward.1} parent=1 // pred_fallthru
      _
    // Predicated region
    $region22: #{transformer_encoder_forward.1} parent=1 // pred_check
      _
    $region23: #{transformer_encoder_forward.1} parent=1 // pred_check_branch
      %37 = sbr.rel (0) target = $region25
    $region24: #{transformer_encoder_forward.1} parent=1 // pred_region
      _
    $region25: #{transformer_encoder_forward.1} parent=1 // pred_fallthru
      _
    // Predicated region
    $region26: #{transformer_encoder_forward.1} parent=1 // pred_check
      _
    $region27: #{transformer_encoder_forward.1} parent=1 // pred_check_branch
      %39 = sbr.rel (0) target = $region29
    $region28: #{transformer_encoder_forward.1} parent=1 // pred_region
      _
    $region29: #{transformer_encoder_forward.1} parent=1 // pred_fallthru
      _
    // Predicated region
    $region30: #{transformer_encoder_forward.1} parent=1 // pred_check
      _
    $region31: #{transformer_encoder_forward.1} parent=1 // pred_check_branch
      %41 = sbr.rel (0) target = $region33
    $region32: #{transformer_encoder_forward.1} parent=1 // pred_region
      _
    $region33: #{transformer_encoder_forward.1} parent=1 // pred_fallthru
      _
    // Predicated region
    $region34: #{transformer_encoder_forward.1} parent=1 // pred_check
      _
    $region35: #{transformer_encoder_forward.1} parent=1 // pred_check_branch
      %43 = sbr.rel (0) target = $region37
    $region36: #{transformer_encoder_forward.1} parent=1 // pred_region
      _
    $region37: #{transformer_encoder_forward.1} parent=1 // pred_fallthru
      _
    // Predicated region
    $region38: #{transformer_encoder_forward.1} parent=1 // pred_check
      _
    $region39: #{transformer_encoder_forward.1} parent=1 // pred_check_branch
      %45 = sbr.rel (0) target = $region41
    $region40: #{transformer_encoder_forward.1} parent=1 // pred_region
      _
    $region41: #{transformer_encoder_forward.1} parent=1 // pred_fallthru
      _
    // Predicated region
    $region42: #{transformer_encoder_forward.1} parent=1 // pred_check
      _
    $region43: #{transformer_encoder_forward.1} parent=1 // pred_check_branch
      %47 = sbr.rel (0) target = $region45
    $region44: #{transformer_encoder_forward.1} parent=1 // pred_region
      _
    $region45: #{transformer_encoder_forward.1} parent=1 // pred_fallthru
      _
    // Predicated region
    $region46: #{transformer_encoder_forward.1} parent=1 // pred_check
      _
    $region47: #{transformer_encoder_forward.1} parent=1 // pred_check_branch
      %49 = sbr.rel (0) target = $region49
    $region48: #{transformer_encoder_forward.1} parent=1 // pred_region
      _
    $region49: #{transformer_encoder_forward.1} parent=1 // pred_fallthru
      _
    // Predicated region
    $region50: #{transformer_encoder_forward.1} parent=1 // pred_check
      _
    $region51: #{transformer_encoder_forward.1} parent=1 // pred_check_branch
      %51 = sbr.rel (0) target = $region53
    $region52: #{transformer_encoder_forward.1} parent=1 // pred_region
      _
    $region53: #{transformer_encoder_forward.1} parent=1 // pred_fallthru
      _
    // Predicated region
    $region54: #{transformer_encoder_forward.1} parent=1 // pred_check
      _
    $region55: #{transformer_encoder_forward.1} parent=1 // pred_check_branch
      %53 = sbr.rel (0) target = $region57
    $region56: #{transformer_encoder_forward.1} parent=1 // pred_region
      _
    $region57: #{transformer_encoder_forward.1} parent=1 // pred_fallthru
      _
    // Predicated region
    $region58: #{transformer_encoder_forward.1} parent=1 // pred_check
      _
    $region59: #{transformer_encoder_forward.1} parent=1 // pred_check_branch
      %55 = sbr.rel (0) target = $region61
    $region60: #{transformer_encoder_forward.1} parent=1 // pred_region
      _
    $region61: #{transformer_encoder_forward.1} parent=1 // pred_fallthru
      _
    // Predicated region
    $region62: #{transformer_encoder_forward.1} parent=1 // pred_check
      _
    $region63: #{transformer_encoder_forward.1} parent=1 // pred_check_branch
      %57 = sbr.rel (0) target = $region65
    $region64: #{transformer_encoder_forward.1} parent=1 // pred_region
      _
    $region65: #{transformer_encoder_forward.1} parent=1 // pred_fallthru
      _
    // Predicated region
    $region66: #{transformer_encoder_forward.1} parent=1 // pred_check
      _
    $region67: #{transformer_encoder_forward.1} parent=1 // pred_check_branch
      %59 = sbr.rel (0) target = $region69
    $region68: #{transformer_encoder_forward.1} parent=1 // pred_region
      _
    $region69: #{transformer_encoder_forward.1} parent=1 // pred_fallthru
      _
    // Predicated region
    $region70: #{transformer_encoder_forward.1} parent=1 // pred_check
      _
    $region71: #{transformer_encoder_forward.1} parent=1 // pred_check_branch
      %61 = sbr.rel (0) target = $region73
    $region72: #{transformer_encoder_forward.1} parent=1 // pred_region
      _
    $region73: #{transformer_encoder_forward.1} parent=1 // pred_fallthru
      _
    // Predicated region
    $region74: #{transformer_encoder_forward.1} parent=1 // pred_check
      _
    $region75: #{transformer_encoder_forward.1} parent=1 // pred_check_branch
      %63 = sbr.rel (0) target = $region77
    $region76: #{transformer_encoder_forward.1} parent=1 // pred_region
      _
    $region77: #{transformer_encoder_forward.1} parent=1 // pred_fallthru
      _
    // Predicated region
    $region78: #{transformer_encoder_forward.1} parent=1 // pred_check
      _
    $region79: #{transformer_encoder_forward.1} parent=1 // pred_check_branch
      %65 = sbr.rel (0) target = $region81
    $region80: #{transformer_encoder_forward.1} parent=1 // pred_region
      _
    $region81: #{transformer_encoder_forward.1} parent=1 // pred_fallthru
      _
    %v66 = vld [vmem:[%s0] sm:$0xff]
    %v67 = vld [vmem:[%s0 + $0x8] sm:$0xff]
    %v68 = vld [vmem:[%s0 + $0x10] sm:$0xff]
    %v69 = vld [vmem:[%s0 + $0x18] sm:$0xff]
    %v70 = vld [vmem:[%s1] sm:$0xff]
    %v71 = vld [vmem:[%s1 + $0x8] sm:$0xff]
    %v72 = vld [vmem:[%s1 + $0x10] sm:$0xff]
    %v73 = vld [vmem:[%s1 + $0x18] sm:$0xff]
    %v74 = vlaneseq
    %v75 = vand.u32 %v74, 127
    %v76 = vadd.s32 %v75, 128
    %77 = vset.pattern.permute.xlu0 0
    %78 = vperm.xlu0 %77, %v66
    %v79 = vpop.permute.xlu0 %78
    %80 = vset.pattern.permute.xlu0 0
    %81 = vperm.xlu0 %80, %v67
    %v82 = vpop.permute.xlu0 %81
    %83 = vset.pattern.permute.xlu0 0
    %84 = vperm.xlu0 %83, %v68
    %v85 = vpop.permute.xlu0 %84
    %86 = vset.pattern.permute.xlu0 0
    %87 = vperm.xlu0 %86, %v69
    %v88 = vpop.permute.xlu0 %87
    %vm89 = vcmp.eq.s32.totalorder %v79, %v75
    %vm90 = vcmp.eq.s32.totalorder %v79, %v76
    %vm91 = vcmp.eq.s32.totalorder %v82, %v75
    %vm92 = vcmp.eq.s32.totalorder %v82, %v76
    %vm93 = vcmp.eq.s32.totalorder %v85, %v75
    %vm94 = vcmp.eq.s32.totalorder %v85, %v76
    %vm95 = vcmp.eq.s32.totalorder %v88, %v75
    %vm96 = vcmp.eq.s32.totalorder %v88, %v76
    %97 = vset.pattern.permute.xlu0 0
    %98 = vperm.xlu0 %97, %v70
    %v99 = vpop.permute.xlu0 %98
    %100 = vset.pattern.permute.xlu0 0
    %101 = vperm.xlu0 %100, %v71
    %v102 = vpop.permute.xlu0 %101
    %103 = vset.pattern.permute.xlu0 0
    %104 = vperm.xlu0 %103, %v72
    %v105 = vpop.permute.xlu0 %104
    %106 = vset.pattern.permute.xlu0 0
    %107 = vperm.xlu0 %106, %v73
    %v108 = vpop.permute.xlu0 %107
    %vm109 = vcmp.eq.s32.totalorder %v99, %v75
    %vm110 = vcmp.eq.s32.totalorder %v99, %v76
    %vm111 = vcmp.eq.s32.totalorder %v102, %v75
    %vm112 = vcmp.eq.s32.totalorder %v102, %v76
    %vm113 = vcmp.eq.s32.totalorder %v105, %v75
    %vm114 = vcmp.eq.s32.totalorder %v105, %v76
    %vm115 = vcmp.eq.s32.totalorder %v108, %v75
    %vm116 = vcmp.eq.s32.totalorder %v108, %v76
    %vm117 = vmor %vm89, %vm109
    %vm118 = vmor %vm90, %vm110
    %vm119 = vmor %vm91, %vm111
    %vm120 = vmor %vm92, %vm112
    %vm121 = vmor %vm93, %vm113
    %vm122 = vmor %vm94, %vm114
    %vm123 = vmor %vm95, %vm115
    %vm124 = vmor %vm96, %vm116
    %v125 = vsel %vm117, 1, 0
    %v126 = vsel %vm118, 1, 0
    %v127 = vsel %vm119, 1, 0
    %v128 = vsel %vm120, 1, 0
    %v129 = vsel %vm121, 1, 0
    %v130 = vsel %vm122, 1, 0
    %v131 = vsel %vm123, 1, 0
    %v132 = vsel %vm124, 1, 0
    %v133 = vcvt.s32.f32 %v125
    %v134 = vcvt.s32.f32 %v126
    %v135 = vcvt.s32.f32 %v127
    %v136 = vcvt.s32.f32 %v128
    %v137 = vcvt.s32.f32 %v129
    %v138 = vcvt.s32.f32 %v130
    %v139 = vcvt.s32.f32 %v131
    %v140 = vcvt.s32.f32 %v132
    %v141 = vld [vmem:[%s3] sm:$0xff]
    %v142 = vld [vmem:[%s3 + $0x8] sm:$0xff]
    %v143 = vld [vmem:[%s3 + $0x10] sm:$0xff]
    %v144 = vld [vmem:[%s3 + $0x18] sm:$0xff]
    %v145 = vld [vmem:[%s3 + $0x20] sm:$0xff]
    %v146 = vld [vmem:[%s3 + $0x28] sm:$0xff]
    %v147 = vld [vmem:[%s3 + $0x30] sm:$0xff]
    %v148 = vld [vmem:[%s3 + $0x38] sm:$0xff]
    %v149 = vld [vmem:[%s3 + $0x40] sm:$0xff]
    %v150 = vld [vmem:[%s3 + $0x48] sm:$0xff]
    %v151 = vld [vmem:[%s3 + $0x50] sm:$0xff]
    %v152 = vld [vmem:[%s3 + $0x58] sm:$0xff]
    %v153 = vld [vmem:[%s3 + $0x60] sm:$0xff]
    %v154 = vld [vmem:[%s3 + $0x68] sm:$0xff]
    %v155 = vld [vmem:[%s3 + $0x70] sm:$0xff]
    %v156 = vld [vmem:[%s3 + $0x78] sm:$0xff]
    %v157 = vld [vmem:[%s3 + $0x80] sm:$0xff]
    %v158 = vld [vmem:[%s3 + $0x88] sm:$0xff]
    %vm159 = vcmask 130048
    %v161 = vsel %vm159, %v134, 0
    %v164 = vsel %vm159, %v136, 0
    %v167 = vsel %vm159, %v138, 0
    %v170 = vsel %vm159, %v140, 0
    %172 = vmatpush.msra.mxu0 %v156
    %173 = vmatpush.msra.mxu0 %v155
    %174 = vmatpush.msra.mxu0 %v154
    %175 = vmatpush.msra.mxu0 %v153
    %176 = vmatpush.msra.mxu0 %v152
    %177 = vmatpush.msra.mxu0 %v151
    %178 = vmatpush.msra.mxu0 %v150
    %179 = vmatpush.msra.mxu0 %v149
    %180 = vmatpush.msra.mxu0 %v148
    %181 = vmatpush.msra.mxu0 %v147
    %182 = vmatpush.msra.mxu0 %v146
    %183 = vmatpush.msra.mxu0 %v145
    %184 = vmatpush.msra.mxu0 %v144
    %185 = vmatpush.msra.mxu0 %v143
    %186 = vmatpush.msra.mxu0 %v142
    %187 = vmatpush.msra.mxu0 %v141
    %188 = vmatmul.f32.gmra.mxu0 %v133
    %v189 = vpop.f32.mrf.mxu0
    %v190 = vadd.f32 0.0, %v189
    %191 = vmatmul.f32.gmra.mxu0 %v135
    %v192 = vpop.f32.mrf.mxu0
    %v193 = vadd.f32 0.0, %v192
    %194 = vmatmul.f32.gmra.mxu0 %v137
    %v195 = vpop.f32.mrf.mxu0
    %v196 = vadd.f32 0.0, %v195
    %197 = vmatmul.f32.gmra.mxu0 %v139
    %v198 = vpop.f32.mrf.mxu0
    %v199 = vadd.f32 0.0, %v198
    %200 = vdwg.mxu0
    %201 = vmatpush.msra.mxu0 0.0
    %202 = vmatpush.msra.mxu0 0.0
    %203 = vmatpush.msra.mxu0 0.0
    %204 = vmatpush.msra.mxu0 0.0
    %205 = vmatpush.msra.mxu0 0.0
    %206 = vmatpush.msra.mxu0 0.0
    %207 = vmatpush.msra.mxu0 0.0
    %208 = vmatpush.msra.mxu0 0.0
    %209 = vmatpush.msra.mxu0 0.0
    %210 = vmatpush.msra.mxu0 0.0
    %211 = vmatpush.msra.mxu0 0.0
    %212 = vmatpush.msra.mxu0 0.0
    %213 = vmatpush.msra.mxu0 0.0
    %214 = vmatpush.msra.mxu0 0.0
    %215 = vmatpush.msra.mxu0 %v158
    %216 = vmatpush.msra.mxu0 %v157
    %217 = vmatmul.f32.gmra.mxu0 %v161
    %v218 = vpop.f32.mrf.mxu0
    %v219 = vadd.f32 %v190, %v218
    %220 = vmatmul.f32.gmra.mxu0 %v164
    %v221 = vpop.f32.mrf.mxu0
    %v222 = vadd.f32 %v193, %v221
    %223 = vmatmul.f32.gmra.mxu0 %v167
    %v224 = vpop.f32.mrf.mxu0
    %v225 = vadd.f32 %v196, %v224
    %226 = vmatmul.f32.gmra.mxu0 %v170
    %v227 = vpop.f32.mrf.mxu0
    %v228 = vadd.f32 %v199, %v227
    %229 = vdwg.mxu0
    %v230 = vld [vmem:[%s4] sm:$0x1]
    %v231 = vld [vmem:[%s5] sm:$0x1]
    %vm232 = vcmask 261120
    %v233 = vsel %vm232, %v219, 0.0
    %234 = vadd.xlane.f32.xlu0 %v233
    %v235 = vpop.xlane.xlu0 %234
    %v236 = vsel %vm232, %v222, 0.0
    %237 = vadd.xlane.f32.xlu0 %v236
    %v238 = vpop.xlane.xlu0 %237
    %v239 = vsel %vm232, %v225, 0.0
    %240 = vadd.xlane.f32.xlu0 %v239
    %v241 = vpop.xlane.xlu0 %240
    %v242 = vsel %vm232, %v228, 0.0
    %243 = vadd.xlane.f32.xlu0 %v242
    %v244 = vpop.xlane.xlu0 %243
    %v245 = vrcp.pop 32.0
    %v246 = vmul.f32 32.0, %v245
    %v247 = vsub.f32 1.0, %v246
    %v248 = vmul.f32 %v245, %v247
    %v249 = vadd.f32 %v245, %v248
    %vm250 = vweird.f32 %v245
    %v251 = vsel %vm250, %v245, %v249
    %v252 = vmul.f32 %v235, %v251
    %v253 = vmul.f32 %v238, %v251
    %v254 = vmul.f32 %v241, %v251
    %v255 = vmul.f32 %v244, %v251
    %v256 = vsub.f32 %v219, %v252
    %v257 = vsub.f32 %v222, %v253
    %v258 = vsub.f32 %v225, %v254
    %v259 = vsub.f32 %v228, %v255
    %v260 = vmul.f32 %v256, %v256
    %v261 = vmul.f32 %v257, %v257
    %v262 = vmul.f32 %v258, %v258
    %v263 = vmul.f32 %v259, %v259
    %v264 = vsel %vm232, %v260, 0.0
    %265 = vadd.xlane.f32.xlu0 %v264
    %v266 = vpop.xlane.xlu0 %265
    %v267 = vsel %vm232, %v261, 0.0
    %268 = vadd.xlane.f32.xlu0 %v267
    %v269 = vpop.xlane.xlu0 %268
    %v270 = vsel %vm232, %v262, 0.0
    %271 = vadd.xlane.f32.xlu0 %v270
    %v272 = vpop.xlane.xlu0 %271
    %v273 = vsel %vm232, %v263, 0.0
    %274 = vadd.xlane.f32.xlu0 %v273
    %v275 = vpop.xlane.xlu0 %274
    %v276 = vmul.f32 %v266, %v251
    %v277 = vmul.f32 %v269, %v251
    %v278 = vmul.f32 %v272, %v251
    %v279 = vmul.f32 %v275, %v251
    %v280 = vadd.f32 %v276, 1e-05
    %v281 = vadd.f32 %v277, 1e-05
    %v282 = vadd.f32 %v278, 1e-05
    %v283 = vadd.f32 %v279, 1e-05
    %v284 = vrsqrt.pop %v280
    %v285 = vmul.f32 %v284, %v280
    %v286 = vmul.f32 %v285, %v284
    %v287 = vmul.f32 0.5, %v286
    %v288 = vsub.f32 1.5, %v287
    %v289 = vmul.f32 %v284, %v288
    %vm290 = vweird.f32 %v280
    %vm291 = vweird.f32 %v284
    %vm292 = vmor %vm290, %vm291
    %v293 = vsel %vm292, %v284, %v289
    %v294 = vrsqrt.pop %v281
    %v295 = vmul.f32 %v294, %v281
    %v296 = vmul.f32 %v295, %v294
    %v297 = vmul.f32 0.5, %v296
    %v298 = vsub.f32 1.5, %v297
    %v299 = vmul.f32 %v294, %v298
    %vm300 = vweird.f32 %v281
    %vm301 = vweird.f32 %v294
    %vm302 = vmor %vm300, %vm301
    %v303 = vsel %vm302, %v294, %v299
    %v304 = vrsqrt.pop %v282
    %v305 = vmul.f32 %v304, %v282
    %v306 = vmul.f32 %v305, %v304
    %v307 = vmul.f32 0.5, %v306
    %v308 = vsub.f32 1.5, %v307
    %v309 = vmul.f32 %v304, %v308
    %vm310 = vweird.f32 %v282
    %vm311 = vweird.f32 %v304
    %vm312 = vmor %vm310, %vm311
    %v313 = vsel %vm312, %v304, %v309
    %v314 = vrsqrt.pop %v283
    %v315 = vmul.f32 %v314, %v283
    %v316 = vmul.f32 %v315, %v314
    %v317 = vmul.f32 0.5, %v316
    %v318 = vsub.f32 1.5, %v317
    %v319 = vmul.f32 %v314, %v318
    %vm320 = vweird.f32 %v283
    %vm321 = vweird.f32 %v314
    %vm322 = vmor %vm320, %vm321
    %v323 = vsel %vm322, %v314, %v319
    %v324 = vmul.f32 %v256, %v293
    %v325 = vmul.f32 %v257, %v303
    %v326 = vmul.f32 %v258, %v313
    %v327 = vmul.f32 %v259, %v323
    %v329 = vperm.slane %v230, 0
    %v331 = vmul.f32 %v324, %v329
    %v332 = vmul.f32 %v325, %v329
    %v333 = vmul.f32 %v326, %v329
    %v334 = vmul.f32 %v327, %v329
    %v336 = vperm.slane %v231, 0
    %v338 = vadd.f32 %v331, %v336
    %v339 = vadd.f32 %v332, %v336
    %v340 = vadd.f32 %v333, %v336
    %v341 = vadd.f32 %v334, %v336
    %v342 = vld [vmem:[%s2] sm:$0x1]
    %v343 = vld [vmem:[%s2 + $0x1] sm:$0x1]
    %v344 = vld [vmem:[%s2 + $0x2] sm:$0x1]
    %v345 = vld [vmem:[%s2 + $0x3] sm:$0x1]
    %v350 = vperm.slane %v342, 0
    %v351 = vperm.slane %v343, 0
    %v352 = vperm.slane %v344, 0
    %v353 = vperm.slane %v345, 0
    %v358 = vld [vmem:[%s6] sm:$0xff]
    %v359 = vld [vmem:[%s6 + $0x8] sm:$0xff]
    %v360 = vld [vmem:[%s6 + $0x10] sm:$0xff]
    %v361 = vld [vmem:[%s6 + $0x18] sm:$0xff]
    %v362 = vld [vmem:[%s7] sm:$0x1]
    %v364 = vperm.slane %v362, 0
    %v367 = vsel %vm232, %v338, 0
    %v370 = vsel %vm232, %v339, 0
    %v373 = vsel %vm232, %v340, 0
    %v376 = vsel %vm232, %v341, 0
    %378 = vmatpush.msra.mxu0 0.0
    %379 = vmatpush.msra.mxu0 0.0
    %380 = vmatpush.msra.mxu0 0.0
    %381 = vmatpush.msra.mxu0 0.0
    %382 = vmatpush.msra.mxu0 0.0
    %383 = vmatpush.msra.mxu0 0.0
    %384 = vmatpush.msra.mxu0 0.0
    %385 = vmatpush.msra.mxu0 0.0
    %386 = vmatpush.msra.mxu0 0.0
    %387 = vmatpush.msra.mxu0 0.0
    %388 = vmatpush.msra.mxu0 0.0
    %389 = vmatpush.msra.mxu0 0.0
    %390 = vmatpush.msra.mxu0 %v361
    %391 = vmatpush.msra.mxu0 %v360
    %392 = vmatpush.msra.mxu0 %v359
    %393 = vmatpush.msra.mxu0 %v358
    %394 = vmatmul.f32.gmra.mxu0 %v367
    %v395 = vpop.f32.mrf.mxu0
    %v396 = vadd.f32 %v364, %v395
    %397 = vmatmul.f32.gmra.mxu0 %v370
    %v398 = vpop.f32.mrf.mxu0
    %v399 = vadd.f32 %v364, %v398
    %400 = vmatmul.f32.gmra.mxu0 %v373
    %v401 = vpop.f32.mrf.mxu0
    %v402 = vadd.f32 %v364, %v401
    %403 = vmatmul.f32.gmra.mxu0 %v376
    %v404 = vpop.f32.mrf.mxu0
    %v405 = vadd.f32 %v364, %v404
    %406 = vdwg.mxu0
    %408 = vrot.lane.b32.xlu0 %v396, 96
    %v409 = vpop.permute.xlu0 %408
    %vm410 = vcmask 64512
    %v411 = vsel %vm410, %v396, 0
    %v413 = vsel %vm410, %v409, 0
    %415 = vmatpush.xpose.msra.mxu0 0.0
    %416 = vmatpush.xpose.msra.mxu0 0.0
    %417 = vmatpush.xpose.msra.mxu0 0.0
    %418 = vmatpush.xpose.msra.mxu0 0.0
    %419 = vmatpush.xpose.msra.mxu0 0.0
    %420 = vmatpush.xpose.msra.mxu0 0.0
    %421 = vmatpush.xpose.msra.mxu0 0.0
    %422 = vmatpush.xpose.msra.mxu0 0.0
    %423 = vmatpush.xpose.msra.mxu0 0.0
    %424 = vmatpush.xpose.msra.mxu0 0.0
    %425 = vmatpush.xpose.msra.mxu0 0.0
    %426 = vmatpush.xpose.msra.mxu0 0.0
    %427 = vmatpush.xpose.msra.mxu0 0.0
    %428 = vmatpush.xpose.msra.mxu0 0.0
    %429 = vmatpush.xpose.msra.mxu0 0.0
    %430 = vmatpush.xpose.msra.mxu0 %v413
    %431 = vmatmul.f32.gmra.mxu0 %v411
    %v432 = vpop.f32.mrf.mxu0
    %v433 = vadd.f32 0.0, %v432
    %434 = vdwg.mxu0
    %436 = vrot.lane.b32.xlu0 %v399, 96
    %v437 = vpop.permute.xlu0 %436
    %v438 = vsel %vm410, %v399, 0
    %v440 = vsel %vm410, %v437, 0
    %442 = vmatpush.xpose.msra.mxu0 0.0
    %443 = vmatpush.xpose.msra.mxu0 0.0
    %444 = vmatpush.xpose.msra.mxu0 0.0
    %445 = vmatpush.xpose.msra.mxu0 0.0
    %446 = vmatpush.xpose.msra.mxu0 0.0
    %447 = vmatpush.xpose.msra.mxu0 0.0
    %448 = vmatpush.xpose.msra.mxu0 0.0
    %449 = vmatpush.xpose.msra.mxu0 0.0
    %450 = vmatpush.xpose.msra.mxu0 0.0
    %451 = vmatpush.xpose.msra.mxu0 0.0
    %452 = vmatpush.xpose.msra.mxu0 0.0
    %453 = vmatpush.xpose.msra.mxu0 0.0
    %454 = vmatpush.xpose.msra.mxu0 0.0
    %455 = vmatpush.xpose.msra.mxu0 0.0
    %456 = vmatpush.xpose.msra.mxu0 0.0
    %457 = vmatpush.xpose.msra.mxu0 %v440
    %458 = vmatmul.f32.gmra.mxu0 %v438
    %v459 = vpop.f32.mrf.mxu0
    %v460 = vadd.f32 0.0, %v459
    %461 = vdwg.mxu0
    %463 = vrot.lane.b32.xlu0 %v402, 96
    %v464 = vpop.permute.xlu0 %463
    %v465 = vsel %vm410, %v402, 0
    %v467 = vsel %vm410, %v464, 0
    %469 = vmatpush.xpose.msra.mxu0 0.0
    %470 = vmatpush.xpose.msra.mxu0 0.0
    %471 = vmatpush.xpose.msra.mxu0 0.0
    %472 = vmatpush.xpose.msra.mxu0 0.0
    %473 = vmatpush.xpose.msra.mxu0 0.0
    %474 = vmatpush.xpose.msra.mxu0 0.0
    %475 = vmatpush.xpose.msra.mxu0 0.0
    %476 = vmatpush.xpose.msra.mxu0 0.0
    %477 = vmatpush.xpose.msra.mxu0 0.0
    %478 = vmatpush.xpose.msra.mxu0 0.0
    %479 = vmatpush.xpose.msra.mxu0 0.0
    %480 = vmatpush.xpose.msra.mxu0 0.0
    %481 = vmatpush.xpose.msra.mxu0 0.0
    %482 = vmatpush.xpose.msra.mxu0 0.0
    %483 = vmatpush.xpose.msra.mxu0 0.0
    %484 = vmatpush.xpose.msra.mxu0 %v467
    %485 = vmatmul.f32.gmra.mxu0 %v465
    %v486 = vpop.f32.mrf.mxu0
    %v487 = vadd.f32 0.0, %v486
    %488 = vdwg.mxu0
    %490 = vrot.lane.b32.xlu0 %v405, 96
    %v491 = vpop.permute.xlu0 %490
    %v492 = vsel %vm410, %v405, 0
    %v494 = vsel %vm410, %v491, 0
    %496 = vmatpush.xpose.msra.mxu0 0.0
    %497 = vmatpush.xpose.msra.mxu0 0.0
    %498 = vmatpush.xpose.msra.mxu0 0.0
    %499 = vmatpush.xpose.msra.mxu0 0.0
    %500 = vmatpush.xpose.msra.mxu0 0.0
    %501 = vmatpush.xpose.msra.mxu0 0.0
    %502 = vmatpush.xpose.msra.mxu0 0.0
    %503 = vmatpush.xpose.msra.mxu0 0.0
    %504 = vmatpush.xpose.msra.mxu0 0.0
    %505 = vmatpush.xpose.msra.mxu0 0.0
    %506 = vmatpush.xpose.msra.mxu0 0.0
    %507 = vmatpush.xpose.msra.mxu0 0.0
    %508 = vmatpush.xpose.msra.mxu0 0.0
    %509 = vmatpush.xpose.msra.mxu0 0.0
    %510 = vmatpush.xpose.msra.mxu0 0.0
    %511 = vmatpush.xpose.msra.mxu0 %v494
    %512 = vmatmul.f32.gmra.mxu0 %v492
    %v513 = vpop.f32.mrf.mxu0
    %v514 = vadd.f32 0.0, %v513
    %515 = vdwg.mxu0
    %v516 = vmul.f32 %v433, 0.35355338
    %v517 = vmul.f32 %v460, 0.35355338
    %v518 = vmul.f32 %v487, 0.35355338
    %v519 = vmul.f32 %v514, 0.35355338
    %v520 = vadd.f32 %v516, %v350
    %v521 = vadd.f32 %v517, %v351
    %v522 = vadd.f32 %v518, %v352
    %v523 = vadd.f32 %v519, %v353
    %v524 = vsel %vm410, %v520, -inf
    %525 = vmax.xlane.f32.xlu0 %v524
    %v526 = vpop.xlane.xlu0 %525
    %v527 = vsel %vm410, %v521, -inf
    %528 = vmax.xlane.f32.xlu0 %v527
    %v529 = vpop.xlane.xlu0 %528
    %v530 = vsel %vm410, %v522, -inf
    %531 = vmax.xlane.f32.xlu0 %v530
    %v532 = vpop.xlane.xlu0 %531
    %v533 = vsel %vm410, %v523, -inf
    %534 = vmax.xlane.f32.xlu0 %v533
    %v535 = vpop.xlane.xlu0 %534
    %v536 = vsub.f32 %v520, %v526
    %v537 = vsub.f32 %v521, %v529
    %v538 = vsub.f32 %v522, %v532
    %v539 = vsub.f32 %v523, %v535
    %v540 = vmul.f32 %v536, 1.442695
    %v541 = vpow.pop %v540
    %v542 = vmul.f32 %v537, 1.442695
    %v543 = vpow.pop %v542
    %v544 = vmul.f32 %v538, 1.442695
    %v545 = vpow.pop %v544
    %v546 = vmul.f32 %v539, 1.442695
    %v547 = vpow.pop %v546
    %v548 = vsel %vm410, %v541, 0.0
    %549 = vadd.xlane.f32.xlu0 %v548
    %v550 = vpop.xlane.xlu0 %549
    %v551 = vsel %vm410, %v543, 0.0
    %552 = vadd.xlane.f32.xlu0 %v551
    %v553 = vpop.xlane.xlu0 %552
    %v554 = vsel %vm410, %v545, 0.0
    %555 = vadd.xlane.f32.xlu0 %v554
    %v556 = vpop.xlane.xlu0 %555
    %v557 = vsel %vm410, %v547, 0.0
    %558 = vadd.xlane.f32.xlu0 %v557
    %v559 = vpop.xlane.xlu0 %558
    %v560 = vrcp.pop %v550
    %v561 = vrcp.pop %v553
    %v562 = vrcp.pop %v556
    %v563 = vrcp.pop %v559
    %v564 = vmul.f32 %v541, %v560
    %v565 = vmul.f32 %v543, %v561
    %v566 = vmul.f32 %v545, %v562
    %v567 = vmul.f32 %v547, %v563
    %568 = vrot.lane.b32.xlu0 %v396, 64
    %v569 = vpop.permute.xlu0 %568
    %v572 = vsel %vm410, %v564, 0
    %574 = vmatpush.msra.mxu0 0.0
    %575 = vmatpush.msra.mxu0 0.0
    %576 = vmatpush.msra.mxu0 0.0
    %577 = vmatpush.msra.mxu0 0.0
    %578 = vmatpush.msra.mxu0 0.0
    %579 = vmatpush.msra.mxu0 0.0
    %580 = vmatpush.msra.mxu0 0.0
    %581 = vmatpush.msra.mxu0 0.0
    %582 = vmatpush.msra.mxu0 0.0
    %583 = vmatpush.msra.mxu0 0.0
    %584 = vmatpush.msra.mxu0 0.0
    %585 = vmatpush.msra.mxu0 0.0
    %586 = vmatpush.msra.mxu0 0.0
    %587 = vmatpush.msra.mxu0 0.0
    %588 = vmatpush.msra.mxu0 0.0
    %589 = vmatpush.msra.mxu0 %v569
    %590 = vmatmul.f32.gmra.mxu0 %v572
    %v591 = vpop.f32.mrf.mxu0
    %v592 = vadd.f32 0.0, %v591
    %593 = vdwg.mxu0
    %594 = vrot.lane.b32.xlu0 %v399, 64
    %v595 = vpop.permute.xlu0 %594
    %v598 = vsel %vm410, %v565, 0
    %600 = vmatpush.msra.mxu0 0.0
    %601 = vmatpush.msra.mxu0 0.0
    %602 = vmatpush.msra.mxu0 0.0
    %603 = vmatpush.msra.mxu0 0.0
    %604 = vmatpush.msra.mxu0 0.0
    %605 = vmatpush.msra.mxu0 0.0
    %606 = vmatpush.msra.mxu0 0.0
    %607 = vmatpush.msra.mxu0 0.0
    %608 = vmatpush.msra.mxu0 0.0
    %609 = vmatpush.msra.mxu0 0.0
    %610 = vmatpush.msra.mxu0 0.0
    %611 = vmatpush.msra.mxu0 0.0
    %612 = vmatpush.msra.mxu0 0.0
    %613 = vmatpush.msra.mxu0 0.0
    %614 = vmatpush.msra.mxu0 0.0
    %615 = vmatpush.msra.mxu0 %v595
    %616 = vmatmul.f32.gmra.mxu0 %v598
    %v617 = vpop.f32.mrf.mxu0
    %v618 = vadd.f32 0.0, %v617
    %619 = vdwg.mxu0
    %620 = vrot.lane.b32.xlu0 %v402, 64
    %v621 = vpop.permute.xlu0 %620
    %v624 = vsel %vm410, %v566, 0
    %626 = vmatpush.msra.mxu0 0.0
    %627 = vmatpush.msra.mxu0 0.0
    %628 = vmatpush.msra.mxu0 0.0
    %629 = vmatpush.msra.mxu0 0.0
    %630 = vmatpush.msra.mxu0 0.0
    %631 = vmatpush.msra.mxu0 0.0
    %632 = vmatpush.msra.mxu0 0.0
    %633 = vmatpush.msra.mxu0 0.0
    %634 = vmatpush.msra.mxu0 0.0
    %635 = vmatpush.msra.mxu0 0.0
    %636 = vmatpush.msra.mxu0 0.0
    %637 = vmatpush.msra.mxu0 0.0
    %638 = vmatpush.msra.mxu0 0.0
    %639 = vmatpush.msra.mxu0 0.0
    %640 = vmatpush.msra.mxu0 0.0
    %641 = vmatpush.msra.mxu0 %v621
    %642 = vmatmul.f32.gmra.mxu0 %v624
    %v643 = vpop.f32.mrf.mxu0
    %v644 = vadd.f32 0.0, %v643
    %645 = vdwg.mxu0
    %646 = vrot.lane.b32.xlu0 %v405, 64
    %v647 = vpop.permute.xlu0 %646
    %v650 = vsel %vm410, %v567, 0
    %652 = vmatpush.msra.mxu0 0.0
    %653 = vmatpush.msra.mxu0 0.0
    %654 = vmatpush.msra.mxu0 0.0
    %655 = vmatpush.msra.mxu0 0.0
    %656 = vmatpush.msra.mxu0 0.0
    %657 = vmatpush.msra.mxu0 0.0
    %658 = vmatpush.msra.mxu0 0.0
    %659 = vmatpush.msra.mxu0 0.0
    %660 = vmatpush.msra.mxu0 0.0
    %661 = vmatpush.msra.mxu0 0.0
    %662 = vmatpush.msra.mxu0 0.0
    %663 = vmatpush.msra.mxu0 0.0
    %664 = vmatpush.msra.mxu0 0.0
    %665 = vmatpush.msra.mxu0 0.0
    %666 = vmatpush.msra.mxu0 0.0
    %667 = vmatpush.msra.mxu0 %v647
    %668 = vmatmul.f32.gmra.mxu0 %v650
    %v669 = vpop.f32.mrf.mxu0
    %v670 = vadd.f32 0.0, %v669
    %671 = vdwg.mxu0
    %672 = vrot.lane.b32.xlu0 %v396, 120
    %v673 = vpop.permute.xlu0 %672
    %674 = vrot.lane.b32.xlu0 %v396, 88
    %v675 = vpop.permute.xlu0 %674
    %v676 = vsel %vm410, %v673, 0
    %v678 = vsel %vm410, %v675, 0
    %680 = vmatpush.xpose.msra.mxu0 0.0
    %681 = vmatpush.xpose.msra.mxu0 0.0
    %682 = vmatpush.xpose.msra.mxu0 0.0
    %683 = vmatpush.xpose.msra.mxu0 0.0
    %684 = vmatpush.xpose.msra.mxu0 0.0
    %685 = vmatpush.xpose.msra.mxu0 0.0
    %686 = vmatpush.xpose.msra.mxu0 0.0
    %687 = vmatpush.xpose.msra.mxu0 0.0
    %688 = vmatpush.xpose.msra.mxu0 0.0
    %689 = vmatpush.xpose.msra.mxu0 0.0
    %690 = vmatpush.xpose.msra.mxu0 0.0
    %691 = vmatpush.xpose.msra.mxu0 0.0
    %692 = vmatpush.xpose.msra.mxu0 0.0
    %693 = vmatpush.xpose.msra.mxu0 0.0
    %694 = vmatpush.xpose.msra.mxu0 0.0
    %695 = vmatpush.xpose.msra.mxu0 %v678
    %696 = vmatmul.f32.gmra.mxu0 %v676
    %v697 = vpop.f32.mrf.mxu0
    %v698 = vadd.f32 0.0, %v697
    %699 = vdwg.mxu0
    %700 = vrot.lane.b32.xlu0 %v399, 120
    %v701 = vpop.permute.xlu0 %700
    %702 = vrot.lane.b32.xlu0 %v399, 88
    %v703 = vpop.permute.xlu0 %702
    %v704 = vsel %vm410, %v701, 0
    %v706 = vsel %vm410, %v703, 0
    %708 = vmatpush.xpose.msra.mxu0 0.0
    %709 = vmatpush.xpose.msra.mxu0 0.0
    %710 = vmatpush.xpose.msra.mxu0 0.0
    %711 = vmatpush.xpose.msra.mxu0 0.0
    %712 = vmatpush.xpose.msra.mxu0 0.0
    %713 = vmatpush.xpose.msra.mxu0 0.0
    %714 = vmatpush.xpose.msra.mxu0 0.0
    %715 = vmatpush.xpose.msra.mxu0 0.0
    %716 = vmatpush.xpose.msra.mxu0 0.0
    %717 = vmatpush.xpose.msra.mxu0 0.0
    %718 = vmatpush.xpose.msra.mxu0 0.0
    %719 = vmatpush.xpose.msra.mxu0 0.0
    %720 = vmatpush.xpose.msra.mxu0 0.0
    %721 = vmatpush.xpose.msra.mxu0 0.0
    %722 = vmatpush.xpose.msra.mxu0 0.0
    %723 = vmatpush.xpose.msra.mxu0 %v706
    %724 = vmatmul.f32.gmra.mxu0 %v704
    %v725 = vpop.f32.mrf.mxu0
    %v726 = vadd.f32 0.0, %v725
    %727 = vdwg.mxu0
    %728 = vrot.lane.b32.xlu0 %v402, 120
    %v729 = vpop.permute.xlu0 %728
    %730 = vrot.lane.b32.xlu0 %v402, 88
    %v731 = vpop.permute.xlu0 %730
    %v732 = vsel %vm410, %v729, 0
    %v734 = vsel %vm410, %v731, 0
    %736 = vmatpush.xpose.msra.mxu0 0.0
    %737 = vmatpush.xpose.msra.mxu0 0.0
    %738 = vmatpush.xpose.msra.mxu0 0.0
    %739 = vmatpush.xpose.msra.mxu0 0.0
    %740 = vmatpush.xpose.msra.mxu0 0.0
    %741 = vmatpush.xpose.msra.mxu0 0.0
    %742 = vmatpush.xpose.msra.mxu0 0.0
    %743 = vmatpush.xpose.msra.mxu0 0.0
    %744 = vmatpush.xpose.msra.mxu0 0.0
    %745 = vmatpush.xpose.msra.mxu0 0.0
    %746 = vmatpush.xpose.msra.mxu0 0.0
    %747 = vmatpush.xpose.msra.mxu0 0.0
    %748 = vmatpush.xpose.msra.mxu0 0.0
    %749 = vmatpush.xpose.msra.mxu0 0.0
    %750 = vmatpush.xpose.msra.mxu0 0.0
    %751 = vmatpush.xpose.msra.mxu0 %v734
    %752 = vmatmul.f32.gmra.mxu0 %v732
    %v753 = vpop.f32.mrf.mxu0
    %v754 = vadd.f32 0.0, %v753
    %755 = vdwg.mxu0
    %756 = vrot.lane.b32.xlu0 %v405, 120
    %v757 = vpop.permute.xlu0 %756
    %758 = vrot.lane.b32.xlu0 %v405, 88
    %v759 = vpop.permute.xlu0 %758
    %v760 = vsel %vm410, %v757, 0
    %v762 = vsel %vm410, %v759, 0
    %764 = vmatpush.xpose.msra.mxu0 0.0
    %765 = vmatpush.xpose.msra.mxu0 0.0
    %766 = vmatpush.xpose.msra.mxu0 0.0
    %767 = vmatpush.xpose.msra.mxu0 0.0
    %768 = vmatpush.xpose.msra.mxu0 0.0
    %769 = vmatpush.xpose.msra.mxu0 0.0
    %770 = vmatpush.xpose.msra.mxu0 0.0
    %771 = vmatpush.xpose.msra.mxu0 0.0
    %772 = vmatpush.xpose.msra.mxu0 0.0
    %773 = vmatpush.xpose.msra.mxu0 0.0
    %774 = vmatpush.xpose.msra.mxu0 0.0
    %775 = vmatpush.xpose.msra.mxu0 0.0
    %776 = vmatpush.xpose.msra.mxu0 0.0
    %777 = vmatpush.xpose.msra.mxu0 0.0
    %778 = vmatpush.xpose.msra.mxu0 0.0
    %779 = vmatpush.xpose.msra.mxu0 %v762
    %780 = vmatmul.f32.gmra.mxu0 %v760
    %v781 = vpop.f32.mrf.mxu0
    %v782 = vadd.f32 0.0, %v781
    %783 = vdwg.mxu0
    %v784 = vmul.f32 %v698, 0.35355338
    %v785 = vmul.f32 %v726, 0.35355338
    %v786 = vmul.f32 %v754, 0.35355338
    %v787 = vmul.f32 %v782, 0.35355338
    %v788 = vadd.f32 %v784, %v350
    %v789 = vadd.f32 %v785, %v351
    %v790 = vadd.f32 %v786, %v352
    %v791 = vadd.f32 %v787, %v353
    %v792 = vsel %vm410, %v788, -inf
    %793 = vmax.xlane.f32.xlu0 %v792
    %v794 = vpop.xlane.xlu0 %793
    %v795 = vsel %vm410, %v789, -inf
    %796 = vmax.xlane.f32.xlu0 %v795
    %v797 = vpop.xlane.xlu0 %796
    %v798 = vsel %vm410, %v790, -inf
    %799 = vmax.xlane.f32.xlu0 %v798
    %v800 = vpop.xlane.xlu0 %799
    %v801 = vsel %vm410, %v791, -inf
    %802 = vmax.xlane.f32.xlu0 %v801
    %v803 = vpop.xlane.xlu0 %802
    %v804 = vsub.f32 %v788, %v794
    %v805 = vsub.f32 %v789, %v797
    %v806 = vsub.f32 %v790, %v800
    %v807 = vsub.f32 %v791, %v803
    %v808 = vmul.f32 %v804, 1.442695
    %v809 = vpow.pop %v808
    %v810 = vmul.f32 %v805, 1.442695
    %v811 = vpow.pop %v810
    %v812 = vmul.f32 %v806, 1.442695
    %v813 = vpow.pop %v812
    %v814 = vmul.f32 %v807, 1.442695
    %v815 = vpow.pop %v814
    %v816 = vsel %vm410, %v809, 0.0
    %817 = vadd.xlane.f32.xlu0 %v816
    %v818 = vpop.xlane.xlu0 %817
    %v819 = vsel %vm410, %v811, 0.0
    %820 = vadd.xlane.f32.xlu0 %v819
    %v821 = vpop.xlane.xlu0 %820
    %v822 = vsel %vm410, %v813, 0.0
    %823 = vadd.xlane.f32.xlu0 %v822
    %v824 = vpop.xlane.xlu0 %823
    %v825 = vsel %vm410, %v815, 0.0
    %826 = vadd.xlane.f32.xlu0 %v825
    %v827 = vpop.xlane.xlu0 %826
    %v828 = vrcp.pop %v818
    %v829 = vrcp.pop %v821
    %v830 = vrcp.pop %v824
    %v831 = vrcp.pop %v827
    %v832 = vmul.f32 %v809, %v828
    %v833 = vmul.f32 %v811, %v829
    %v834 = vmul.f32 %v813, %v830
    %v835 = vmul.f32 %v815, %v831
    %836 = vrot.lane.b32.xlu0 %v396, 56
    %v837 = vpop.permute.xlu0 %836
    %v840 = vsel %vm410, %v832, 0
    %842 = vmatpush.msra.mxu0 0.0
    %843 = vmatpush.msra.mxu0 0.0
    %844 = vmatpush.msra.mxu0 0.0
    %845 = vmatpush.msra.mxu0 0.0
    %846 = vmatpush.msra.mxu0 0.0
    %847 = vmatpush.msra.mxu0 0.0
    %848 = vmatpush.msra.mxu0 0.0
    %849 = vmatpush.msra.mxu0 0.0
    %850 = vmatpush.msra.mxu0 0.0
    %851 = vmatpush.msra.mxu0 0.0
    %852 = vmatpush.msra.mxu0 0.0
    %853 = vmatpush.msra.mxu0 0.0
    %854 = vmatpush.msra.mxu0 0.0
    %855 = vmatpush.msra.mxu0 0.0
    %856 = vmatpush.msra.mxu0 0.0
    %857 = vmatpush.msra.mxu0 %v837
    %858 = vmatmul.f32.gmra.mxu0 %v840
    %v859 = vpop.f32.mrf.mxu0
    %v860 = vadd.f32 0.0, %v859
    %861 = vdwg.mxu0
    %862 = vrot.lane.b32.xlu0 %v399, 56
    %v863 = vpop.permute.xlu0 %862
    %v866 = vsel %vm410, %v833, 0
    %868 = vmatpush.msra.mxu0 0.0
    %869 = vmatpush.msra.mxu0 0.0
    %870 = vmatpush.msra.mxu0 0.0
    %871 = vmatpush.msra.mxu0 0.0
    %872 = vmatpush.msra.mxu0 0.0
    %873 = vmatpush.msra.mxu0 0.0
    %874 = vmatpush.msra.mxu0 0.0
    %875 = vmatpush.msra.mxu0 0.0
    %876 = vmatpush.msra.mxu0 0.0
    %877 = vmatpush.msra.mxu0 0.0
    %878 = vmatpush.msra.mxu0 0.0
    %879 = vmatpush.msra.mxu0 0.0
    %880 = vmatpush.msra.mxu0 0.0
    %881 = vmatpush.msra.mxu0 0.0
    %882 = vmatpush.msra.mxu0 0.0
    %883 = vmatpush.msra.mxu0 %v863
    %884 = vmatmul.f32.gmra.mxu0 %v866
    %v885 = vpop.f32.mrf.mxu0
    %v886 = vadd.f32 0.0, %v885
    %887 = vdwg.mxu0
    %888 = vrot.lane.b32.xlu0 %v402, 56
    %v889 = vpop.permute.xlu0 %888
    %v892 = vsel %vm410, %v834, 0
    %894 = vmatpush.msra.mxu0 0.0
    %895 = vmatpush.msra.mxu0 0.0
    %896 = vmatpush.msra.mxu0 0.0
    %897 = vmatpush.msra.mxu0 0.0
    %898 = vmatpush.msra.mxu0 0.0
    %899 = vmatpush.msra.mxu0 0.0
    %900 = vmatpush.msra.mxu0 0.0
    %901 = vmatpush.msra.mxu0 0.0
    %902 = vmatpush.msra.mxu0 0.0
    %903 = vmatpush.msra.mxu0 0.0
    %904 = vmatpush.msra.mxu0 0.0
    %905 = vmatpush.msra.mxu0 0.0
    %906 = vmatpush.msra.mxu0 0.0
    %907 = vmatpush.msra.mxu0 0.0
    %908 = vmatpush.msra.mxu0 0.0
    %909 = vmatpush.msra.mxu0 %v889
    %910 = vmatmul.f32.gmra.mxu0 %v892
    %v911 = vpop.f32.mrf.mxu0
    %v912 = vadd.f32 0.0, %v911
    %913 = vdwg.mxu0
    %914 = vrot.lane.b32.xlu0 %v405, 56
    %v915 = vpop.permute.xlu0 %914
    %v918 = vsel %vm410, %v835, 0
    %920 = vmatpush.msra.mxu0 0.0
    %921 = vmatpush.msra.mxu0 0.0
    %922 = vmatpush.msra.mxu0 0.0
    %923 = vmatpush.msra.mxu0 0.0
    %924 = vmatpush.msra.mxu0 0.0
    %925 = vmatpush.msra.mxu0 0.0
    %926 = vmatpush.msra.mxu0 0.0
    %927 = vmatpush.msra.mxu0 0.0
    %928 = vmatpush.msra.mxu0 0.0
    %929 = vmatpush.msra.mxu0 0.0
    %930 = vmatpush.msra.mxu0 0.0
    %931 = vmatpush.msra.mxu0 0.0
    %932 = vmatpush.msra.mxu0 0.0
    %933 = vmatpush.msra.mxu0 0.0
    %934 = vmatpush.msra.mxu0 0.0
    %935 = vmatpush.msra.mxu0 %v915
    %936 = vmatmul.f32.gmra.mxu0 %v918
    %v937 = vpop.f32.mrf.mxu0
    %v938 = vadd.f32 0.0, %v937
    %939 = vdwg.mxu0
    %940 = vrot.lane.b32.xlu0 %v396, 112
    %v941 = vpop.permute.xlu0 %940
    %942 = vrot.lane.b32.xlu0 %v396, 80
    %v943 = vpop.permute.xlu0 %942
    %v944 = vsel %vm410, %v941, 0
    %v946 = vsel %vm410, %v943, 0
    %948 = vmatpush.xpose.msra.mxu0 0.0
    %949 = vmatpush.xpose.msra.mxu0 0.0
    %950 = vmatpush.xpose.msra.mxu0 0.0
    %951 = vmatpush.xpose.msra.mxu0 0.0
    %952 = vmatpush.xpose.msra.mxu0 0.0
    %953 = vmatpush.xpose.msra.mxu0 0.0
    %954 = vmatpush.xpose.msra.mxu0 0.0
    %955 = vmatpush.xpose.msra.mxu0 0.0
    %956 = vmatpush.xpose.msra.mxu0 0.0
    %957 = vmatpush.xpose.msra.mxu0 0.0
    %958 = vmatpush.xpose.msra.mxu0 0.0
    %959 = vmatpush.xpose.msra.mxu0 0.0
    %960 = vmatpush.xpose.msra.mxu0 0.0
    %961 = vmatpush.xpose.msra.mxu0 0.0
    %962 = vmatpush.xpose.msra.mxu0 0.0
    %963 = vmatpush.xpose.msra.mxu0 %v946
    %964 = vmatmul.f32.gmra.mxu0 %v944
    %v965 = vpop.f32.mrf.mxu0
    %v966 = vadd.f32 0.0, %v965
    %967 = vdwg.mxu0
    %968 = vrot.lane.b32.xlu0 %v399, 112
    %v969 = vpop.permute.xlu0 %968
    %970 = vrot.lane.b32.xlu0 %v399, 80
    %v971 = vpop.permute.xlu0 %970
    %v972 = vsel %vm410, %v969, 0
    %v974 = vsel %vm410, %v971, 0
    %976 = vmatpush.xpose.msra.mxu0 0.0
    %977 = vmatpush.xpose.msra.mxu0 0.0
    %978 = vmatpush.xpose.msra.mxu0 0.0
    %979 = vmatpush.xpose.msra.mxu0 0.0
    %980 = vmatpush.xpose.msra.mxu0 0.0
    %981 = vmatpush.xpose.msra.mxu0 0.0
    %982 = vmatpush.xpose.msra.mxu0 0.0
    %983 = vmatpush.xpose.msra.mxu0 0.0
    %984 = vmatpush.xpose.msra.mxu0 0.0
    %985 = vmatpush.xpose.msra.mxu0 0.0
    %986 = vmatpush.xpose.msra.mxu0 0.0
    %987 = vmatpush.xpose.msra.mxu0 0.0
    %988 = vmatpush.xpose.msra.mxu0 0.0
    %989 = vmatpush.xpose.msra.mxu0 0.0
    %990 = vmatpush.xpose.msra.mxu0 0.0
    %991 = vmatpush.xpose.msra.mxu0 %v974
    %992 = vmatmul.f32.gmra.mxu0 %v972
    %v993 = vpop.f32.mrf.mxu0
    %v994 = vadd.f32 0.0, %v993
    %995 = vdwg.mxu0
    %996 = vrot.lane.b32.xlu0 %v402, 112
    %v997 = vpop.permute.xlu0 %996
    %998 = vrot.lane.b32.xlu0 %v402, 80
    %v999 = vpop.permute.xlu0 %998
    %v1000 = vsel %vm410, %v997, 0
    %v1002 = vsel %vm410, %v999, 0
    %1004 = vmatpush.xpose.msra.mxu0 0.0
    %1005 = vmatpush.xpose.msra.mxu0 0.0
    %1006 = vmatpush.xpose.msra.mxu0 0.0
    %1007 = vmatpush.xpose.msra.mxu0 0.0
    %1008 = vmatpush.xpose.msra.mxu0 0.0
    %1009 = vmatpush.xpose.msra.mxu0 0.0
    %1010 = vmatpush.xpose.msra.mxu0 0.0
    %1011 = vmatpush.xpose.msra.mxu0 0.0
    %1012 = vmatpush.xpose.msra.mxu0 0.0
    %1013 = vmatpush.xpose.msra.mxu0 0.0
    %1014 = vmatpush.xpose.msra.mxu0 0.0
    %1015 = vmatpush.xpose.msra.mxu0 0.0
    %1016 = vmatpush.xpose.msra.mxu0 0.0
    %1017 = vmatpush.xpose.msra.mxu0 0.0
    %1018 = vmatpush.xpose.msra.mxu0 0.0
    %1019 = vmatpush.xpose.msra.mxu0 %v1002
    %1020 = vmatmul.f32.gmra.mxu0 %v1000
    %v1021 = vpop.f32.mrf.mxu0
    %v1022 = vadd.f32 0.0, %v1021
    %1023 = vdwg.mxu0
    %1024 = vrot.lane.b32.xlu0 %v405, 112
    %v1025 = vpop.permute.xlu0 %1024
    %1026 = vrot.lane.b32.xlu0 %v405, 80
    %v1027 = vpop.permute.xlu0 %1026
    %v1028 = vsel %vm410, %v1025, 0
    %v1030 = vsel %vm410, %v1027, 0
    %1032 = vmatpush.xpose.msra.mxu0 0.0
    %1033 = vmatpush.xpose.msra.mxu0 0.0
    %1034 = vmatpush.xpose.msra.mxu0 0.0
    %1035 = vmatpush.xpose.msra.mxu0 0.0
    %1036 = vmatpush.xpose.msra.mxu0 0.0
    %1037 = vmatpush.xpose.msra.mxu0 0.0
    %1038 = vmatpush.xpose.msra.mxu0 0.0
    %1039 = vmatpush.xpose.msra.mxu0 0.0
    %1040 = vmatpush.xpose.msra.mxu0 0.0
    %1041 = vmatpush.xpose.msra.mxu0 0.0
    %1042 = vmatpush.xpose.msra.mxu0 0.0
    %1043 = vmatpush.xpose.msra.mxu0 0.0
    %1044 = vmatpush.xpose.msra.mxu0 0.0
    %1045 = vmatpush.xpose.msra.mxu0 0.0
    %1046 = vmatpush.xpose.msra.mxu0 0.0
    %1047 = vmatpush.xpose.msra.mxu0 %v1030
    %1048 = vmatmul.f32.gmra.mxu0 %v1028
    %v1049 = vpop.f32.mrf.mxu0
    %v1050 = vadd.f32 0.0, %v1049
    %1051 = vdwg.mxu0
    %v1052 = vmul.f32 %v966, 0.35355338
    %v1053 = vmul.f32 %v994, 0.35355338
    %v1054 = vmul.f32 %v1022, 0.35355338
    %v1055 = vmul.f32 %v1050, 0.35355338
    %v1056 = vadd.f32 %v1052, %v350
    %v1057 = vadd.f32 %v1053, %v351
    %v1058 = vadd.f32 %v1054, %v352
    %v1059 = vadd.f32 %v1055, %v353
    %v1060 = vsel %vm410, %v1056, -inf
    %1061 = vmax.xlane.f32.xlu0 %v1060
    %v1062 = vpop.xlane.xlu0 %1061
    %v1063 = vsel %vm410, %v1057, -inf
    %1064 = vmax.xlane.f32.xlu0 %v1063
    %v1065 = vpop.xlane.xlu0 %1064
    %v1066 = vsel %vm410, %v1058, -inf
    %1067 = vmax.xlane.f32.xlu0 %v1066
    %v1068 = vpop.xlane.xlu0 %1067
    %v1069 = vsel %vm410, %v1059, -inf
    %1070 = vmax.xlane.f32.xlu0 %v1069
    %v1071 = vpop.xlane.xlu0 %1070
    %v1072 = vsub.f32 %v1056, %v1062
    %v1073 = vsub.f32 %v1057, %v1065
    %v1074 = vsub.f32 %v1058, %v1068
    %v1075 = vsub.f32 %v1059, %v1071
    %v1076 = vmul.f32 %v1072, 1.442695
    %v1077 = vpow.pop %v1076
    %v1078 = vmul.f32 %v1073, 1.442695
    %v1079 = vpow.pop %v1078
    %v1080 = vmul.f32 %v1074, 1.442695
    %v1081 = vpow.pop %v1080
    %v1082 = vmul.f32 %v1075, 1.442695
    %v1083 = vpow.pop %v1082
    %v1084 = vsel %vm410, %v1077, 0.0
    %1085 = vadd.xlane.f32.xlu0 %v1084
    %v1086 = vpop.xlane.xlu0 %1085
    %v1087 = vsel %vm410, %v1079, 0.0
    %1088 = vadd.xlane.f32.xlu0 %v1087
    %v1089 = vpop.xlane.xlu0 %1088
    %v1090 = vsel %vm410, %v1081, 0.0
    %1091 = vadd.xlane.f32.xlu0 %v1090
    %v1092 = vpop.xlane.xlu0 %1091
    %v1093 = vsel %vm410, %v1083, 0.0
    %1094 = vadd.xlane.f32.xlu0 %v1093
    %v1095 = vpop.xlane.xlu0 %1094
    %v1096 = vrcp.pop %v1086
    %v1097 = vrcp.pop %v1089
    %v1098 = vrcp.pop %v1092
    %v1099 = vrcp.pop %v1095
    %v1100 = vmul.f32 %v1077, %v1096
    %v1101 = vmul.f32 %v1079, %v1097
    %v1102 = vmul.f32 %v1081, %v1098
    %v1103 = vmul.f32 %v1083, %v1099
    %1104 = vrot.lane.b32.xlu0 %v396, 48
    %v1105 = vpop.permute.xlu0 %1104
    %v1108 = vsel %vm410, %v1100, 0
    %1110 = vmatpush.msra.mxu0 0.0
    %1111 = vmatpush.msra.mxu0 0.0
    %1112 = vmatpush.msra.mxu0 0.0
    %1113 = vmatpush.msra.mxu0 0.0
    %1114 = vmatpush.msra.mxu0 0.0
    %1115 = vmatpush.msra.mxu0 0.0
    %1116 = vmatpush.msra.mxu0 0.0
    %1117 = vmatpush.msra.mxu0 0.0
    %1118 = vmatpush.msra.mxu0 0.0
    %1119 = vmatpush.msra.mxu0 0.0
    %1120 = vmatpush.msra.mxu0 0.0
    %1121 = vmatpush.msra.mxu0 0.0
    %1122 = vmatpush.msra.mxu0 0.0
    %1123 = vmatpush.msra.mxu0 0.0
    %1124 = vmatpush.msra.mxu0 0.0
    %1125 = vmatpush.msra.mxu0 %v1105
    %1126 = vmatmul.f32.gmra.mxu0 %v1108
    %v1127 = vpop.f32.mrf.mxu0
    %v1128 = vadd.f32 0.0, %v1127
    %1129 = vdwg.mxu0
    %1130 = vrot.lane.b32.xlu0 %v399, 48
    %v1131 = vpop.permute.xlu0 %1130
    %v1134 = vsel %vm410, %v1101, 0
    %1136 = vmatpush.msra.mxu0 0.0
    %1137 = vmatpush.msra.mxu0 0.0
    %1138 = vmatpush.msra.mxu0 0.0
    %1139 = vmatpush.msra.mxu0 0.0
    %1140 = vmatpush.msra.mxu0 0.0
    %1141 = vmatpush.msra.mxu0 0.0
    %1142 = vmatpush.msra.mxu0 0.0
    %1143 = vmatpush.msra.mxu0 0.0
    %1144 = vmatpush.msra.mxu0 0.0
    %1145 = vmatpush.msra.mxu0 0.0
    %1146 = vmatpush.msra.mxu0 0.0
    %1147 = vmatpush.msra.mxu0 0.0
    %1148 = vmatpush.msra.mxu0 0.0
    %1149 = vmatpush.msra.mxu0 0.0
    %1150 = vmatpush.msra.mxu0 0.0
    %1151 = vmatpush.msra.mxu0 %v1131
    %1152 = vmatmul.f32.gmra.mxu0 %v1134
    %v1153 = vpop.f32.mrf.mxu0
    %v1154 = vadd.f32 0.0, %v1153
    %1155 = vdwg.mxu0
    %1156 = vrot.lane.b32.xlu0 %v402, 48
    %v1157 = vpop.permute.xlu0 %1156
    %v1160 = vsel %vm410, %v1102, 0
    %1162 = vmatpush.msra.mxu0 0.0
    %1163 = vmatpush.msra.mxu0 0.0
    %1164 = vmatpush.msra.mxu0 0.0
    %1165 = vmatpush.msra.mxu0 0.0
    %1166 = vmatpush.msra.mxu0 0.0
    %1167 = vmatpush.msra.mxu0 0.0
    %1168 = vmatpush.msra.mxu0 0.0
    %1169 = vmatpush.msra.mxu0 0.0
    %1170 = vmatpush.msra.mxu0 0.0
    %1171 = vmatpush.msra.mxu0 0.0
    %1172 = vmatpush.msra.mxu0 0.0
    %1173 = vmatpush.msra.mxu0 0.0
    %1174 = vmatpush.msra.mxu0 0.0
    %1175 = vmatpush.msra.mxu0 0.0
    %1176 = vmatpush.msra.mxu0 0.0
    %1177 = vmatpush.msra.mxu0 %v1157
    %1178 = vmatmul.f32.gmra.mxu0 %v1160
    %v1179 = vpop.f32.mrf.mxu0
    %v1180 = vadd.f32 0.0, %v1179
    %1181 = vdwg.mxu0
    %1182 = vrot.lane.b32.xlu0 %v405, 48
    %v1183 = vpop.permute.xlu0 %1182
    %v1186 = vsel %vm410, %v1103, 0
    %1188 = vmatpush.msra.mxu0 0.0
    %1189 = vmatpush.msra.mxu0 0.0
    %1190 = vmatpush.msra.mxu0 0.0
    %1191 = vmatpush.msra.mxu0 0.0
    %1192 = vmatpush.msra.mxu0 0.0
    %1193 = vmatpush.msra.mxu0 0.0
    %1194 = vmatpush.msra.mxu0 0.0
    %1195 = vmatpush.msra.mxu0 0.0
    %1196 = vmatpush.msra.mxu0 0.0
    %1197 = vmatpush.msra.mxu0 0.0
    %1198 = vmatpush.msra.mxu0 0.0
    %1199 = vmatpush.msra.mxu0 0.0
    %1200 = vmatpush.msra.mxu0 0.0
    %1201 = vmatpush.msra.mxu0 0.0
    %1202 = vmatpush.msra.mxu0 0.0
    %1203 = vmatpush.msra.mxu0 %v1183
    %1204 = vmatmul.f32.gmra.mxu0 %v1186
    %v1205 = vpop.f32.mrf.mxu0
    %v1206 = vadd.f32 0.0, %v1205
    %1207 = vdwg.mxu0
    %1208 = vrot.lane.b32.xlu0 %v396, 104
    %v1209 = vpop.permute.xlu0 %1208
    %1210 = vrot.lane.b32.xlu0 %v396, 72
    %v1211 = vpop.permute.xlu0 %1210
    %v1212 = vsel %vm410, %v1209, 0
    %v1214 = vsel %vm410, %v1211, 0
    %1216 = vmatpush.xpose.msra.mxu0 0.0
    %1217 = vmatpush.xpose.msra.mxu0 0.0
    %1218 = vmatpush.xpose.msra.mxu0 0.0
    %1219 = vmatpush.xpose.msra.mxu0 0.0
    %1220 = vmatpush.xpose.msra.mxu0 0.0
    %1221 = vmatpush.xpose.msra.mxu0 0.0
    %1222 = vmatpush.xpose.msra.mxu0 0.0
    %1223 = vmatpush.xpose.msra.mxu0 0.0
    %1224 = vmatpush.xpose.msra.mxu0 0.0
    %1225 = vmatpush.xpose.msra.mxu0 0.0
    %1226 = vmatpush.xpose.msra.mxu0 0.0
    %1227 = vmatpush.xpose.msra.mxu0 0.0
    %1228 = vmatpush.xpose.msra.mxu0 0.0
    %1229 = vmatpush.xpose.msra.mxu0 0.0
    %1230 = vmatpush.xpose.msra.mxu0 0.0
    %1231 = vmatpush.xpose.msra.mxu0 %v1214
    %1232 = vmatmul.f32.gmra.mxu0 %v1212
    %v1233 = vpop.f32.mrf.mxu0
    %v1234 = vadd.f32 0.0, %v1233
    %1235 = vdwg.mxu0
    %1236 = vrot.lane.b32.xlu0 %v399, 104
    %v1237 = vpop.permute.xlu0 %1236
    %1238 = vrot.lane.b32.xlu0 %v399, 72
    %v1239 = vpop.permute.xlu0 %1238
    %v1240 = vsel %vm410, %v1237, 0
    %v1242 = vsel %vm410, %v1239, 0
    %1244 = vmatpush.xpose.msra.mxu0 0.0
    %1245 = vmatpush.xpose.msra.mxu0 0.0
    %1246 = vmatpush.xpose.msra.mxu0 0.0
    %1247 = vmatpush.xpose.msra.mxu0 0.0
    %1248 = vmatpush.xpose.msra.mxu0 0.0
    %1249 = vmatpush.xpose.msra.mxu0 0.0
    %1250 = vmatpush.xpose.msra.mxu0 0.0
    %1251 = vmatpush.xpose.msra.mxu0 0.0
    %1252 = vmatpush.xpose.msra.mxu0 0.0
    %1253 = vmatpush.xpose.msra.mxu0 0.0
    %1254 = vmatpush.xpose.msra.mxu0 0.0
    %1255 = vmatpush.xpose.msra.mxu0 0.0
    %1256 = vmatpush.xpose.msra.mxu0 0.0
    %1257 = vmatpush.xpose.msra.mxu0 0.0
    %1258 = vmatpush.xpose.msra.mxu0 0.0
    %1259 = vmatpush.xpose.msra.mxu0 %v1242
    %1260 = vmatmul.f32.gmra.mxu0 %v1240
    %v1261 = vpop.f32.mrf.mxu0
    %v1262 = vadd.f32 0.0, %v1261
    %1263 = vdwg.mxu0
    %1264 = vrot.lane.b32.xlu0 %v402, 104
    %v1265 = vpop.permute.xlu0 %1264
    %1266 = vrot.lane.b32.xlu0 %v402, 72
    %v1267 = vpop.permute.xlu0 %1266
    %v1268 = vsel %vm410, %v1265, 0
    %v1270 = vsel %vm410, %v1267, 0
    %1272 = vmatpush.xpose.msra.mxu0 0.0
    %1273 = vmatpush.xpose.msra.mxu0 0.0
    %1274 = vmatpush.xpose.msra.mxu0 0.0
    %1275 = vmatpush.xpose.msra.mxu0 0.0
    %1276 = vmatpush.xpose.msra.mxu0 0.0
    %1277 = vmatpush.xpose.msra.mxu0 0.0
    %1278 = vmatpush.xpose.msra.mxu0 0.0
    %1279 = vmatpush.xpose.msra.mxu0 0.0
    %1280 = vmatpush.xpose.msra.mxu0 0.0
    %1281 = vmatpush.xpose.msra.mxu0 0.0
    %1282 = vmatpush.xpose.msra.mxu0 0.0
    %1283 = vmatpush.xpose.msra.mxu0 0.0
    %1284 = vmatpush.xpose.msra.mxu0 0.0
    %1285 = vmatpush.xpose.msra.mxu0 0.0
    %1286 = vmatpush.xpose.msra.mxu0 0.0
    %1287 = vmatpush.xpose.msra.mxu0 %v1270
    %1288 = vmatmul.f32.gmra.mxu0 %v1268
    %v1289 = vpop.f32.mrf.mxu0
    %v1290 = vadd.f32 0.0, %v1289
    %1291 = vdwg.mxu0
    %1292 = vrot.lane.b32.xlu0 %v405, 104
    %v1293 = vpop.permute.xlu0 %1292
    %1294 = vrot.lane.b32.xlu0 %v405, 72
    %v1295 = vpop.permute.xlu0 %1294
    %v1296 = vsel %vm410, %v1293, 0
    %v1298 = vsel %vm410, %v1295, 0
    %1300 = vmatpush.xpose.msra.mxu0 0.0
    %1301 = vmatpush.xpose.msra.mxu0 0.0
    %1302 = vmatpush.xpose.msra.mxu0 0.0
    %1303 = vmatpush.xpose.msra.mxu0 0.0
    %1304 = vmatpush.xpose.msra.mxu0 0.0
    %1305 = vmatpush.xpose.msra.mxu0 0.0
    %1306 = vmatpush.xpose.msra.mxu0 0.0
    %1307 = vmatpush.xpose.msra.mxu0 0.0
    %1308 = vmatpush.xpose.msra.mxu0 0.0
    %1309 = vmatpush.xpose.msra.mxu0 0.0
    %1310 = vmatpush.xpose.msra.mxu0 0.0
    %1311 = vmatpush.xpose.msra.mxu0 0.0
    %1312 = vmatpush.xpose.msra.mxu0 0.0
    %1313 = vmatpush.xpose.msra.mxu0 0.0
    %1314 = vmatpush.xpose.msra.mxu0 0.0
    %1315 = vmatpush.xpose.msra.mxu0 %v1298
    %1316 = vmatmul.f32.gmra.mxu0 %v1296
    %v1317 = vpop.f32.mrf.mxu0
    %v1318 = vadd.f32 0.0, %v1317
    %1319 = vdwg.mxu0
    %v1320 = vmul.f32 %v1234, 0.35355338
    %v1321 = vmul.f32 %v1262, 0.35355338
    %v1322 = vmul.f32 %v1290, 0.35355338
    %v1323 = vmul.f32 %v1318, 0.35355338
    %v1324 = vadd.f32 %v1320, %v350
    %v1325 = vadd.f32 %v1321, %v351
    %v1326 = vadd.f32 %v1322, %v352
    %v1327 = vadd.f32 %v1323, %v353
    %v1328 = vsel %vm410, %v1324, -inf
    %1329 = vmax.xlane.f32.xlu0 %v1328
    %v1330 = vpop.xlane.xlu0 %1329
    %v1331 = vsel %vm410, %v1325, -inf
    %1332 = vmax.xlane.f32.xlu0 %v1331
    %v1333 = vpop.xlane.xlu0 %1332
    %v1334 = vsel %vm410, %v1326, -inf
    %1335 = vmax.xlane.f32.xlu0 %v1334
    %v1336 = vpop.xlane.xlu0 %1335
    %v1337 = vsel %vm410, %v1327, -inf
    %1338 = vmax.xlane.f32.xlu0 %v1337
    %v1339 = vpop.xlane.xlu0 %1338
    %v1340 = vsub.f32 %v1324, %v1330
    %v1341 = vsub.f32 %v1325, %v1333
    %v1342 = vsub.f32 %v1326, %v1336
    %v1343 = vsub.f32 %v1327, %v1339
    %v1344 = vmul.f32 %v1340, 1.442695
    %v1345 = vpow.pop %v1344
    %v1346 = vmul.f32 %v1341, 1.442695
    %v1347 = vpow.pop %v1346
    %v1348 = vmul.f32 %v1342, 1.442695
    %v1349 = vpow.pop %v1348
    %v1350 = vmul.f32 %v1343, 1.442695
    %v1351 = vpow.pop %v1350
    %v1352 = vsel %vm410, %v1345, 0.0
    %1353 = vadd.xlane.f32.xlu0 %v1352
    %v1354 = vpop.xlane.xlu0 %1353
    %v1355 = vsel %vm410, %v1347, 0.0
    %1356 = vadd.xlane.f32.xlu0 %v1355
    %v1357 = vpop.xlane.xlu0 %1356
    %v1358 = vsel %vm410, %v1349, 0.0
    %1359 = vadd.xlane.f32.xlu0 %v1358
    %v1360 = vpop.xlane.xlu0 %1359
    %v1361 = vsel %vm410, %v1351, 0.0
    %1362 = vadd.xlane.f32.xlu0 %v1361
    %v1363 = vpop.xlane.xlu0 %1362
    %v1364 = vrcp.pop %v1354
    %v1365 = vrcp.pop %v1357
    %v1366 = vrcp.pop %v1360
    %v1367 = vrcp.pop %v1363
    %v1368 = vmul.f32 %v1345, %v1364
    %v1369 = vmul.f32 %v1347, %v1365
    %v1370 = vmul.f32 %v1349, %v1366
    %v1371 = vmul.f32 %v1351, %v1367
    %1372 = vrot.lane.b32.xlu0 %v396, 40
    %v1373 = vpop.permute.xlu0 %1372
    %v1376 = vsel %vm410, %v1368, 0
    %1378 = vmatpush.msra.mxu0 0.0
    %1379 = vmatpush.msra.mxu0 0.0
    %1380 = vmatpush.msra.mxu0 0.0
    %1381 = vmatpush.msra.mxu0 0.0
    %1382 = vmatpush.msra.mxu0 0.0
    %1383 = vmatpush.msra.mxu0 0.0
    %1384 = vmatpush.msra.mxu0 0.0
    %1385 = vmatpush.msra.mxu0 0.0
    %1386 = vmatpush.msra.mxu0 0.0
    %1387 = vmatpush.msra.mxu0 0.0
    %1388 = vmatpush.msra.mxu0 0.0
    %1389 = vmatpush.msra.mxu0 0.0
    %1390 = vmatpush.msra.mxu0 0.0
    %1391 = vmatpush.msra.mxu0 0.0
    %1392 = vmatpush.msra.mxu0 0.0
    %1393 = vmatpush.msra.mxu0 %v1373
    %1394 = vmatmul.f32.gmra.mxu0 %v1376
    %v1395 = vpop.f32.mrf.mxu0
    %v1396 = vadd.f32 0.0, %v1395
    %1397 = vdwg.mxu0
    %1398 = vrot.lane.b32.xlu0 %v399, 40
    %v1399 = vpop.permute.xlu0 %1398
    %v1402 = vsel %vm410, %v1369, 0
    %1404 = vmatpush.msra.mxu0 0.0
    %1405 = vmatpush.msra.mxu0 0.0
    %1406 = vmatpush.msra.mxu0 0.0
    %1407 = vmatpush.msra.mxu0 0.0
    %1408 = vmatpush.msra.mxu0 0.0
    %1409 = vmatpush.msra.mxu0 0.0
    %1410 = vmatpush.msra.mxu0 0.0
    %1411 = vmatpush.msra.mxu0 0.0
    %1412 = vmatpush.msra.mxu0 0.0
    %1413 = vmatpush.msra.mxu0 0.0
    %1414 = vmatpush.msra.mxu0 0.0
    %1415 = vmatpush.msra.mxu0 0.0
    %1416 = vmatpush.msra.mxu0 0.0
    %1417 = vmatpush.msra.mxu0 0.0
    %1418 = vmatpush.msra.mxu0 0.0
    %1419 = vmatpush.msra.mxu0 %v1399
    %1420 = vmatmul.f32.gmra.mxu0 %v1402
    %v1421 = vpop.f32.mrf.mxu0
    %v1422 = vadd.f32 0.0, %v1421
    %1423 = vdwg.mxu0
    %1424 = vrot.lane.b32.xlu0 %v402, 40
    %v1425 = vpop.permute.xlu0 %1424
    %v1428 = vsel %vm410, %v1370, 0
    %1430 = vmatpush.msra.mxu0 0.0
    %1431 = vmatpush.msra.mxu0 0.0
    %1432 = vmatpush.msra.mxu0 0.0
    %1433 = vmatpush.msra.mxu0 0.0
    %1434 = vmatpush.msra.mxu0 0.0
    %1435 = vmatpush.msra.mxu0 0.0
    %1436 = vmatpush.msra.mxu0 0.0
    %1437 = vmatpush.msra.mxu0 0.0
    %1438 = vmatpush.msra.mxu0 0.0
    %1439 = vmatpush.msra.mxu0 0.0
    %1440 = vmatpush.msra.mxu0 0.0
    %1441 = vmatpush.msra.mxu0 0.0
    %1442 = vmatpush.msra.mxu0 0.0
    %1443 = vmatpush.msra.mxu0 0.0
    %1444 = vmatpush.msra.mxu0 0.0
    %1445 = vmatpush.msra.mxu0 %v1425
    %1446 = vmatmul.f32.gmra.mxu0 %v1428
    %v1447 = vpop.f32.mrf.mxu0
    %v1448 = vadd.f32 0.0, %v1447
    %1449 = vdwg.mxu0
    %1450 = vrot.lane.b32.xlu0 %v405, 40
    %v1451 = vpop.permute.xlu0 %1450
    %v1454 = vsel %vm410, %v1371, 0
    %1456 = vmatpush.msra.mxu0 0.0
    %1457 = vmatpush.msra.mxu0 0.0
    %1458 = vmatpush.msra.mxu0 0.0
    %1459 = vmatpush.msra.mxu0 0.0
    %1460 = vmatpush.msra.mxu0 0.0
    %1461 = vmatpush.msra.mxu0 0.0
    %1462 = vmatpush.msra.mxu0 0.0
    %1463 = vmatpush.msra.mxu0 0.0
    %1464 = vmatpush.msra.mxu0 0.0
    %1465 = vmatpush.msra.mxu0 0.0
    %1466 = vmatpush.msra.mxu0 0.0
    %1467 = vmatpush.msra.mxu0 0.0
    %1468 = vmatpush.msra.mxu0 0.0
    %1469 = vmatpush.msra.mxu0 0.0
    %1470 = vmatpush.msra.mxu0 0.0
    %1471 = vmatpush.msra.mxu0 %v1451
    %1472 = vmatmul.f32.gmra.mxu0 %v1454
    %v1473 = vpop.f32.mrf.mxu0
    %v1474 = vadd.f32 0.0, %v1473
    %1475 = vdwg.mxu0
    %1480 = vrot.lane.b32.xlu0 %v860, 8
    %v1481 = vpop.permute.xlu0 %1480
    %1482 = vrot.lane.b32.xlu0 %v886, 8
    %v1483 = vpop.permute.xlu0 %1482
    %1484 = vrot.lane.b32.xlu0 %v912, 8
    %v1485 = vpop.permute.xlu0 %1484
    %1486 = vrot.lane.b32.xlu0 %v938, 8
    %v1487 = vpop.permute.xlu0 %1486
    %1496 = vrot.lane.b32.xlu0 %v1128, 16
    %v1497 = vpop.permute.xlu0 %1496
    %1498 = vrot.lane.b32.xlu0 %v1154, 16
    %v1499 = vpop.permute.xlu0 %1498
    %1500 = vrot.lane.b32.xlu0 %v1180, 16
    %v1501 = vpop.permute.xlu0 %1500
    %1502 = vrot.lane.b32.xlu0 %v1206, 16
    %v1503 = vpop.permute.xlu0 %1502
    %1512 = vrot.lane.b32.xlu0 %v1396, 24
    %v1513 = vpop.permute.xlu0 %1512
    %1514 = vrot.lane.b32.xlu0 %v1422, 24
    %v1515 = vpop.permute.xlu0 %1514
    %1516 = vrot.lane.b32.xlu0 %v1448, 24
    %v1517 = vpop.permute.xlu0 %1516
    %1518 = vrot.lane.b32.xlu0 %v1474, 24
    %v1519 = vpop.permute.xlu0 %1518
    %v1524 = vsel %vm410, %v592, %v1481
    %v1525 = vsel %vm410, %v618, %v1483
    %v1526 = vsel %vm410, %v644, %v1485
    %v1527 = vsel %vm410, %v670, %v1487
    %v1528 = vsel %vm159, %v1524, %v1497
    %v1529 = vsel %vm159, %v1525, %v1499
    %v1530 = vsel %vm159, %v1526, %v1501
    %v1531 = vsel %vm159, %v1527, %v1503
    %vm1532 = vcmask 195584
    %v1533 = vsel %vm1532, %v1528, %v1513
    %v1534 = vsel %vm1532, %v1529, %v1515
    %v1535 = vsel %vm1532, %v1530, %v1517
    %v1536 = vsel %vm1532, %v1531, %v1519
    %v1537 = vld [vmem:[%s8] sm:$0xff]
    %v1538 = vld [vmem:[%s8 + $0x8] sm:$0xff]
    %v1539 = vld [vmem:[%s8 + $0x10] sm:$0xff]
    %v1540 = vld [vmem:[%s8 + $0x18] sm:$0xff]
    %v1541 = vld [vmem:[%s9] sm:$0x1]
    %v1543 = vperm.slane %v1541, 0
    %v1546 = vsel %vm232, %v1533, 0
    %v1549 = vsel %vm232, %v1534, 0
    %v1552 = vsel %vm232, %v1535, 0
    %v1555 = vsel %vm232, %v1536, 0
    %1557 = vmatpush.msra.mxu0 0.0
    %1558 = vmatpush.msra.mxu0 0.0
    %1559 = vmatpush.msra.mxu0 0.0
    %1560 = vmatpush.msra.mxu0 0.0
    %1561 = vmatpush.msra.mxu0 0.0
    %1562 = vmatpush.msra.mxu0 0.0
    %1563 = vmatpush.msra.mxu0 0.0
    %1564 = vmatpush.msra.mxu0 0.0
    %1565 = vmatpush.msra.mxu0 0.0
    %1566 = vmatpush.msra.mxu0 0.0
    %1567 = vmatpush.msra.mxu0 0.0
    %1568 = vmatpush.msra.mxu0 0.0
    %1569 = vmatpush.msra.mxu0 %v1540
    %1570 = vmatpush.msra.mxu0 %v1539
    %1571 = vmatpush.msra.mxu0 %v1538
    %1572 = vmatpush.msra.mxu0 %v1537
    %1573 = vmatmul.f32.gmra.mxu0 %v1546
    %v1574 = vpop.f32.mrf.mxu0
    %v1575 = vadd.f32 %v1543, %v1574
    %1576 = vmatmul.f32.gmra.mxu0 %v1549
    %v1577 = vpop.f32.mrf.mxu0
    %v1578 = vadd.f32 %v1543, %v1577
    %1579 = vmatmul.f32.gmra.mxu0 %v1552
    %v1580 = vpop.f32.mrf.mxu0
    %v1581 = vadd.f32 %v1543, %v1580
    %1582 = vmatmul.f32.gmra.mxu0 %v1555
    %v1583 = vpop.f32.mrf.mxu0
    %v1584 = vadd.f32 %v1543, %v1583
    %1585 = vdwg.mxu0
    %v1586 = vadd.f32 %v338, %v1575
    %v1587 = vadd.f32 %v339, %v1578
    %v1588 = vadd.f32 %v340, %v1581
    %v1589 = vadd.f32 %v341, %v1584
    %v1590 = vld [vmem:[%s10] sm:$0x1]
    %v1591 = vld [vmem:[%s11] sm:$0x1]
    %v1592 = vsel %vm232, %v1586, 0.0
    %1593 = vadd.xlane.f32.xlu0 %v1592
    %v1594 = vpop.xlane.xlu0 %1593
    %v1595 = vsel %vm232, %v1587, 0.0
    %1596 = vadd.xlane.f32.xlu0 %v1595
    %v1597 = vpop.xlane.xlu0 %1596
    %v1598 = vsel %vm232, %v1588, 0.0
    %1599 = vadd.xlane.f32.xlu0 %v1598
    %v1600 = vpop.xlane.xlu0 %1599
    %v1601 = vsel %vm232, %v1589, 0.0
    %1602 = vadd.xlane.f32.xlu0 %v1601
    %v1603 = vpop.xlane.xlu0 %1602
    %v1604 = vmul.f32 %v1594, %v251
    %v1605 = vmul.f32 %v1597, %v251
    %v1606 = vmul.f32 %v1600, %v251
    %v1607 = vmul.f32 %v1603, %v251
    %v1608 = vsub.f32 %v1586, %v1604
    %v1609 = vsub.f32 %v1587, %v1605
    %v1610 = vsub.f32 %v1588, %v1606
    %v1611 = vsub.f32 %v1589, %v1607
    %v1612 = vmul.f32 %v1608, %v1608
    %v1613 = vmul.f32 %v1609, %v1609
    %v1614 = vmul.f32 %v1610, %v1610
    %v1615 = vmul.f32 %v1611, %v1611
    %v1616 = vsel %vm232, %v1612, 0.0
    %1617 = vadd.xlane.f32.xlu0 %v1616
    %v1618 = vpop.xlane.xlu0 %1617
    %v1619 = vsel %vm232, %v1613, 0.0
    %1620 = vadd.xlane.f32.xlu0 %v1619
    %v1621 = vpop.xlane.xlu0 %1620
    %v1622 = vsel %vm232, %v1614, 0.0
    %1623 = vadd.xlane.f32.xlu0 %v1622
    %v1624 = vpop.xlane.xlu0 %1623
    %v1625 = vsel %vm232, %v1615, 0.0
    %1626 = vadd.xlane.f32.xlu0 %v1625
    %v1627 = vpop.xlane.xlu0 %1626
    %v1628 = vmul.f32 %v1618, %v251
    %v1629 = vmul.f32 %v1621, %v251
    %v1630 = vmul.f32 %v1624, %v251
    %v1631 = vmul.f32 %v1627, %v251
    %v1632 = vadd.f32 %v1628, 1e-05
    %v1633 = vadd.f32 %v1629, 1e-05
    %v1634 = vadd.f32 %v1630, 1e-05
    %v1635 = vadd.f32 %v1631, 1e-05
    %v1636 = vrsqrt.pop %v1632
    %v1637 = vmul.f32 %v1636, %v1632
    %v1638 = vmul.f32 %v1637, %v1636
    %v1639 = vmul.f32 0.5, %v1638
    %v1640 = vsub.f32 1.5, %v1639
    %v1641 = vmul.f32 %v1636, %v1640
    %vm1642 = vweird.f32 %v1632
    %vm1643 = vweird.f32 %v1636
    %vm1644 = vmor %vm1642, %vm1643
    %v1645 = vsel %vm1644, %v1636, %v1641
    %v1646 = vrsqrt.pop %v1633
    %v1647 = vmul.f32 %v1646, %v1633
    %v1648 = vmul.f32 %v1647, %v1646
    %v1649 = vmul.f32 0.5, %v1648
    %v1650 = vsub.f32 1.5, %v1649
    %v1651 = vmul.f32 %v1646, %v1650
    %vm1652 = vweird.f32 %v1633
    %vm1653 = vweird.f32 %v1646
    %vm1654 = vmor %vm1652, %vm1653
    %v1655 = vsel %vm1654, %v1646, %v1651
    %v1656 = vrsqrt.pop %v1634
    %v1657 = vmul.f32 %v1656, %v1634
    %v1658 = vmul.f32 %v1657, %v1656
    %v1659 = vmul.f32 0.5, %v1658
    %v1660 = vsub.f32 1.5, %v1659
    %v1661 = vmul.f32 %v1656, %v1660
    %vm1662 = vweird.f32 %v1634
    %vm1663 = vweird.f32 %v1656
    %vm1664 = vmor %vm1662, %vm1663
    %v1665 = vsel %vm1664, %v1656, %v1661
    %v1666 = vrsqrt.pop %v1635
    %v1667 = vmul.f32 %v1666, %v1635
    %v1668 = vmul.f32 %v1667, %v1666
    %v1669 = vmul.f32 0.5, %v1668
    %v1670 = vsub.f32 1.5, %v1669
    %v1671 = vmul.f32 %v1666, %v1670
    %vm1672 = vweird.f32 %v1635
    %vm1673 = vweird.f32 %v1666
    %vm1674 = vmor %vm1672, %vm1673
    %v1675 = vsel %vm1674, %v1666, %v1671
    %v1676 = vmul.f32 %v1608, %v1645
    %v1677 = vmul.f32 %v1609, %v1655
    %v1678 = vmul.f32 %v1610, %v1665
    %v1679 = vmul.f32 %v1611, %v1675
    %v1681 = vperm.slane %v1590, 0
    %v1683 = vmul.f32 %v1676, %v1681
    %v1684 = vmul.f32 %v1677, %v1681
    %v1685 = vmul.f32 %v1678, %v1681
    %v1686 = vmul.f32 %v1679, %v1681
    %v1688 = vperm.slane %v1591, 0
    %v1690 = vadd.f32 %v1683, %v1688
    %v1691 = vadd.f32 %v1684, %v1688
    %v1692 = vadd.f32 %v1685, %v1688
    %v1693 = vadd.f32 %v1686, %v1688
    %v1694 = vld [vmem:[%s12] sm:$0xff]
    %v1695 = vld [vmem:[%s12 + $0x8] sm:$0xff]
    %v1696 = vld [vmem:[%s12 + $0x10] sm:$0xff]
    %v1697 = vld [vmem:[%s12 + $0x18] sm:$0xff]
    %v1698 = vld [vmem:[%s13] sm:$0x1]
    %v1700 = vperm.slane %v1698, 0
    %v1703 = vsel %vm232, %v1690, 0
    %v1706 = vsel %vm232, %v1691, 0
    %v1709 = vsel %vm232, %v1692, 0
    %v1712 = vsel %vm232, %v1693, 0
    %1714 = vmatpush.msra.mxu0 0.0
    %1715 = vmatpush.msra.mxu0 0.0
    %1716 = vmatpush.msra.mxu0 0.0
    %1717 = vmatpush.msra.mxu0 0.0
    %1718 = vmatpush.msra.mxu0 0.0
    %1719 = vmatpush.msra.mxu0 0.0
    %1720 = vmatpush.msra.mxu0 0.0
    %1721 = vmatpush.msra.mxu0 0.0
    %1722 = vmatpush.msra.mxu0 0.0
    %1723 = vmatpush.msra.mxu0 0.0
    %1724 = vmatpush.msra.mxu0 0.0
    %1725 = vmatpush.msra.mxu0 0.0
    %1726 = vmatpush.msra.mxu0 %v1697
    %1727 = vmatpush.msra.mxu0 %v1696
    %1728 = vmatpush.msra.mxu0 %v1695
    %1729 = vmatpush.msra.mxu0 %v1694
    %1730 = vmatmul.f32.gmra.mxu0 %v1703
    %v1731 = vpop.f32.mrf.mxu0
    %v1732 = vadd.f32 %v1700, %v1731
    %1733 = vmatmul.f32.gmra.mxu0 %v1706
    %v1734 = vpop.f32.mrf.mxu0
    %v1735 = vadd.f32 %v1700, %v1734
    %1736 = vmatmul.f32.gmra.mxu0 %v1709
    %v1737 = vpop.f32.mrf.mxu0
    %v1738 = vadd.f32 %v1700, %v1737
    %1739 = vmatmul.f32.gmra.mxu0 %v1712
    %v1740 = vpop.f32.mrf.mxu0
    %v1741 = vadd.f32 %v1700, %v1740
    %1742 = vdwg.mxu0
    %v1743 = vmax.f32 %v1732, 0.0
    %v1744 = vmax.f32 %v1735, 0.0
    %v1745 = vmax.f32 %v1738, 0.0
    %v1746 = vmax.f32 %v1741, 0.0
    %v1747 = vld [vmem:[%s14] sm:$0xff]
    %v1748 = vld [vmem:[%s14 + $0x8] sm:$0xff]
    %v1749 = vld [vmem:[%s14 + $0x10] sm:$0xff]
    %v1750 = vld [vmem:[%s14 + $0x18] sm:$0xff]
    %v1751 = vld [vmem:[%s14 + $0x20] sm:$0xff]
    %v1752 = vld [vmem:[%s14 + $0x28] sm:$0xff]
    %v1753 = vld [vmem:[%s14 + $0x30] sm:$0xff]
    %v1754 = vld [vmem:[%s14 + $0x38] sm:$0xff]
    %v1755 = vld [vmem:[%s14 + $0x40] sm:$0xff]
    %v1756 = vld [vmem:[%s14 + $0x48] sm:$0xff]
    %v1757 = vld [vmem:[%s14 + $0x50] sm:$0xff]
    %v1758 = vld [vmem:[%s14 + $0x58] sm:$0xff]
    %v1759 = vld [vmem:[%s14 + $0x60] sm:$0xff]
    %v1760 = vld [vmem:[%s14 + $0x68] sm:$0xff]
    %v1761 = vld [vmem:[%s14 + $0x70] sm:$0xff]
    %v1762 = vld [vmem:[%s14 + $0x78] sm:$0xff]
    %v1763 = vld [vmem:[%s15] sm:$0x1]
    %v1765 = vperm.slane %v1763, 0
    %1767 = vmatpush.msra.mxu0 %v1762
    %1768 = vmatpush.msra.mxu0 %v1761
    %1769 = vmatpush.msra.mxu0 %v1760
    %1770 = vmatpush.msra.mxu0 %v1759
    %1771 = vmatpush.msra.mxu0 %v1758
    %1772 = vmatpush.msra.mxu0 %v1757
    %1773 = vmatpush.msra.mxu0 %v1756
    %1774 = vmatpush.msra.mxu0 %v1755
    %1775 = vmatpush.msra.mxu0 %v1754
    %1776 = vmatpush.msra.mxu0 %v1753
    %1777 = vmatpush.msra.mxu0 %v1752
    %1778 = vmatpush.msra.mxu0 %v1751
    %1779 = vmatpush.msra.mxu0 %v1750
    %1780 = vmatpush.msra.mxu0 %v1749
    %1781 = vmatpush.msra.mxu0 %v1748
    %1782 = vmatpush.msra.mxu0 %v1747
    %1783 = vmatmul.f32.gmra.mxu0 %v1743
    %v1784 = vpop.f32.mrf.mxu0
    %v1785 = vadd.f32 %v1765, %v1784
    %1786 = vmatmul.f32.gmra.mxu0 %v1744
    %v1787 = vpop.f32.mrf.mxu0
    %v1788 = vadd.f32 %v1765, %v1787
    %1789 = vmatmul.f32.gmra.mxu0 %v1745
    %v1790 = vpop.f32.mrf.mxu0
    %v1791 = vadd.f32 %v1765, %v1790
    %1792 = vmatmul.f32.gmra.mxu0 %v1746
    %v1793 = vpop.f32.mrf.mxu0
    %v1794 = vadd.f32 %v1765, %v1793
    %1795 = vdwg.mxu0
    %v1796 = vadd.f32 %v1690, %v1785
    %v1797 = vadd.f32 %v1691, %v1788
    %v1798 = vadd.f32 %v1692, %v1791
    %v1799 = vadd.f32 %v1693, %v1794
    %v1800 = vld [vmem:[%s16] sm:$0x1]
    %v1801 = vld [vmem:[%s17] sm:$0x1]
    %v1802 = vsel %vm232, %v1796, 0.0
    %1803 = vadd.xlane.f32.xlu0 %v1802
    %v1804 = vpop.xlane.xlu0 %1803
    %v1805 = vsel %vm232, %v1797, 0.0
    %1806 = vadd.xlane.f32.xlu0 %v1805
    %v1807 = vpop.xlane.xlu0 %1806
    %v1808 = vsel %vm232, %v1798, 0.0
    %1809 = vadd.xlane.f32.xlu0 %v1808
    %v1810 = vpop.xlane.xlu0 %1809
    %v1811 = vsel %vm232, %v1799, 0.0
    %1812 = vadd.xlane.f32.xlu0 %v1811
    %v1813 = vpop.xlane.xlu0 %1812
    %v1814 = vmul.f32 %v1804, %v251
    %v1815 = vmul.f32 %v1807, %v251
    %v1816 = vmul.f32 %v1810, %v251
    %v1817 = vmul.f32 %v1813, %v251
    %v1818 = vsub.f32 %v1796, %v1814
    %v1819 = vsub.f32 %v1797, %v1815
    %v1820 = vsub.f32 %v1798, %v1816
    %v1821 = vsub.f32 %v1799, %v1817
    %v1822 = vmul.f32 %v1818, %v1818
    %v1823 = vmul.f32 %v1819, %v1819
    %v1824 = vmul.f32 %v1820, %v1820
    %v1825 = vmul.f32 %v1821, %v1821
    %v1826 = vsel %vm232, %v1822, 0.0
    %1827 = vadd.xlane.f32.xlu0 %v1826
    %v1828 = vpop.xlane.xlu0 %1827
    %v1829 = vsel %vm232, %v1823, 0.0
    %1830 = vadd.xlane.f32.xlu0 %v1829
    %v1831 = vpop.xlane.xlu0 %1830
    %v1832 = vsel %vm232, %v1824, 0.0
    %1833 = vadd.xlane.f32.xlu0 %v1832
    %v1834 = vpop.xlane.xlu0 %1833
    %v1835 = vsel %vm232, %v1825, 0.0
    %1836 = vadd.xlane.f32.xlu0 %v1835
    %v1837 = vpop.xlane.xlu0 %1836
    %v1838 = vmul.f32 %v1828, %v251
    %v1839 = vmul.f32 %v1831, %v251
    %v1840 = vmul.f32 %v1834, %v251
    %v1841 = vmul.f32 %v1837, %v251
    %v1842 = vadd.f32 %v1838, 1e-05
    %v1843 = vadd.f32 %v1839, 1e-05
    %v1844 = vadd.f32 %v1840, 1e-05
    %v1845 = vadd.f32 %v1841, 1e-05
    %v1846 = vrsqrt.pop %v1842
    %v1847 = vmul.f32 %v1846, %v1842
    %v1848 = vmul.f32 %v1847, %v1846
    %v1849 = vmul.f32 0.5, %v1848
    %v1850 = vsub.f32 1.5, %v1849
    %v1851 = vmul.f32 %v1846, %v1850
    %vm1852 = vweird.f32 %v1842
    %vm1853 = vweird.f32 %v1846
    %vm1854 = vmor %vm1852, %vm1853
    %v1855 = vsel %vm1854, %v1846, %v1851
    %v1856 = vrsqrt.pop %v1843
    %v1857 = vmul.f32 %v1856, %v1843
    %v1858 = vmul.f32 %v1857, %v1856
    %v1859 = vmul.f32 0.5, %v1858
    %v1860 = vsub.f32 1.5, %v1859
    %v1861 = vmul.f32 %v1856, %v1860
    %vm1862 = vweird.f32 %v1843
    %vm1863 = vweird.f32 %v1856
    %vm1864 = vmor %vm1862, %vm1863
    %v1865 = vsel %vm1864, %v1856, %v1861
    %v1866 = vrsqrt.pop %v1844
    %v1867 = vmul.f32 %v1866, %v1844
    %v1868 = vmul.f32 %v1867, %v1866
    %v1869 = vmul.f32 0.5, %v1868
    %v1870 = vsub.f32 1.5, %v1869
    %v1871 = vmul.f32 %v1866, %v1870
    %vm1872 = vweird.f32 %v1844
    %vm1873 = vweird.f32 %v1866
    %vm1874 = vmor %vm1872, %vm1873
    %v1875 = vsel %vm1874, %v1866, %v1871
    %v1876 = vrsqrt.pop %v1845
    %v1877 = vmul.f32 %v1876, %v1845
    %v1878 = vmul.f32 %v1877, %v1876
    %v1879 = vmul.f32 0.5, %v1878
    %v1880 = vsub.f32 1.5, %v1879
    %v1881 = vmul.f32 %v1876, %v1880
    %vm1882 = vweird.f32 %v1845
    %vm1883 = vweird.f32 %v1876
    %vm1884 = vmor %vm1882, %vm1883
    %v1885 = vsel %vm1884, %v1876, %v1881
    %v1886 = vmul.f32 %v1818, %v1855
    %v1887 = vmul.f32 %v1819, %v1865
    %v1888 = vmul.f32 %v1820, %v1875
    %v1889 = vmul.f32 %v1821, %v1885
    %v1891 = vperm.slane %v1800, 0
    %v1893 = vmul.f32 %v1886, %v1891
    %v1894 = vmul.f32 %v1887, %v1891
    %v1895 = vmul.f32 %v1888, %v1891
    %v1896 = vmul.f32 %v1889, %v1891
    %v1898 = vperm.slane %v1801, 0
    %v1900 = vadd.f32 %v1893, %v1898
    %v1901 = vadd.f32 %v1894, %v1898
    %v1902 = vadd.f32 %v1895, %v1898
    %v1903 = vadd.f32 %v1896, %v1898
    %s1904 = scalar_lea.vmem %s6, 32
    %v1905 = vld [vmem:[%s1904] sm:$0xff]
    %v1906 = vld [vmem:[%s1904 + $0x8] sm:$0xff]
    %v1907 = vld [vmem:[%s1904 + $0x10] sm:$0xff]
    %v1908 = vld [vmem:[%s1904 + $0x18] sm:$0xff]
    %s1909 = scalar_lea.vmem %s7, 1
    %v1910 = vld [vmem:[%s1909] sm:$0x1]
    %v1912 = vperm.slane %v1910, 0
    %v1915 = vsel %vm232, %v1900, 0
    %v1918 = vsel %vm232, %v1901, 0
    %v1921 = vsel %vm232, %v1902, 0
    %v1924 = vsel %vm232, %v1903, 0
    %1926 = vmatpush.msra.mxu0 0.0
    %1927 = vmatpush.msra.mxu0 0.0
    %1928 = vmatpush.msra.mxu0 0.0
    %1929 = vmatpush.msra.mxu0 0.0
    %1930 = vmatpush.msra.mxu0 0.0
    %1931 = vmatpush.msra.mxu0 0.0
    %1932 = vmatpush.msra.mxu0 0.0
    %1933 = vmatpush.msra.mxu0 0.0
    %1934 = vmatpush.msra.mxu0 0.0
    %1935 = vmatpush.msra.mxu0 0.0
    %1936 = vmatpush.msra.mxu0 0.0
    %1937 = vmatpush.msra.mxu0 0.0
    %1938 = vmatpush.msra.mxu0 %v1908
    %1939 = vmatpush.msra.mxu0 %v1907
    %1940 = vmatpush.msra.mxu0 %v1906
    %1941 = vmatpush.msra.mxu0 %v1905
    %1942 = vmatmul.f32.gmra.mxu0 %v1915
    %v1943 = vpop.f32.mrf.mxu0
    %v1944 = vadd.f32 %v1912, %v1943
    %1945 = vmatmul.f32.gmra.mxu0 %v1918
    %v1946 = vpop.f32.mrf.mxu0
    %v1947 = vadd.f32 %v1912, %v1946
    %1948 = vmatmul.f32.gmra.mxu0 %v1921
    %v1949 = vpop.f32.mrf.mxu0
    %v1950 = vadd.f32 %v1912, %v1949
    %1951 = vmatmul.f32.gmra.mxu0 %v1924
    %v1952 = vpop.f32.mrf.mxu0
    %v1953 = vadd.f32 %v1912, %v1952
    %1954 = vdwg.mxu0
    %1956 = vrot.lane.b32.xlu0 %v1944, 96
    %v1957 = vpop.permute.xlu0 %1956
    %v1958 = vsel %vm410, %v1944, 0
    %v1960 = vsel %vm410, %v1957, 0
    %1962 = vmatpush.xpose.msra.mxu0 0.0
    %1963 = vmatpush.xpose.msra.mxu0 0.0
    %1964 = vmatpush.xpose.msra.mxu0 0.0
    %1965 = vmatpush.xpose.msra.mxu0 0.0
    %1966 = vmatpush.xpose.msra.mxu0 0.0
    %1967 = vmatpush.xpose.msra.mxu0 0.0
    %1968 = vmatpush.xpose.msra.mxu0 0.0
    %1969 = vmatpush.xpose.msra.mxu0 0.0
    %1970 = vmatpush.xpose.msra.mxu0 0.0
    %1971 = vmatpush.xpose.msra.mxu0 0.0
    %1972 = vmatpush.xpose.msra.mxu0 0.0
    %1973 = vmatpush.xpose.msra.mxu0 0.0
    %1974 = vmatpush.xpose.msra.mxu0 0.0
    %1975 = vmatpush.xpose.msra.mxu0 0.0
    %1976 = vmatpush.xpose.msra.mxu0 0.0
    %1977 = vmatpush.xpose.msra.mxu0 %v1960
    %1978 = vmatmul.f32.gmra.mxu0 %v1958
    %v1979 = vpop.f32.mrf.mxu0
    %v1980 = vadd.f32 0.0, %v1979
    %1981 = vdwg.mxu0
    %1983 = vrot.lane.b32.xlu0 %v1947, 96
    %v1984 = vpop.permute.xlu0 %1983
    %v1985 = vsel %vm410, %v1947, 0
    %v1987 = vsel %vm410, %v1984, 0
    %1989 = vmatpush.xpose.msra.mxu0 0.0
    %1990 = vmatpush.xpose.msra.mxu0 0.0
    %1991 = vmatpush.xpose.msra.mxu0 0.0
    %1992 = vmatpush.xpose.msra.mxu0 0.0
    %1993 = vmatpush.xpose.msra.mxu0 0.0
    %1994 = vmatpush.xpose.msra.mxu0 0.0
    %1995 = vmatpush.xpose.msra.mxu0 0.0
    %1996 = vmatpush.xpose.msra.mxu0 0.0
    %1997 = vmatpush.xpose.msra.mxu0 0.0
    %1998 = vmatpush.xpose.msra.mxu0 0.0
    %1999 = vmatpush.xpose.msra.mxu0 0.0
    %2000 = vmatpush.xpose.msra.mxu0 0.0
    %2001 = vmatpush.xpose.msra.mxu0 0.0
    %2002 = vmatpush.xpose.msra.mxu0 0.0
    %2003 = vmatpush.xpose.msra.mxu0 0.0
    %2004 = vmatpush.xpose.msra.mxu0 %v1987
    %2005 = vmatmul.f32.gmra.mxu0 %v1985
    %v2006 = vpop.f32.mrf.mxu0
    %v2007 = vadd.f32 0.0, %v2006
    %2008 = vdwg.mxu0
    %2010 = vrot.lane.b32.xlu0 %v1950, 96
    %v2011 = vpop.permute.xlu0 %2010
    %v2012 = vsel %vm410, %v1950, 0
    %v2014 = vsel %vm410, %v2011, 0
    %2016 = vmatpush.xpose.msra.mxu0 0.0
    %2017 = vmatpush.xpose.msra.mxu0 0.0
    %2018 = vmatpush.xpose.msra.mxu0 0.0
    %2019 = vmatpush.xpose.msra.mxu0 0.0
    %2020 = vmatpush.xpose.msra.mxu0 0.0
    %2021 = vmatpush.xpose.msra.mxu0 0.0
    %2022 = vmatpush.xpose.msra.mxu0 0.0
    %2023 = vmatpush.xpose.msra.mxu0 0.0
    %2024 = vmatpush.xpose.msra.mxu0 0.0
    %2025 = vmatpush.xpose.msra.mxu0 0.0
    %2026 = vmatpush.xpose.msra.mxu0 0.0
    %2027 = vmatpush.xpose.msra.mxu0 0.0
    %2028 = vmatpush.xpose.msra.mxu0 0.0
    %2029 = vmatpush.xpose.msra.mxu0 0.0
    %2030 = vmatpush.xpose.msra.mxu0 0.0
    %2031 = vmatpush.xpose.msra.mxu0 %v2014
    %2032 = vmatmul.f32.gmra.mxu0 %v2012
    %v2033 = vpop.f32.mrf.mxu0
    %v2034 = vadd.f32 0.0, %v2033
    %2035 = vdwg.mxu0
    %2037 = vrot.lane.b32.xlu0 %v1953, 96
    %v2038 = vpop.permute.xlu0 %2037
    %v2039 = vsel %vm410, %v1953, 0
    %v2041 = vsel %vm410, %v2038, 0
    %2043 = vmatpush.xpose.msra.mxu0 0.0
    %2044 = vmatpush.xpose.msra.mxu0 0.0
    %2045 = vmatpush.xpose.msra.mxu0 0.0
    %2046 = vmatpush.xpose.msra.mxu0 0.0
    %2047 = vmatpush.xpose.msra.mxu0 0.0
    %2048 = vmatpush.xpose.msra.mxu0 0.0
    %2049 = vmatpush.xpose.msra.mxu0 0.0
    %2050 = vmatpush.xpose.msra.mxu0 0.0
    %2051 = vmatpush.xpose.msra.mxu0 0.0
    %2052 = vmatpush.xpose.msra.mxu0 0.0
    %2053 = vmatpush.xpose.msra.mxu0 0.0
    %2054 = vmatpush.xpose.msra.mxu0 0.0
    %2055 = vmatpush.xpose.msra.mxu0 0.0
    %2056 = vmatpush.xpose.msra.mxu0 0.0
    %2057 = vmatpush.xpose.msra.mxu0 0.0
    %2058 = vmatpush.xpose.msra.mxu0 %v2041
    %2059 = vmatmul.f32.gmra.mxu0 %v2039
    %v2060 = vpop.f32.mrf.mxu0
    %v2061 = vadd.f32 0.0, %v2060
    %2062 = vdwg.mxu0
    %v2063 = vmul.f32 %v1980, 0.35355338
    %v2064 = vmul.f32 %v2007, 0.35355338
    %v2065 = vmul.f32 %v2034, 0.35355338
    %v2066 = vmul.f32 %v2061, 0.35355338
    %v2067 = vadd.f32 %v2063, %v350
    %v2068 = vadd.f32 %v2064, %v351
    %v2069 = vadd.f32 %v2065, %v352
    %v2070 = vadd.f32 %v2066, %v353
    %v2071 = vsel %vm410, %v2067, -inf
    %2072 = vmax.xlane.f32.xlu0 %v2071
    %v2073 = vpop.xlane.xlu0 %2072
    %v2074 = vsel %vm410, %v2068, -inf
    %2075 = vmax.xlane.f32.xlu0 %v2074
    %v2076 = vpop.xlane.xlu0 %2075
    %v2077 = vsel %vm410, %v2069, -inf
    %2078 = vmax.xlane.f32.xlu0 %v2077
    %v2079 = vpop.xlane.xlu0 %2078
    %v2080 = vsel %vm410, %v2070, -inf
    %2081 = vmax.xlane.f32.xlu0 %v2080
    %v2082 = vpop.xlane.xlu0 %2081
    %v2083 = vsub.f32 %v2067, %v2073
    %v2084 = vsub.f32 %v2068, %v2076
    %v2085 = vsub.f32 %v2069, %v2079
    %v2086 = vsub.f32 %v2070, %v2082
    %v2087 = vmul.f32 %v2083, 1.442695
    %v2088 = vpow.pop %v2087
    %v2089 = vmul.f32 %v2084, 1.442695
    %v2090 = vpow.pop %v2089
    %v2091 = vmul.f32 %v2085, 1.442695
    %v2092 = vpow.pop %v2091
    %v2093 = vmul.f32 %v2086, 1.442695
    %v2094 = vpow.pop %v2093
    %v2095 = vsel %vm410, %v2088, 0.0
    %2096 = vadd.xlane.f32.xlu0 %v2095
    %v2097 = vpop.xlane.xlu0 %2096
    %v2098 = vsel %vm410, %v2090, 0.0
    %2099 = vadd.xlane.f32.xlu0 %v2098
    %v2100 = vpop.xlane.xlu0 %2099
    %v2101 = vsel %vm410, %v2092, 0.0
    %2102 = vadd.xlane.f32.xlu0 %v2101
    %v2103 = vpop.xlane.xlu0 %2102
    %v2104 = vsel %vm410, %v2094, 0.0
    %2105 = vadd.xlane.f32.xlu0 %v2104
    %v2106 = vpop.xlane.xlu0 %2105
    %v2107 = vrcp.pop %v2097
    %v2108 = vrcp.pop %v2100
    %v2109 = vrcp.pop %v2103
    %v2110 = vrcp.pop %v2106
    %v2111 = vmul.f32 %v2088, %v2107
    %v2112 = vmul.f32 %v2090, %v2108
    %v2113 = vmul.f32 %v2092, %v2109
    %v2114 = vmul.f32 %v2094, %v2110
    %2115 = vrot.lane.b32.xlu0 %v1944, 64
    %v2116 = vpop.permute.xlu0 %2115
    %v2119 = vsel %vm410, %v2111, 0
    %2121 = vmatpush.msra.mxu0 0.0
    %2122 = vmatpush.msra.mxu0 0.0
    %2123 = vmatpush.msra.mxu0 0.0
    %2124 = vmatpush.msra.mxu0 0.0
    %2125 = vmatpush.msra.mxu0 0.0
    %2126 = vmatpush.msra.mxu0 0.0
    %2127 = vmatpush.msra.mxu0 0.0
    %2128 = vmatpush.msra.mxu0 0.0
    %2129 = vmatpush.msra.mxu0 0.0
    %2130 = vmatpush.msra.mxu0 0.0
    %2131 = vmatpush.msra.mxu0 0.0
    %2132 = vmatpush.msra.mxu0 0.0
    %2133 = vmatpush.msra.mxu0 0.0
    %2134 = vmatpush.msra.mxu0 0.0
    %2135 = vmatpush.msra.mxu0 0.0
    %2136 = vmatpush.msra.mxu0 %v2116
    %2137 = vmatmul.f32.gmra.mxu0 %v2119
    %v2138 = vpop.f32.mrf.mxu0
    %v2139 = vadd.f32 0.0, %v2138
    %2140 = vdwg.mxu0
    %2141 = vrot.lane.b32.xlu0 %v1947, 64
    %v2142 = vpop.permute.xlu0 %2141
    %v2145 = vsel %vm410, %v2112, 0
    %2147 = vmatpush.msra.mxu0 0.0
    %2148 = vmatpush.msra.mxu0 0.0
    %2149 = vmatpush.msra.mxu0 0.0
    %2150 = vmatpush.msra.mxu0 0.0
    %2151 = vmatpush.msra.mxu0 0.0
    %2152 = vmatpush.msra.mxu0 0.0
    %2153 = vmatpush.msra.mxu0 0.0
    %2154 = vmatpush.msra.mxu0 0.0
    %2155 = vmatpush.msra.mxu0 0.0
    %2156 = vmatpush.msra.mxu0 0.0
    %2157 = vmatpush.msra.mxu0 0.0
    %2158 = vmatpush.msra.mxu0 0.0
    %2159 = vmatpush.msra.mxu0 0.0
    %2160 = vmatpush.msra.mxu0 0.0
    %2161 = vmatpush.msra.mxu0 0.0
    %2162 = vmatpush.msra.mxu0 %v2142
    %2163 = vmatmul.f32.gmra.mxu0 %v2145
    %v2164 = vpop.f32.mrf.mxu0
    %v2165 = vadd.f32 0.0, %v2164
    %2166 = vdwg.mxu0
    %2167 = vrot.lane.b32.xlu0 %v1950, 64
    %v2168 = vpop.permute.xlu0 %2167
    %v2171 = vsel %vm410, %v2113, 0
    %2173 = vmatpush.msra.mxu0 0.0
    %2174 = vmatpush.msra.mxu0 0.0
    %2175 = vmatpush.msra.mxu0 0.0
    %2176 = vmatpush.msra.mxu0 0.0
    %2177 = vmatpush.msra.mxu0 0.0
    %2178 = vmatpush.msra.mxu0 0.0
    %2179 = vmatpush.msra.mxu0 0.0
    %2180 = vmatpush.msra.mxu0 0.0
    %2181 = vmatpush.msra.mxu0 0.0
    %2182 = vmatpush.msra.mxu0 0.0
    %2183 = vmatpush.msra.mxu0 0.0
    %2184 = vmatpush.msra.mxu0 0.0
    %2185 = vmatpush.msra.mxu0 0.0
    %2186 = vmatpush.msra.mxu0 0.0
    %2187 = vmatpush.msra.mxu0 0.0
    %2188 = vmatpush.msra.mxu0 %v2168
    %2189 = vmatmul.f32.gmra.mxu0 %v2171
    %v2190 = vpop.f32.mrf.mxu0
    %v2191 = vadd.f32 0.0, %v2190
    %2192 = vdwg.mxu0
    %2193 = vrot.lane.b32.xlu0 %v1953, 64
    %v2194 = vpop.permute.xlu0 %2193
    %v2197 = vsel %vm410, %v2114, 0
    %2199 = vmatpush.msra.mxu0 0.0
    %2200 = vmatpush.msra.mxu0 0.0
    %2201 = vmatpush.msra.mxu0 0.0
    %2202 = vmatpush.msra.mxu0 0.0
    %2203 = vmatpush.msra.mxu0 0.0
    %2204 = vmatpush.msra.mxu0 0.0
    %2205 = vmatpush.msra.mxu0 0.0
    %2206 = vmatpush.msra.mxu0 0.0
    %2207 = vmatpush.msra.mxu0 0.0
    %2208 = vmatpush.msra.mxu0 0.0
    %2209 = vmatpush.msra.mxu0 0.0
    %2210 = vmatpush.msra.mxu0 0.0
    %2211 = vmatpush.msra.mxu0 0.0
    %2212 = vmatpush.msra.mxu0 0.0
    %2213 = vmatpush.msra.mxu0 0.0
    %2214 = vmatpush.msra.mxu0 %v2194
    %2215 = vmatmul.f32.gmra.mxu0 %v2197
    %v2216 = vpop.f32.mrf.mxu0
    %v2217 = vadd.f32 0.0, %v2216
    %2218 = vdwg.mxu0
    %2219 = vrot.lane.b32.xlu0 %v1944, 120
    %v2220 = vpop.permute.xlu0 %2219
    %2221 = vrot.lane.b32.xlu0 %v1944, 88
    %v2222 = vpop.permute.xlu0 %2221
    %v2223 = vsel %vm410, %v2220, 0
    %v2225 = vsel %vm410, %v2222, 0
    %2227 = vmatpush.xpose.msra.mxu0 0.0
    %2228 = vmatpush.xpose.msra.mxu0 0.0
    %2229 = vmatpush.xpose.msra.mxu0 0.0
    %2230 = vmatpush.xpose.msra.mxu0 0.0
    %2231 = vmatpush.xpose.msra.mxu0 0.0
    %2232 = vmatpush.xpose.msra.mxu0 0.0
    %2233 = vmatpush.xpose.msra.mxu0 0.0
    %2234 = vmatpush.xpose.msra.mxu0 0.0
    %2235 = vmatpush.xpose.msra.mxu0 0.0
    %2236 = vmatpush.xpose.msra.mxu0 0.0
    %2237 = vmatpush.xpose.msra.mxu0 0.0
    %2238 = vmatpush.xpose.msra.mxu0 0.0
    %2239 = vmatpush.xpose.msra.mxu0 0.0
    %2240 = vmatpush.xpose.msra.mxu0 0.0
    %2241 = vmatpush.xpose.msra.mxu0 0.0
    %2242 = vmatpush.xpose.msra.mxu0 %v2225
    %2243 = vmatmul.f32.gmra.mxu0 %v2223
    %v2244 = vpop.f32.mrf.mxu0
    %v2245 = vadd.f32 0.0, %v2244
    %2246 = vdwg.mxu0
    %2247 = vrot.lane.b32.xlu0 %v1947, 120
    %v2248 = vpop.permute.xlu0 %2247
    %2249 = vrot.lane.b32.xlu0 %v1947, 88
    %v2250 = vpop.permute.xlu0 %2249
    %v2251 = vsel %vm410, %v2248, 0
    %v2253 = vsel %vm410, %v2250, 0
    %2255 = vmatpush.xpose.msra.mxu0 0.0
    %2256 = vmatpush.xpose.msra.mxu0 0.0
    %2257 = vmatpush.xpose.msra.mxu0 0.0
    %2258 = vmatpush.xpose.msra.mxu0 0.0
    %2259 = vmatpush.xpose.msra.mxu0 0.0
    %2260 = vmatpush.xpose.msra.mxu0 0.0
    %2261 = vmatpush.xpose.msra.mxu0 0.0
    %2262 = vmatpush.xpose.msra.mxu0 0.0
    %2263 = vmatpush.xpose.msra.mxu0 0.0
    %2264 = vmatpush.xpose.msra.mxu0 0.0
    %2265 = vmatpush.xpose.msra.mxu0 0.0
    %2266 = vmatpush.xpose.msra.mxu0 0.0
    %2267 = vmatpush.xpose.msra.mxu0 0.0
    %2268 = vmatpush.xpose.msra.mxu0 0.0
    %2269 = vmatpush.xpose.msra.mxu0 0.0
    %2270 = vmatpush.xpose.msra.mxu0 %v2253
    %2271 = vmatmul.f32.gmra.mxu0 %v2251
    %v2272 = vpop.f32.mrf.mxu0
    %v2273 = vadd.f32 0.0, %v2272
    %2274 = vdwg.mxu0
    %2275 = vrot.lane.b32.xlu0 %v1950, 120
    %v2276 = vpop.permute.xlu0 %2275
    %2277 = vrot.lane.b32.xlu0 %v1950, 88
    %v2278 = vpop.permute.xlu0 %2277
    %v2279 = vsel %vm410, %v2276, 0
    %v2281 = vsel %vm410, %v2278, 0
    %2283 = vmatpush.xpose.msra.mxu0 0.0
    %2284 = vmatpush.xpose.msra.mxu0 0.0
    %2285 = vmatpush.xpose.msra.mxu0 0.0
    %2286 = vmatpush.xpose.msra.mxu0 0.0
    %2287 = vmatpush.xpose.msra.mxu0 0.0
    %2288 = vmatpush.xpose.msra.mxu0 0.0
    %2289 = vmatpush.xpose.msra.mxu0 0.0
    %2290 = vmatpush.xpose.msra.mxu0 0.0
    %2291 = vmatpush.xpose.msra.mxu0 0.0
    %2292 = vmatpush.xpose.msra.mxu0 0.0
    %2293 = vmatpush.xpose.msra.mxu0 0.0
    %2294 = vmatpush.xpose.msra.mxu0 0.0
    %2295 = vmatpush.xpose.msra.mxu0 0.0
    %2296 = vmatpush.xpose.msra.mxu0 0.0
    %2297 = vmatpush.xpose.msra.mxu0 0.0
    %2298 = vmatpush.xpose.msra.mxu0 %v2281
    %2299 = vmatmul.f32.gmra.mxu0 %v2279
    %v2300 = vpop.f32.mrf.mxu0
    %v2301 = vadd.f32 0.0, %v2300
    %2302 = vdwg.mxu0
    %2303 = vrot.lane.b32.xlu0 %v1953, 120
    %v2304 = vpop.permute.xlu0 %2303
    %2305 = vrot.lane.b32.xlu0 %v1953, 88
    %v2306 = vpop.permute.xlu0 %2305
    %v2307 = vsel %vm410, %v2304, 0
    %v2309 = vsel %vm410, %v2306, 0
    %2311 = vmatpush.xpose.msra.mxu0 0.0
    %2312 = vmatpush.xpose.msra.mxu0 0.0
    %2313 = vmatpush.xpose.msra.mxu0 0.0
    %2314 = vmatpush.xpose.msra.mxu0 0.0
    %2315 = vmatpush.xpose.msra.mxu0 0.0
    %2316 = vmatpush.xpose.msra.mxu0 0.0
    %2317 = vmatpush.xpose.msra.mxu0 0.0
    %2318 = vmatpush.xpose.msra.mxu0 0.0
    %2319 = vmatpush.xpose.msra.mxu0 0.0
    %2320 = vmatpush.xpose.msra.mxu0 0.0
    %2321 = vmatpush.xpose.msra.mxu0 0.0
    %2322 = vmatpush.xpose.msra.mxu0 0.0
    %2323 = vmatpush.xpose.msra.mxu0 0.0
    %2324 = vmatpush.xpose.msra.mxu0 0.0
    %2325 = vmatpush.xpose.msra.mxu0 0.0
    %2326 = vmatpush.xpose.msra.mxu0 %v2309
    %2327 = vmatmul.f32.gmra.mxu0 %v2307
    %v2328 = vpop.f32.mrf.mxu0
    %v2329 = vadd.f32 0.0, %v2328
    %2330 = vdwg.mxu0
    %v2331 = vmul.f32 %v2245, 0.35355338
    %v2332 = vmul.f32 %v2273, 0.35355338
    %v2333 = vmul.f32 %v2301, 0.35355338
    %v2334 = vmul.f32 %v2329, 0.35355338
    %v2335 = vadd.f32 %v2331, %v350
    %v2336 = vadd.f32 %v2332, %v351
    %v2337 = vadd.f32 %v2333, %v352
    %v2338 = vadd.f32 %v2334, %v353
    %v2339 = vsel %vm410, %v2335, -inf
    %2340 = vmax.xlane.f32.xlu0 %v2339
    %v2341 = vpop.xlane.xlu0 %2340
    %v2342 = vsel %vm410, %v2336, -inf
    %2343 = vmax.xlane.f32.xlu0 %v2342
    %v2344 = vpop.xlane.xlu0 %2343
    %v2345 = vsel %vm410, %v2337, -inf
    %2346 = vmax.xlane.f32.xlu0 %v2345
    %v2347 = vpop.xlane.xlu0 %2346
    %v2348 = vsel %vm410, %v2338, -inf
    %2349 = vmax.xlane.f32.xlu0 %v2348
    %v2350 = vpop.xlane.xlu0 %2349
    %v2351 = vsub.f32 %v2335, %v2341
    %v2352 = vsub.f32 %v2336, %v2344
    %v2353 = vsub.f32 %v2337, %v2347
    %v2354 = vsub.f32 %v2338, %v2350
    %v2355 = vmul.f32 %v2351, 1.442695
    %v2356 = vpow.pop %v2355
    %v2357 = vmul.f32 %v2352, 1.442695
    %v2358 = vpow.pop %v2357
    %v2359 = vmul.f32 %v2353, 1.442695
    %v2360 = vpow.pop %v2359
    %v2361 = vmul.f32 %v2354, 1.442695
    %v2362 = vpow.pop %v2361
    %v2363 = vsel %vm410, %v2356, 0.0
    %2364 = vadd.xlane.f32.xlu0 %v2363
    %v2365 = vpop.xlane.xlu0 %2364
    %v2366 = vsel %vm410, %v2358, 0.0
    %2367 = vadd.xlane.f32.xlu0 %v2366
    %v2368 = vpop.xlane.xlu0 %2367
    %v2369 = vsel %vm410, %v2360, 0.0
    %2370 = vadd.xlane.f32.xlu0 %v2369
    %v2371 = vpop.xlane.xlu0 %2370
    %v2372 = vsel %vm410, %v2362, 0.0
    %2373 = vadd.xlane.f32.xlu0 %v2372
    %v2374 = vpop.xlane.xlu0 %2373
    %v2375 = vrcp.pop %v2365
    %v2376 = vrcp.pop %v2368
    %v2377 = vrcp.pop %v2371
    %v2378 = vrcp.pop %v2374
    %v2379 = vmul.f32 %v2356, %v2375
    %v2380 = vmul.f32 %v2358, %v2376
    %v2381 = vmul.f32 %v2360, %v2377
    %v2382 = vmul.f32 %v2362, %v2378
    %2383 = vrot.lane.b32.xlu0 %v1944, 56
    %v2384 = vpop.permute.xlu0 %2383
    %v2387 = vsel %vm410, %v2379, 0
    %2389 = vmatpush.msra.mxu0 0.0
    %2390 = vmatpush.msra.mxu0 0.0
    %2391 = vmatpush.msra.mxu0 0.0
    %2392 = vmatpush.msra.mxu0 0.0
    %2393 = vmatpush.msra.mxu0 0.0
    %2394 = vmatpush.msra.mxu0 0.0
    %2395 = vmatpush.msra.mxu0 0.0
    %2396 = vmatpush.msra.mxu0 0.0
    %2397 = vmatpush.msra.mxu0 0.0
    %2398 = vmatpush.msra.mxu0 0.0
    %2399 = vmatpush.msra.mxu0 0.0
    %2400 = vmatpush.msra.mxu0 0.0
    %2401 = vmatpush.msra.mxu0 0.0
    %2402 = vmatpush.msra.mxu0 0.0
    %2403 = vmatpush.msra.mxu0 0.0
    %2404 = vmatpush.msra.mxu0 %v2384
    %2405 = vmatmul.f32.gmra.mxu0 %v2387
    %v2406 = vpop.f32.mrf.mxu0
    %v2407 = vadd.f32 0.0, %v2406
    %2408 = vdwg.mxu0
    %2409 = vrot.lane.b32.xlu0 %v1947, 56
    %v2410 = vpop.permute.xlu0 %2409
    %v2413 = vsel %vm410, %v2380, 0
    %2415 = vmatpush.msra.mxu0 0.0
    %2416 = vmatpush.msra.mxu0 0.0
    %2417 = vmatpush.msra.mxu0 0.0
    %2418 = vmatpush.msra.mxu0 0.0
    %2419 = vmatpush.msra.mxu0 0.0
    %2420 = vmatpush.msra.mxu0 0.0
    %2421 = vmatpush.msra.mxu0 0.0
    %2422 = vmatpush.msra.mxu0 0.0
    %2423 = vmatpush.msra.mxu0 0.0
    %2424 = vmatpush.msra.mxu0 0.0
    %2425 = vmatpush.msra.mxu0 0.0
    %2426 = vmatpush.msra.mxu0 0.0
    %2427 = vmatpush.msra.mxu0 0.0
    %2428 = vmatpush.msra.mxu0 0.0
    %2429 = vmatpush.msra.mxu0 0.0
    %2430 = vmatpush.msra.mxu0 %v2410
    %2431 = vmatmul.f32.gmra.mxu0 %v2413
    %v2432 = vpop.f32.mrf.mxu0
    %v2433 = vadd.f32 0.0, %v2432
    %2434 = vdwg.mxu0
    %2435 = vrot.lane.b32.xlu0 %v1950, 56
    %v2436 = vpop.permute.xlu0 %2435
    %v2439 = vsel %vm410, %v2381, 0
    %2441 = vmatpush.msra.mxu0 0.0
    %2442 = vmatpush.msra.mxu0 0.0
    %2443 = vmatpush.msra.mxu0 0.0
    %2444 = vmatpush.msra.mxu0 0.0
    %2445 = vmatpush.msra.mxu0 0.0
    %2446 = vmatpush.msra.mxu0 0.0
    %2447 = vmatpush.msra.mxu0 0.0
    %2448 = vmatpush.msra.mxu0 0.0
    %2449 = vmatpush.msra.mxu0 0.0
    %2450 = vmatpush.msra.mxu0 0.0
    %2451 = vmatpush.msra.mxu0 0.0
    %2452 = vmatpush.msra.mxu0 0.0
    %2453 = vmatpush.msra.mxu0 0.0
    %2454 = vmatpush.msra.mxu0 0.0
    %2455 = vmatpush.msra.mxu0 0.0
    %2456 = vmatpush.msra.mxu0 %v2436
    %2457 = vmatmul.f32.gmra.mxu0 %v2439
    %v2458 = vpop.f32.mrf.mxu0
    %v2459 = vadd.f32 0.0, %v2458
    %2460 = vdwg.mxu0
    %2461 = vrot.lane.b32.xlu0 %v1953, 56
    %v2462 = vpop.permute.xlu0 %2461
    %v2465 = vsel %vm410, %v2382, 0
    %2467 = vmatpush.msra.mxu0 0.0
    %2468 = vmatpush.msra.mxu0 0.0
    %2469 = vmatpush.msra.mxu0 0.0
    %2470 = vmatpush.msra.mxu0 0.0
    %2471 = vmatpush.msra.mxu0 0.0
    %2472 = vmatpush.msra.mxu0 0.0
    %2473 = vmatpush.msra.mxu0 0.0
    %2474 = vmatpush.msra.mxu0 0.0
    %2475 = vmatpush.msra.mxu0 0.0
    %2476 = vmatpush.msra.mxu0 0.0
    %2477 = vmatpush.msra.mxu0 0.0
    %2478 = vmatpush.msra.mxu0 0.0
    %2479 = vmatpush.msra.mxu0 0.0
    %2480 = vmatpush.msra.mxu0 0.0
    %2481 = vmatpush.msra.mxu0 0.0
    %2482 = vmatpush.msra.mxu0 %v2462
    %2483 = vmatmul.f32.gmra.mxu0 %v2465
    %v2484 = vpop.f32.mrf.mxu0
    %v2485 = vadd.f32 0.0, %v2484
    %2486 = vdwg.mxu0
    %2487 = vrot.lane.b32.xlu0 %v1944, 112
    %v2488 = vpop.permute.xlu0 %2487
    %2489 = vrot.lane.b32.xlu0 %v1944, 80
    %v2490 = vpop.permute.xlu0 %2489
    %v2491 = vsel %vm410, %v2488, 0
    %v2493 = vsel %vm410, %v2490, 0
    %2495 = vmatpush.xpose.msra.mxu0 0.0
    %2496 = vmatpush.xpose.msra.mxu0 0.0
    %2497 = vmatpush.xpose.msra.mxu0 0.0
    %2498 = vmatpush.xpose.msra.mxu0 0.0
    %2499 = vmatpush.xpose.msra.mxu0 0.0
    %2500 = vmatpush.xpose.msra.mxu0 0.0
    %2501 = vmatpush.xpose.msra.mxu0 0.0
    %2502 = vmatpush.xpose.msra.mxu0 0.0
    %2503 = vmatpush.xpose.msra.mxu0 0.0
    %2504 = vmatpush.xpose.msra.mxu0 0.0
    %2505 = vmatpush.xpose.msra.mxu0 0.0
    %2506 = vmatpush.xpose.msra.mxu0 0.0
    %2507 = vmatpush.xpose.msra.mxu0 0.0
    %2508 = vmatpush.xpose.msra.mxu0 0.0
    %2509 = vmatpush.xpose.msra.mxu0 0.0
    %2510 = vmatpush.xpose.msra.mxu0 %v2493
    %2511 = vmatmul.f32.gmra.mxu0 %v2491
    %v2512 = vpop.f32.mrf.mxu0
    %v2513 = vadd.f32 0.0, %v2512
    %2514 = vdwg.mxu0
    %2515 = vrot.lane.b32.xlu0 %v1947, 112
    %v2516 = vpop.permute.xlu0 %2515
    %2517 = vrot.lane.b32.xlu0 %v1947, 80
    %v2518 = vpop.permute.xlu0 %2517
    %v2519 = vsel %vm410, %v2516, 0
    %v2521 = vsel %vm410, %v2518, 0
    %2523 = vmatpush.xpose.msra.mxu0 0.0
    %2524 = vmatpush.xpose.msra.mxu0 0.0
    %2525 = vmatpush.xpose.msra.mxu0 0.0
    %2526 = vmatpush.xpose.msra.mxu0 0.0
    %2527 = vmatpush.xpose.msra.mxu0 0.0
    %2528 = vmatpush.xpose.msra.mxu0 0.0
    %2529 = vmatpush.xpose.msra.mxu0 0.0
    %2530 = vmatpush.xpose.msra.mxu0 0.0
    %2531 = vmatpush.xpose.msra.mxu0 0.0
    %2532 = vmatpush.xpose.msra.mxu0 0.0
    %2533 = vmatpush.xpose.msra.mxu0 0.0
    %2534 = vmatpush.xpose.msra.mxu0 0.0
    %2535 = vmatpush.xpose.msra.mxu0 0.0
    %2536 = vmatpush.xpose.msra.mxu0 0.0
    %2537 = vmatpush.xpose.msra.mxu0 0.0
    %2538 = vmatpush.xpose.msra.mxu0 %v2521
    %2539 = vmatmul.f32.gmra.mxu0 %v2519
    %v2540 = vpop.f32.mrf.mxu0
    %v2541 = vadd.f32 0.0, %v2540
    %2542 = vdwg.mxu0
    %2543 = vrot.lane.b32.xlu0 %v1950, 112
    %v2544 = vpop.permute.xlu0 %2543
    %2545 = vrot.lane.b32.xlu0 %v1950, 80
    %v2546 = vpop.permute.xlu0 %2545
    %v2547 = vsel %vm410, %v2544, 0
    %v2549 = vsel %vm410, %v2546, 0
    %2551 = vmatpush.xpose.msra.mxu0 0.0
    %2552 = vmatpush.xpose.msra.mxu0 0.0
    %2553 = vmatpush.xpose.msra.mxu0 0.0
    %2554 = vmatpush.xpose.msra.mxu0 0.0
    %2555 = vmatpush.xpose.msra.mxu0 0.0
    %2556 = vmatpush.xpose.msra.mxu0 0.0
    %2557 = vmatpush.xpose.msra.mxu0 0.0
    %2558 = vmatpush.xpose.msra.mxu0 0.0
    %2559 = vmatpush.xpose.msra.mxu0 0.0
    %2560 = vmatpush.xpose.msra.mxu0 0.0
    %2561 = vmatpush.xpose.msra.mxu0 0.0
    %2562 = vmatpush.xpose.msra.mxu0 0.0
    %2563 = vmatpush.xpose.msra.mxu0 0.0
    %2564 = vmatpush.xpose.msra.mxu0 0.0
    %2565 = vmatpush.xpose.msra.mxu0 0.0
    %2566 = vmatpush.xpose.msra.mxu0 %v2549
    %2567 = vmatmul.f32.gmra.mxu0 %v2547
    %v2568 = vpop.f32.mrf.mxu0
    %v2569 = vadd.f32 0.0, %v2568
    %2570 = vdwg.mxu0
    %2571 = vrot.lane.b32.xlu0 %v1953, 112
    %v2572 = vpop.permute.xlu0 %2571
    %2573 = vrot.lane.b32.xlu0 %v1953, 80
    %v2574 = vpop.permute.xlu0 %2573
    %v2575 = vsel %vm410, %v2572, 0
    %v2577 = vsel %vm410, %v2574, 0
    %2579 = vmatpush.xpose.msra.mxu0 0.0
    %2580 = vmatpush.xpose.msra.mxu0 0.0
    %2581 = vmatpush.xpose.msra.mxu0 0.0
    %2582 = vmatpush.xpose.msra.mxu0 0.0
    %2583 = vmatpush.xpose.msra.mxu0 0.0
    %2584 = vmatpush.xpose.msra.mxu0 0.0
    %2585 = vmatpush.xpose.msra.mxu0 0.0
    %2586 = vmatpush.xpose.msra.mxu0 0.0
    %2587 = vmatpush.xpose.msra.mxu0 0.0
    %2588 = vmatpush.xpose.msra.mxu0 0.0
    %2589 = vmatpush.xpose.msra.mxu0 0.0
    %2590 = vmatpush.xpose.msra.mxu0 0.0
    %2591 = vmatpush.xpose.msra.mxu0 0.0
    %2592 = vmatpush.xpose.msra.mxu0 0.0
    %2593 = vmatpush.xpose.msra.mxu0 0.0
    %2594 = vmatpush.xpose.msra.mxu0 %v2577
    %2595 = vmatmul.f32.gmra.mxu0 %v2575
    %v2596 = vpop.f32.mrf.mxu0
    %v2597 = vadd.f32 0.0, %v2596
    %2598 = vdwg.mxu0
    %v2599 = vmul.f32 %v2513, 0.35355338
    %v2600 = vmul.f32 %v2541, 0.35355338
    %v2601 = vmul.f32 %v2569, 0.35355338
    %v2602 = vmul.f32 %v2597, 0.35355338
    %v2603 = vadd.f32 %v2599, %v350
    %v2604 = vadd.f32 %v2600, %v351
    %v2605 = vadd.f32 %v2601, %v352
    %v2606 = vadd.f32 %v2602, %v353
    %v2607 = vsel %vm410, %v2603, -inf
    %2608 = vmax.xlane.f32.xlu0 %v2607
    %v2609 = vpop.xlane.xlu0 %2608
    %v2610 = vsel %vm410, %v2604, -inf
    %2611 = vmax.xlane.f32.xlu0 %v2610
    %v2612 = vpop.xlane.xlu0 %2611
    %v2613 = vsel %vm410, %v2605, -inf
    %2614 = vmax.xlane.f32.xlu0 %v2613
    %v2615 = vpop.xlane.xlu0 %2614
    %v2616 = vsel %vm410, %v2606, -inf
    %2617 = vmax.xlane.f32.xlu0 %v2616
    %v2618 = vpop.xlane.xlu0 %2617
    %v2619 = vsub.f32 %v2603, %v2609
    %v2620 = vsub.f32 %v2604, %v2612
    %v2621 = vsub.f32 %v2605, %v2615
    %v2622 = vsub.f32 %v2606, %v2618
    %v2623 = vmul.f32 %v2619, 1.442695
    %v2624 = vpow.pop %v2623
    %v2625 = vmul.f32 %v2620, 1.442695
    %v2626 = vpow.pop %v2625
    %v2627 = vmul.f32 %v2621, 1.442695
    %v2628 = vpow.pop %v2627
    %v2629 = vmul.f32 %v2622, 1.442695
    %v2630 = vpow.pop %v2629
    %v2631 = vsel %vm410, %v2624, 0.0
    %2632 = vadd.xlane.f32.xlu0 %v2631
    %v2633 = vpop.xlane.xlu0 %2632
    %v2634 = vsel %vm410, %v2626, 0.0
    %2635 = vadd.xlane.f32.xlu0 %v2634
    %v2636 = vpop.xlane.xlu0 %2635
    %v2637 = vsel %vm410, %v2628, 0.0
    %2638 = vadd.xlane.f32.xlu0 %v2637
    %v2639 = vpop.xlane.xlu0 %2638
    %v2640 = vsel %vm410, %v2630, 0.0
    %2641 = vadd.xlane.f32.xlu0 %v2640
    %v2642 = vpop.xlane.xlu0 %2641
    %v2643 = vrcp.pop %v2633
    %v2644 = vrcp.pop %v2636
    %v2645 = vrcp.pop %v2639
    %v2646 = vrcp.pop %v2642
    %v2647 = vmul.f32 %v2624, %v2643
    %v2648 = vmul.f32 %v2626, %v2644
    %v2649 = vmul.f32 %v2628, %v2645
    %v2650 = vmul.f32 %v2630, %v2646
    %2651 = vrot.lane.b32.xlu0 %v1944, 48
    %v2652 = vpop.permute.xlu0 %2651
    %v2655 = vsel %vm410, %v2647, 0
    %2657 = vmatpush.msra.mxu0 0.0
    %2658 = vmatpush.msra.mxu0 0.0
    %2659 = vmatpush.msra.mxu0 0.0
    %2660 = vmatpush.msra.mxu0 0.0
    %2661 = vmatpush.msra.mxu0 0.0
    %2662 = vmatpush.msra.mxu0 0.0
    %2663 = vmatpush.msra.mxu0 0.0
    %2664 = vmatpush.msra.mxu0 0.0
    %2665 = vmatpush.msra.mxu0 0.0
    %2666 = vmatpush.msra.mxu0 0.0
    %2667 = vmatpush.msra.mxu0 0.0
    %2668 = vmatpush.msra.mxu0 0.0
    %2669 = vmatpush.msra.mxu0 0.0
    %2670 = vmatpush.msra.mxu0 0.0
    %2671 = vmatpush.msra.mxu0 0.0
    %2672 = vmatpush.msra.mxu0 %v2652
    %2673 = vmatmul.f32.gmra.mxu0 %v2655
    %v2674 = vpop.f32.mrf.mxu0
    %v2675 = vadd.f32 0.0, %v2674
    %2676 = vdwg.mxu0
    %2677 = vrot.lane.b32.xlu0 %v1947, 48
    %v2678 = vpop.permute.xlu0 %2677
    %v2681 = vsel %vm410, %v2648, 0
    %2683 = vmatpush.msra.mxu0 0.0
    %2684 = vmatpush.msra.mxu0 0.0
    %2685 = vmatpush.msra.mxu0 0.0
    %2686 = vmatpush.msra.mxu0 0.0
    %2687 = vmatpush.msra.mxu0 0.0
    %2688 = vmatpush.msra.mxu0 0.0
    %2689 = vmatpush.msra.mxu0 0.0
    %2690 = vmatpush.msra.mxu0 0.0
    %2691 = vmatpush.msra.mxu0 0.0
    %2692 = vmatpush.msra.mxu0 0.0
    %2693 = vmatpush.msra.mxu0 0.0
    %2694 = vmatpush.msra.mxu0 0.0
    %2695 = vmatpush.msra.mxu0 0.0
    %2696 = vmatpush.msra.mxu0 0.0
    %2697 = vmatpush.msra.mxu0 0.0
    %2698 = vmatpush.msra.mxu0 %v2678
    %2699 = vmatmul.f32.gmra.mxu0 %v2681
    %v2700 = vpop.f32.mrf.mxu0
    %v2701 = vadd.f32 0.0, %v2700
    %2702 = vdwg.mxu0
    %2703 = vrot.lane.b32.xlu0 %v1950, 48
    %v2704 = vpop.permute.xlu0 %2703
    %v2707 = vsel %vm410, %v2649, 0
    %2709 = vmatpush.msra.mxu0 0.0
    %2710 = vmatpush.msra.mxu0 0.0
    %2711 = vmatpush.msra.mxu0 0.0
    %2712 = vmatpush.msra.mxu0 0.0
    %2713 = vmatpush.msra.mxu0 0.0
    %2714 = vmatpush.msra.mxu0 0.0
    %2715 = vmatpush.msra.mxu0 0.0
    %2716 = vmatpush.msra.mxu0 0.0
    %2717 = vmatpush.msra.mxu0 0.0
    %2718 = vmatpush.msra.mxu0 0.0
    %2719 = vmatpush.msra.mxu0 0.0
    %2720 = vmatpush.msra.mxu0 0.0
    %2721 = vmatpush.msra.mxu0 0.0
    %2722 = vmatpush.msra.mxu0 0.0
    %2723 = vmatpush.msra.mxu0 0.0
    %2724 = vmatpush.msra.mxu0 %v2704
    %2725 = vmatmul.f32.gmra.mxu0 %v2707
    %v2726 = vpop.f32.mrf.mxu0
    %v2727 = vadd.f32 0.0, %v2726
    %2728 = vdwg.mxu0
    %2729 = vrot.lane.b32.xlu0 %v1953, 48
    %v2730 = vpop.permute.xlu0 %2729
    %v2733 = vsel %vm410, %v2650, 0
    %2735 = vmatpush.msra.mxu0 0.0
    %2736 = vmatpush.msra.mxu0 0.0
    %2737 = vmatpush.msra.mxu0 0.0
    %2738 = vmatpush.msra.mxu0 0.0
    %2739 = vmatpush.msra.mxu0 0.0
    %2740 = vmatpush.msra.mxu0 0.0
    %2741 = vmatpush.msra.mxu0 0.0
    %2742 = vmatpush.msra.mxu0 0.0
    %2743 = vmatpush.msra.mxu0 0.0
    %2744 = vmatpush.msra.mxu0 0.0
    %2745 = vmatpush.msra.mxu0 0.0
    %2746 = vmatpush.msra.mxu0 0.0
    %2747 = vmatpush.msra.mxu0 0.0
    %2748 = vmatpush.msra.mxu0 0.0
    %2749 = vmatpush.msra.mxu0 0.0
    %2750 = vmatpush.msra.mxu0 %v2730
    %2751 = vmatmul.f32.gmra.mxu0 %v2733
    %v2752 = vpop.f32.mrf.mxu0
    %v2753 = vadd.f32 0.0, %v2752
    %2754 = vdwg.mxu0
    %2755 = vrot.lane.b32.xlu0 %v1944, 104
    %v2756 = vpop.permute.xlu0 %2755
    %2757 = vrot.lane.b32.xlu0 %v1944, 72
    %v2758 = vpop.permute.xlu0 %2757
    %v2759 = vsel %vm410, %v2756, 0
    %v2761 = vsel %vm410, %v2758, 0
    %2763 = vmatpush.xpose.msra.mxu0 0.0
    %2764 = vmatpush.xpose.msra.mxu0 0.0
    %2765 = vmatpush.xpose.msra.mxu0 0.0
    %2766 = vmatpush.xpose.msra.mxu0 0.0
    %2767 = vmatpush.xpose.msra.mxu0 0.0
    %2768 = vmatpush.xpose.msra.mxu0 0.0
    %2769 = vmatpush.xpose.msra.mxu0 0.0
    %2770 = vmatpush.xpose.msra.mxu0 0.0
    %2771 = vmatpush.xpose.msra.mxu0 0.0
    %2772 = vmatpush.xpose.msra.mxu0 0.0
    %2773 = vmatpush.xpose.msra.mxu0 0.0
    %2774 = vmatpush.xpose.msra.mxu0 0.0
    %2775 = vmatpush.xpose.msra.mxu0 0.0
    %2776 = vmatpush.xpose.msra.mxu0 0.0
    %2777 = vmatpush.xpose.msra.mxu0 0.0
    %2778 = vmatpush.xpose.msra.mxu0 %v2761
    %2779 = vmatmul.f32.gmra.mxu0 %v2759
    %v2780 = vpop.f32.mrf.mxu0
    %v2781 = vadd.f32 0.0, %v2780
    %2782 = vdwg.mxu0
    %2783 = vrot.lane.b32.xlu0 %v1947, 104
    %v2784 = vpop.permute.xlu0 %2783
    %2785 = vrot.lane.b32.xlu0 %v1947, 72
    %v2786 = vpop.permute.xlu0 %2785
    %v2787 = vsel %vm410, %v2784, 0
    %v2789 = vsel %vm410, %v2786, 0
    %2791 = vmatpush.xpose.msra.mxu0 0.0
    %2792 = vmatpush.xpose.msra.mxu0 0.0
    %2793 = vmatpush.xpose.msra.mxu0 0.0
    %2794 = vmatpush.xpose.msra.mxu0 0.0
    %2795 = vmatpush.xpose.msra.mxu0 0.0
    %2796 = vmatpush.xpose.msra.mxu0 0.0
    %2797 = vmatpush.xpose.msra.mxu0 0.0
    %2798 = vmatpush.xpose.msra.mxu0 0.0
    %2799 = vmatpush.xpose.msra.mxu0 0.0
    %2800 = vmatpush.xpose.msra.mxu0 0.0
    %2801 = vmatpush.xpose.msra.mxu0 0.0
    %2802 = vmatpush.xpose.msra.mxu0 0.0
    %2803 = vmatpush.xpose.msra.mxu0 0.0
    %2804 = vmatpush.xpose.msra.mxu0 0.0
    %2805 = vmatpush.xpose.msra.mxu0 0.0
    %2806 = vmatpush.xpose.msra.mxu0 %v2789
    %2807 = vmatmul.f32.gmra.mxu0 %v2787
    %v2808 = vpop.f32.mrf.mxu0
    %v2809 = vadd.f32 0.0, %v2808
    %2810 = vdwg.mxu0
    %2811 = vrot.lane.b32.xlu0 %v1950, 104
    %v2812 = vpop.permute.xlu0 %2811
    %2813 = vrot.lane.b32.xlu0 %v1950, 72
    %v2814 = vpop.permute.xlu0 %2813
    %v2815 = vsel %vm410, %v2812, 0
    %v2817 = vsel %vm410, %v2814, 0
    %2819 = vmatpush.xpose.msra.mxu0 0.0
    %2820 = vmatpush.xpose.msra.mxu0 0.0
    %2821 = vmatpush.xpose.msra.mxu0 0.0
    %2822 = vmatpush.xpose.msra.mxu0 0.0
    %2823 = vmatpush.xpose.msra.mxu0 0.0
    %2824 = vmatpush.xpose.msra.mxu0 0.0
    %2825 = vmatpush.xpose.msra.mxu0 0.0
    %2826 = vmatpush.xpose.msra.mxu0 0.0
    %2827 = vmatpush.xpose.msra.mxu0 0.0
    %2828 = vmatpush.xpose.msra.mxu0 0.0
    %2829 = vmatpush.xpose.msra.mxu0 0.0
    %2830 = vmatpush.xpose.msra.mxu0 0.0
    %2831 = vmatpush.xpose.msra.mxu0 0.0
    %2832 = vmatpush.xpose.msra.mxu0 0.0
    %2833 = vmatpush.xpose.msra.mxu0 0.0
    %2834 = vmatpush.xpose.msra.mxu0 %v2817
    %2835 = vmatmul.f32.gmra.mxu0 %v2815
    %v2836 = vpop.f32.mrf.mxu0
    %v2837 = vadd.f32 0.0, %v2836
    %2838 = vdwg.mxu0
    %2839 = vrot.lane.b32.xlu0 %v1953, 104
    %v2840 = vpop.permute.xlu0 %2839
    %2841 = vrot.lane.b32.xlu0 %v1953, 72
    %v2842 = vpop.permute.xlu0 %2841
    %v2843 = vsel %vm410, %v2840, 0
    %v2845 = vsel %vm410, %v2842, 0
    %2847 = vmatpush.xpose.msra.mxu0 0.0
    %2848 = vmatpush.xpose.msra.mxu0 0.0
    %2849 = vmatpush.xpose.msra.mxu0 0.0
    %2850 = vmatpush.xpose.msra.mxu0 0.0
    %2851 = vmatpush.xpose.msra.mxu0 0.0
    %2852 = vmatpush.xpose.msra.mxu0 0.0
    %2853 = vmatpush.xpose.msra.mxu0 0.0
    %2854 = vmatpush.xpose.msra.mxu0 0.0
    %2855 = vmatpush.xpose.msra.mxu0 0.0
    %2856 = vmatpush.xpose.msra.mxu0 0.0
    %2857 = vmatpush.xpose.msra.mxu0 0.0
    %2858 = vmatpush.xpose.msra.mxu0 0.0
    %2859 = vmatpush.xpose.msra.mxu0 0.0
    %2860 = vmatpush.xpose.msra.mxu0 0.0
    %2861 = vmatpush.xpose.msra.mxu0 0.0
    %2862 = vmatpush.xpose.msra.mxu0 %v2845
    %2863 = vmatmul.f32.gmra.mxu0 %v2843
    %v2864 = vpop.f32.mrf.mxu0
    %v2865 = vadd.f32 0.0, %v2864
    %2866 = vdwg.mxu0
    %v2867 = vmul.f32 %v2781, 0.35355338
    %v2868 = vmul.f32 %v2809, 0.35355338
    %v2869 = vmul.f32 %v2837, 0.35355338
    %v2870 = vmul.f32 %v2865, 0.35355338
    %v2871 = vadd.f32 %v2867, %v350
    %v2872 = vadd.f32 %v2868, %v351
    %v2873 = vadd.f32 %v2869, %v352
    %v2874 = vadd.f32 %v2870, %v353
    %v2875 = vsel %vm410, %v2871, -inf
    %2876 = vmax.xlane.f32.xlu0 %v2875
    %v2877 = vpop.xlane.xlu0 %2876
    %v2878 = vsel %vm410, %v2872, -inf
    %2879 = vmax.xlane.f32.xlu0 %v2878
    %v2880 = vpop.xlane.xlu0 %2879
    %v2881 = vsel %vm410, %v2873, -inf
    %2882 = vmax.xlane.f32.xlu0 %v2881
    %v2883 = vpop.xlane.xlu0 %2882
    %v2884 = vsel %vm410, %v2874, -inf
    %2885 = vmax.xlane.f32.xlu0 %v2884
    %v2886 = vpop.xlane.xlu0 %2885
    %v2887 = vsub.f32 %v2871, %v2877
    %v2888 = vsub.f32 %v2872, %v2880
    %v2889 = vsub.f32 %v2873, %v2883
    %v2890 = vsub.f32 %v2874, %v2886
    %v2891 = vmul.f32 %v2887, 1.442695
    %v2892 = vpow.pop %v2891
    %v2893 = vmul.f32 %v2888, 1.442695
    %v2894 = vpow.pop %v2893
    %v2895 = vmul.f32 %v2889, 1.442695
    %v2896 = vpow.pop %v2895
    %v2897 = vmul.f32 %v2890, 1.442695
    %v2898 = vpow.pop %v2897
    %v2899 = vsel %vm410, %v2892, 0.0
    %2900 = vadd.xlane.f32.xlu0 %v2899
    %v2901 = vpop.xlane.xlu0 %2900
    %v2902 = vsel %vm410, %v2894, 0.0
    %2903 = vadd.xlane.f32.xlu0 %v2902
    %v2904 = vpop.xlane.xlu0 %2903
    %v2905 = vsel %vm410, %v2896, 0.0
    %2906 = vadd.xlane.f32.xlu0 %v2905
    %v2907 = vpop.xlane.xlu0 %2906
    %v2908 = vsel %vm410, %v2898, 0.0
    %2909 = vadd.xlane.f32.xlu0 %v2908
    %v2910 = vpop.xlane.xlu0 %2909
    %v2911 = vrcp.pop %v2901
    %v2912 = vrcp.pop %v2904
    %v2913 = vrcp.pop %v2907
    %v2914 = vrcp.pop %v2910
    %v2915 = vmul.f32 %v2892, %v2911
    %v2916 = vmul.f32 %v2894, %v2912
    %v2917 = vmul.f32 %v2896, %v2913
    %v2918 = vmul.f32 %v2898, %v2914
    %2919 = vrot.lane.b32.xlu0 %v1944, 40
    %v2920 = vpop.permute.xlu0 %2919
    %v2923 = vsel %vm410, %v2915, 0
    %2925 = vmatpush.msra.mxu0 0.0
    %2926 = vmatpush.msra.mxu0 0.0
    %2927 = vmatpush.msra.mxu0 0.0
    %2928 = vmatpush.msra.mxu0 0.0
    %2929 = vmatpush.msra.mxu0 0.0
    %2930 = vmatpush.msra.mxu0 0.0
    %2931 = vmatpush.msra.mxu0 0.0
    %2932 = vmatpush.msra.mxu0 0.0
    %2933 = vmatpush.msra.mxu0 0.0
    %2934 = vmatpush.msra.mxu0 0.0
    %2935 = vmatpush.msra.mxu0 0.0
    %2936 = vmatpush.msra.mxu0 0.0
    %2937 = vmatpush.msra.mxu0 0.0
    %2938 = vmatpush.msra.mxu0 0.0
    %2939 = vmatpush.msra.mxu0 0.0
    %2940 = vmatpush.msra.mxu0 %v2920
    %2941 = vmatmul.f32.gmra.mxu0 %v2923
    %v2942 = vpop.f32.mrf.mxu0
    %v2943 = vadd.f32 0.0, %v2942
    %2944 = vdwg.mxu0
    %2945 = vrot.lane.b32.xlu0 %v1947, 40
    %v2946 = vpop.permute.xlu0 %2945
    %v2949 = vsel %vm410, %v2916, 0
    %2951 = vmatpush.msra.mxu0 0.0
    %2952 = vmatpush.msra.mxu0 0.0
    %2953 = vmatpush.msra.mxu0 0.0
    %2954 = vmatpush.msra.mxu0 0.0
    %2955 = vmatpush.msra.mxu0 0.0
    %2956 = vmatpush.msra.mxu0 0.0
    %2957 = vmatpush.msra.mxu0 0.0
    %2958 = vmatpush.msra.mxu0 0.0
    %2959 = vmatpush.msra.mxu0 0.0
    %2960 = vmatpush.msra.mxu0 0.0
    %2961 = vmatpush.msra.mxu0 0.0
    %2962 = vmatpush.msra.mxu0 0.0
    %2963 = vmatpush.msra.mxu0 0.0
    %2964 = vmatpush.msra.mxu0 0.0
    %2965 = vmatpush.msra.mxu0 0.0
    %2966 = vmatpush.msra.mxu0 %v2946
    %2967 = vmatmul.f32.gmra.mxu0 %v2949
    %v2968 = vpop.f32.mrf.mxu0
    %v2969 = vadd.f32 0.0, %v2968
    %2970 = vdwg.mxu0
    %2971 = vrot.lane.b32.xlu0 %v1950, 40
    %v2972 = vpop.permute.xlu0 %2971
    %v2975 = vsel %vm410, %v2917, 0
    %2977 = vmatpush.msra.mxu0 0.0
    %2978 = vmatpush.msra.mxu0 0.0
    %2979 = vmatpush.msra.mxu0 0.0
    %2980 = vmatpush.msra.mxu0 0.0
    %2981 = vmatpush.msra.mxu0 0.0
    %2982 = vmatpush.msra.mxu0 0.0
    %2983 = vmatpush.msra.mxu0 0.0
    %2984 = vmatpush.msra.mxu0 0.0
    %2985 = vmatpush.msra.mxu0 0.0
    %2986 = vmatpush.msra.mxu0 0.0
    %2987 = vmatpush.msra.mxu0 0.0
    %2988 = vmatpush.msra.mxu0 0.0
    %2989 = vmatpush.msra.mxu0 0.0
    %2990 = vmatpush.msra.mxu0 0.0
    %2991 = vmatpush.msra.mxu0 0.0
    %2992 = vmatpush.msra.mxu0 %v2972
    %2993 = vmatmul.f32.gmra.mxu0 %v2975
    %v2994 = vpop.f32.mrf.mxu0
    %v2995 = vadd.f32 0.0, %v2994
    %2996 = vdwg.mxu0
    %2997 = vrot.lane.b32.xlu0 %v1953, 40
    %v2998 = vpop.permute.xlu0 %2997
    %v3001 = vsel %vm410, %v2918, 0
    %3003 = vmatpush.msra.mxu0 0.0
    %3004 = vmatpush.msra.mxu0 0.0
    %3005 = vmatpush.msra.mxu0 0.0
    %3006 = vmatpush.msra.mxu0 0.0
    %3007 = vmatpush.msra.mxu0 0.0
    %3008 = vmatpush.msra.mxu0 0.0
    %3009 = vmatpush.msra.mxu0 0.0
    %3010 = vmatpush.msra.mxu0 0.0
    %3011 = vmatpush.msra.mxu0 0.0
    %3012 = vmatpush.msra.mxu0 0.0
    %3013 = vmatpush.msra.mxu0 0.0
    %3014 = vmatpush.msra.mxu0 0.0
    %3015 = vmatpush.msra.mxu0 0.0
    %3016 = vmatpush.msra.mxu0 0.0
    %3017 = vmatpush.msra.mxu0 0.0
    %3018 = vmatpush.msra.mxu0 %v2998
    %3019 = vmatmul.f32.gmra.mxu0 %v3001
    %v3020 = vpop.f32.mrf.mxu0
    %v3021 = vadd.f32 0.0, %v3020
    %3022 = vdwg.mxu0
    %3027 = vrot.lane.b32.xlu0 %v2407, 8
    %v3028 = vpop.permute.xlu0 %3027
    %3029 = vrot.lane.b32.xlu0 %v2433, 8
    %v3030 = vpop.permute.xlu0 %3029
    %3031 = vrot.lane.b32.xlu0 %v2459, 8
    %v3032 = vpop.permute.xlu0 %3031
    %3033 = vrot.lane.b32.xlu0 %v2485, 8
    %v3034 = vpop.permute.xlu0 %3033
    %3043 = vrot.lane.b32.xlu0 %v2675, 16
    %v3044 = vpop.permute.xlu0 %3043
    %3045 = vrot.lane.b32.xlu0 %v2701, 16
    %v3046 = vpop.permute.xlu0 %3045
    %3047 = vrot.lane.b32.xlu0 %v2727, 16
    %v3048 = vpop.permute.xlu0 %3047
    %3049 = vrot.lane.b32.xlu0 %v2753, 16
    %v3050 = vpop.permute.xlu0 %3049
    %3059 = vrot.lane.b32.xlu0 %v2943, 24
    %v3060 = vpop.permute.xlu0 %3059
    %3061 = vrot.lane.b32.xlu0 %v2969, 24
    %v3062 = vpop.permute.xlu0 %3061
    %3063 = vrot.lane.b32.xlu0 %v2995, 24
    %v3064 = vpop.permute.xlu0 %3063
    %3065 = vrot.lane.b32.xlu0 %v3021, 24
    %v3066 = vpop.permute.xlu0 %3065
    %v3071 = vsel %vm410, %v2139, %v3028
    %v3072 = vsel %vm410, %v2165, %v3030
    %v3073 = vsel %vm410, %v2191, %v3032
    %v3074 = vsel %vm410, %v2217, %v3034
    %v3075 = vsel %vm159, %v3071, %v3044
    %v3076 = vsel %vm159, %v3072, %v3046
    %v3077 = vsel %vm159, %v3073, %v3048
    %v3078 = vsel %vm159, %v3074, %v3050
    %v3079 = vsel %vm1532, %v3075, %v3060
    %v3080 = vsel %vm1532, %v3076, %v3062
    %v3081 = vsel %vm1532, %v3077, %v3064
    %v3082 = vsel %vm1532, %v3078, %v3066
    %s3083 = scalar_lea.vmem %s8, 32
    %v3084 = vld [vmem:[%s3083] sm:$0xff]
    %v3085 = vld [vmem:[%s3083 + $0x8] sm:$0xff]
    %v3086 = vld [vmem:[%s3083 + $0x10] sm:$0xff]
    %v3087 = vld [vmem:[%s3083 + $0x18] sm:$0xff]
    %s3088 = scalar_lea.vmem %s9, 1
    %v3089 = vld [vmem:[%s3088] sm:$0x1]
    %v3091 = vperm.slane %v3089, 0
    %v3094 = vsel %vm232, %v3079, 0
    %v3097 = vsel %vm232, %v3080, 0
    %v3100 = vsel %vm232, %v3081, 0
    %v3103 = vsel %vm232, %v3082, 0
    %3105 = vmatpush.msra.mxu0 0.0
    %3106 = vmatpush.msra.mxu0 0.0
    %3107 = vmatpush.msra.mxu0 0.0
    %3108 = vmatpush.msra.mxu0 0.0
    %3109 = vmatpush.msra.mxu0 0.0
    %3110 = vmatpush.msra.mxu0 0.0
    %3111 = vmatpush.msra.mxu0 0.0
    %3112 = vmatpush.msra.mxu0 0.0
    %3113 = vmatpush.msra.mxu0 0.0
    %3114 = vmatpush.msra.mxu0 0.0
    %3115 = vmatpush.msra.mxu0 0.0
    %3116 = vmatpush.msra.mxu0 0.0
    %3117 = vmatpush.msra.mxu0 %v3087
    %3118 = vmatpush.msra.mxu0 %v3086
    %3119 = vmatpush.msra.mxu0 %v3085
    %3120 = vmatpush.msra.mxu0 %v3084
    %3121 = vmatmul.f32.gmra.mxu0 %v3094
    %v3122 = vpop.f32.mrf.mxu0
    %v3123 = vadd.f32 %v3091, %v3122
    %3124 = vmatmul.f32.gmra.mxu0 %v3097
    %v3125 = vpop.f32.mrf.mxu0
    %v3126 = vadd.f32 %v3091, %v3125
    %3127 = vmatmul.f32.gmra.mxu0 %v3100
    %v3128 = vpop.f32.mrf.mxu0
    %v3129 = vadd.f32 %v3091, %v3128
    %3130 = vmatmul.f32.gmra.mxu0 %v3103
    %v3131 = vpop.f32.mrf.mxu0
    %v3132 = vadd.f32 %v3091, %v3131
    %3133 = vdwg.mxu0
    %v3134 = vadd.f32 %v1900, %v3123
    %v3135 = vadd.f32 %v1901, %v3126
    %v3136 = vadd.f32 %v1902, %v3129
    %v3137 = vadd.f32 %v1903, %v3132
    %s3138 = scalar_lea.vmem %s10, 1
    %v3139 = vld [vmem:[%s3138] sm:$0x1]
    %s3140 = scalar_lea.vmem %s11, 1
    %v3141 = vld [vmem:[%s3140] sm:$0x1]
    %v3146 = vrot.slane %v3135, 7
    %vm3147 = vcmask 1041409
    %v3148 = vsel %vm3147, %v3146, %v3134
    %v3149 = vrot.slane %v3136, 6
    %vm3150 = vcmask 1042434
    %v3151 = vsel %vm3150, %v3149, %v3148
    %v3152 = vrot.slane %v3137, 5
    %vm3153 = vcmask 1043459
    %v3154 = vsel %vm3153, %v3152, %v3151
    %vm3156 = vcmask 257024
    %v3157 = vsel %vm3156, %v3154, 0.0
    %3158 = vadd.xlane.f32.xlu0 %v3157
    %v3159 = vpop.xlane.xlu0 %3158
    %v3160 = vmul.f32 %v3159, %v251
    %v3162 = vrot.slane %v3160, 1
    %v3163 = vrot.slane %v3160, 2
    %v3164 = vrot.slane %v3160, 3
    %v3169 = vsub.f32 %v3134, %v3160
    %v3170 = vsub.f32 %v3135, %v3162
    %v3171 = vsub.f32 %v3136, %v3163
    %v3172 = vsub.f32 %v3137, %v3164
    %v3173 = vmul.f32 %v3169, %v3169
    %v3174 = vmul.f32 %v3170, %v3170
    %v3175 = vmul.f32 %v3171, %v3171
    %v3176 = vmul.f32 %v3172, %v3172
    %v3181 = vrot.slane %v3174, 7
    %v3182 = vsel %vm3147, %v3181, %v3173
    %v3183 = vrot.slane %v3175, 6
    %v3184 = vsel %vm3150, %v3183, %v3182
    %v3185 = vrot.slane %v3176, 5
    %v3186 = vsel %vm3153, %v3185, %v3184
    %v3188 = vsel %vm3156, %v3186, 0.0
    %3189 = vadd.xlane.f32.xlu0 %v3188
    %v3190 = vpop.xlane.xlu0 %3189
    %v3191 = vmul.f32 %v3190, %v251
    %v3192 = vadd.f32 %v3191, 1e-05
    %v3193 = vrsqrt.pop %v3192
    %v3194 = vmul.f32 %v3193, %v3192
    %v3195 = vmul.f32 %v3194, %v3193
    %v3196 = vmul.f32 0.5, %v3195
    %v3197 = vsub.f32 1.5, %v3196
    %v3198 = vmul.f32 %v3193, %v3197
    %vm3199 = vweird.f32 %v3192
    %vm3200 = vweird.f32 %v3193
    %vm3201 = vmor %vm3199, %vm3200
    %v3202 = vsel %vm3201, %v3193, %v3198
    %v3204 = vrot.slane %v3202, 1
    %v3205 = vrot.slane %v3202, 2
    %v3206 = vrot.slane %v3202, 3
    %v3211 = vmul.f32 %v3169, %v3202
    %v3212 = vmul.f32 %v3170, %v3204
    %v3213 = vmul.f32 %v3171, %v3205
    %v3214 = vmul.f32 %v3172, %v3206
    %v3216 = vperm.slane %v3139, 0
    %v3218 = vmul.f32 %v3211, %v3216
    %v3219 = vmul.f32 %v3212, %v3216
    %v3220 = vmul.f32 %v3213, %v3216
    %v3221 = vmul.f32 %v3214, %v3216
    %v3223 = vperm.slane %v3141, 0
    %v3225 = vadd.f32 %v3218, %v3223
    %v3226 = vadd.f32 %v3219, %v3223
    %v3227 = vadd.f32 %v3220, %v3223
    %v3228 = vadd.f32 %v3221, %v3223
    %s3229 = scalar_lea.vmem %s12, 32
    %v3230 = vld [vmem:[%s3229] sm:$0xff]
    %v3231 = vld [vmem:[%s3229 + $0x8] sm:$0xff]
    %v3232 = vld [vmem:[%s3229 + $0x10] sm:$0xff]
    %v3233 = vld [vmem:[%s3229 + $0x18] sm:$0xff]
    %s3234 = scalar_lea.vmem %s13, 1
    %v3235 = vld [vmem:[%s3234] sm:$0x1]
    %v3237 = vperm.slane %v3235, 0
    %v3243 = vrot.slane %v3226, 7
    %v3244 = vsel %vm3147, %v3243, %v3225
    %v3245 = vrot.slane %v3227, 6
    %v3246 = vsel %vm3150, %v3245, %v3244
    %v3247 = vrot.slane %v3228, 5
    %v3248 = vsel %vm3153, %v3247, %v3246
    %v3249 = vsel %vm232, %v3248, 0
    %3251 = vmatpush.msra.mxu0 0.0
    %3252 = vmatpush.msra.mxu0 0.0
    %3253 = vmatpush.msra.mxu0 0.0
    %3254 = vmatpush.msra.mxu0 0.0
    %3255 = vmatpush.msra.mxu0 0.0
    %3256 = vmatpush.msra.mxu0 0.0
    %3257 = vmatpush.msra.mxu0 0.0
    %3258 = vmatpush.msra.mxu0 0.0
    %3259 = vmatpush.msra.mxu0 0.0
    %3260 = vmatpush.msra.mxu0 0.0
    %3261 = vmatpush.msra.mxu0 0.0
    %3262 = vmatpush.msra.mxu0 0.0
    %3263 = vmatpush.msra.mxu0 %v3233
    %3264 = vmatpush.msra.mxu0 %v3232
    %3265 = vmatpush.msra.mxu0 %v3231
    %3266 = vmatpush.msra.mxu0 %v3230
    %3267 = vmatmul.f32.gmra.mxu0 %v3249
    %v3268 = vpop.f32.mrf.mxu0
    %v3269 = vadd.f32 %v3237, %v3268
    %3270 = vdwg.mxu0
    %v3271 = vmax.f32 %v3269, 0.0
    %s3272 = scalar_lea.vmem %s14, 128
    %v3273 = vld [vmem:[%s3272] sm:$0xff]
    %v3274 = vld [vmem:[%s3272 + $0x8] sm:$0xff]
    %v3275 = vld [vmem:[%s3272 + $0x10] sm:$0xff]
    %v3276 = vld [vmem:[%s3272 + $0x18] sm:$0xff]
    %v3277 = vld [vmem:[%s3272 + $0x20] sm:$0xff]
    %v3278 = vld [vmem:[%s3272 + $0x28] sm:$0xff]
    %v3279 = vld [vmem:[%s3272 + $0x30] sm:$0xff]
    %v3280 = vld [vmem:[%s3272 + $0x38] sm:$0xff]
    %v3281 = vld [vmem:[%s3272 + $0x40] sm:$0xff]
    %v3282 = vld [vmem:[%s3272 + $0x48] sm:$0xff]
    %v3283 = vld [vmem:[%s3272 + $0x50] sm:$0xff]
    %v3284 = vld [vmem:[%s3272 + $0x58] sm:$0xff]
    %v3285 = vld [vmem:[%s3272 + $0x60] sm:$0xff]
    %v3286 = vld [vmem:[%s3272 + $0x68] sm:$0xff]
    %v3287 = vld [vmem:[%s3272 + $0x70] sm:$0xff]
    %v3288 = vld [vmem:[%s3272 + $0x78] sm:$0xff]
    %s3289 = scalar_lea.vmem %s15, 1
    %v3290 = vld [vmem:[%s3289] sm:$0x1]
    %v3292 = vperm.slane %v3290, 0
    %3294 = vmatpush.msra.mxu0 %v3288
    %3295 = vmatpush.msra.mxu0 %v3287
    %3296 = vmatpush.msra.mxu0 %v3286
    %3297 = vmatpush.msra.mxu0 %v3285
    %3298 = vmatpush.msra.mxu0 %v3284
    %3299 = vmatpush.msra.mxu0 %v3283
    %3300 = vmatpush.msra.mxu0 %v3282
    %3301 = vmatpush.msra.mxu0 %v3281
    %3302 = vmatpush.msra.mxu0 %v3280
    %3303 = vmatpush.msra.mxu0 %v3279
    %3304 = vmatpush.msra.mxu0 %v3278
    %3305 = vmatpush.msra.mxu0 %v3277
    %3306 = vmatpush.msra.mxu0 %v3276
    %3307 = vmatpush.msra.mxu0 %v3275
    %3308 = vmatpush.msra.mxu0 %v3274
    %3309 = vmatpush.msra.mxu0 %v3273
    %3310 = vmatmul.f32.gmra.mxu0 %v3271
    %v3311 = vpop.f32.mrf.mxu0
    %v3312 = vadd.f32 %v3292, %v3311
    %3313 = vdwg.mxu0
    %v3315 = vrot.slane %v3312, 1
    %v3316 = vrot.slane %v3312, 2
    %v3317 = vrot.slane %v3312, 3
    %v3322 = vadd.f32 %v3225, %v3312
    %v3323 = vadd.f32 %v3226, %v3315
    %v3324 = vadd.f32 %v3227, %v3316
    %v3325 = vadd.f32 %v3228, %v3317
    %s3326 = scalar_lea.vmem %s16, 1
    %v3327 = vld [vmem:[%s3326] sm:$0x1]
    %s3328 = scalar_lea.vmem %s17, 1
    %v3329 = vld [vmem:[%s3328] sm:$0x1]
    %v3334 = vrot.slane %v3323, 7
    %v3335 = vsel %vm3147, %v3334, %v3322
    %v3336 = vrot.slane %v3324, 6
    %v3337 = vsel %vm3150, %v3336, %v3335
    %v3338 = vrot.slane %v3325, 5
    %v3339 = vsel %vm3153, %v3338, %v3337
    %v3341 = vsel %vm3156, %v3339, 0.0
    %3342 = vadd.xlane.f32.xlu0 %v3341
    %v3343 = vpop.xlane.xlu0 %3342
    %v3344 = vmul.f32 %v3343, %v251
    %v3346 = vrot.slane %v3344, 1
    %v3347 = vrot.slane %v3344, 2
    %v3348 = vrot.slane %v3344, 3
    %v3353 = vsub.f32 %v3322, %v3344
    %v3354 = vsub.f32 %v3323, %v3346
    %v3355 = vsub.f32 %v3324, %v3347
    %v3356 = vsub.f32 %v3325, %v3348
    %v3357 = vmul.f32 %v3353, %v3353
    %v3358 = vmul.f32 %v3354, %v3354
    %v3359 = vmul.f32 %v3355, %v3355
    %v3360 = vmul.f32 %v3356, %v3356
    %v3365 = vrot.slane %v3358, 7
    %v3366 = vsel %vm3147, %v3365, %v3357
    %v3367 = vrot.slane %v3359, 6
    %v3368 = vsel %vm3150, %v3367, %v3366
    %v3369 = vrot.slane %v3360, 5
    %v3370 = vsel %vm3153, %v3369, %v3368
    %v3372 = vsel %vm3156, %v3370, 0.0
    %3373 = vadd.xlane.f32.xlu0 %v3372
    %v3374 = vpop.xlane.xlu0 %3373
    %v3375 = vmul.f32 %v3374, %v251
    %v3376 = vadd.f32 %v3375, 1e-05
    %v3377 = vrsqrt.pop %v3376
    %v3378 = vmul.f32 %v3377, %v3376
    %v3379 = vmul.f32 %v3378, %v3377
    %v3380 = vmul.f32 0.5, %v3379
    %v3381 = vsub.f32 1.5, %v3380
    %v3382 = vmul.f32 %v3377, %v3381
    %vm3383 = vweird.f32 %v3376
    %vm3384 = vweird.f32 %v3377
    %vm3385 = vmor %vm3383, %vm3384
    %v3386 = vsel %vm3385, %v3377, %v3382
    %v3388 = vrot.slane %v3386, 1
    %v3389 = vrot.slane %v3386, 2
    %v3390 = vrot.slane %v3386, 3
    %v3395 = vmul.f32 %v3353, %v3386
    %v3396 = vmul.f32 %v3354, %v3388
    %v3397 = vmul.f32 %v3355, %v3389
    %v3398 = vmul.f32 %v3356, %v3390
    %v3400 = vperm.slane %v3327, 0
    %v3402 = vmul.f32 %v3395, %v3400
    %v3403 = vmul.f32 %v3396, %v3400
    %v3404 = vmul.f32 %v3397, %v3400
    %v3405 = vmul.f32 %v3398, %v3400
    %v3407 = vperm.slane %v3329, 0
    %v3409 = vadd.f32 %v3402, %v3407
    %v3410 = vadd.f32 %v3403, %v3407
    %v3411 = vadd.f32 %v3404, %v3407
    %v3412 = vadd.f32 %v3405, %v3407
    %v3413 = vld [vmem:[%s18] sm:$0x1]
    %v3414 = vld [vmem:[%s19] sm:$0x1]
    %v3419 = vrot.slane %v3410, 7
    %v3420 = vsel %vm3147, %v3419, %v3409
    %v3421 = vrot.slane %v3411, 6
    %v3422 = vsel %vm3150, %v3421, %v3420
    %v3423 = vrot.slane %v3412, 5
    %v3424 = vsel %vm3153, %v3423, %v3422
    %v3426 = vsel %vm3156, %v3424, 0.0
    %3427 = vadd.xlane.f32.xlu0 %v3426
    %v3428 = vpop.xlane.xlu0 %3427
    %v3429 = vmul.f32 %v3428, %v251
    %v3431 = vrot.slane %v3429, 1
    %v3432 = vrot.slane %v3429, 2
    %v3433 = vrot.slane %v3429, 3
    %v3438 = vsub.f32 %v3409, %v3429
    %v3439 = vsub.f32 %v3410, %v3431
    %v3440 = vsub.f32 %v3411, %v3432
    %v3441 = vsub.f32 %v3412, %v3433
    %v3442 = vmul.f32 %v3438, %v3438
    %v3443 = vmul.f32 %v3439, %v3439
    %v3444 = vmul.f32 %v3440, %v3440
    %v3445 = vmul.f32 %v3441, %v3441
    %v3450 = vrot.slane %v3443, 7
    %v3451 = vsel %vm3147, %v3450, %v3442
    %v3452 = vrot.slane %v3444, 6
    %v3453 = vsel %vm3150, %v3452, %v3451
    %v3454 = vrot.slane %v3445, 5
    %v3455 = vsel %vm3153, %v3454, %v3453
    %v3457 = vsel %vm3156, %v3455, 0.0
    %3458 = vadd.xlane.f32.xlu0 %v3457
    %v3459 = vpop.xlane.xlu0 %3458
    %v3460 = vmul.f32 %v3459, %v251
    %v3461 = vadd.f32 %v3460, 1e-05
    %v3462 = vrsqrt.pop %v3461
    %v3463 = vmul.f32 %v3462, %v3461
    %v3464 = vmul.f32 %v3463, %v3462
    %v3465 = vmul.f32 0.5, %v3464
    %v3466 = vsub.f32 1.5, %v3465
    %v3467 = vmul.f32 %v3462, %v3466
    %vm3468 = vweird.f32 %v3461
    %vm3469 = vweird.f32 %v3462
    %vm3470 = vmor %vm3468, %vm3469
    %v3471 = vsel %vm3470, %v3462, %v3467
    %v3473 = vrot.slane %v3471, 1
    %v3474 = vrot.slane %v3471, 2
    %v3475 = vrot.slane %v3471, 3
    %v3480 = vmul.f32 %v3438, %v3471
    %v3481 = vmul.f32 %v3439, %v3473
    %v3482 = vmul.f32 %v3440, %v3474
    %v3483 = vmul.f32 %v3441, %v3475
    %v3485 = vperm.slane %v3413, 0
    %v3487 = vmul.f32 %v3480, %v3485
    %v3488 = vmul.f32 %v3481, %v3485
    %v3489 = vmul.f32 %v3482, %v3485
    %v3490 = vmul.f32 %v3483, %v3485
    %v3492 = vperm.slane %v3414, 0
    %v3494 = vadd.f32 %v3487, %v3492
    %v3495 = vadd.f32 %v3488, %v3492
    %v3496 = vadd.f32 %v3489, %v3492
    %v3497 = vadd.f32 %v3490, %v3492
    %v3502 = vrot.slane %v3495, 7
    %v3503 = vsel %vm3147, %v3502, %v3494
    %v3504 = vrot.slane %v3496, 6
    %v3505 = vsel %vm3150, %v3504, %v3503
    %v3506 = vrot.slane %v3497, 5
    %v3507 = vsel %vm3153, %v3506, %v3505
    %3509 = vst.msk [vmem:[#allocation2] sm:$0xf] %vm3156, %v3507
    // Predicated region
    $region82: #{transformer_encoder_forward.1} parent=1 // pred_check
      _
    $region83: #{transformer_encoder_forward.1} parent=1 // pred_check_branch
      %3511 = sbr.rel (0) target = $region85
    $region84: #{transformer_encoder_forward.1} parent=1 // pred_region
      %3513 = vsyncadd [#allocation3], 0
      %s3515 = sshll.u32 [#allocation2], 4
      %s3516 = int_to_ptr.vmem [resolvable:$true] %s3515
      %s3517 = sshll.u32 %s20, 4
      %s3518 = int_to_ptr.hbm [resolvable:$true] %s3517
      %3520 = dma.vmem_to_hbm [thread:$0]  %s3516, 64, %s3518, [#allocation3]
    $region85: #{transformer_encoder_forward.1} parent=1 // pred_fallthru
      _
    // Predicated region
    $region86: #{transformer_encoder_forward.1} parent=1 // pred_check
      _
    $region87: #{transformer_encoder_forward.1} parent=1 // pred_check_branch
      %3522 = sbr.rel (0) target = $region89
    $region88: #{transformer_encoder_forward.1} parent=1 // pred_region
      %3524 = dma.done [#allocation3], 64
    $region89: #{transformer_encoder_forward.1} parent=1 // pred_fallthru
      _
    %3525 = vsyncpa [#allocation3], 1

</llo_original>
